<compile_context>
chip_gen: v6e
topology: v6e:2x2x1
jax: 0.10.0
libtpu: 0.0.40
codegen_flags: <defaults>
</compile_context>

<pallas_src>
import numpy as np
import jax
import jax.numpy as jnp
from jax import lax
from jax.experimental import pallas as pl
from jax.experimental.pallas import tpu as pltpu

NEG_SLOPE = 0.01   # nn.LeakyReLU default
BN_EPS = 1e-5      # nn.BatchNorm1d default (training-mode batch statistics)
LN_EPS = 1e-5      # nn.LayerNorm default
KSIZE = 7
STRIDE = 2

_VMEM_SPEC = pl.BlockSpec(memory_space=pltpu.MemorySpace.VMEM)


def _conv_out_len(lin):
    return (lin - KSIZE) // STRIDE + 1


# ----------------------------- fused Pallas kernel --------------------------------

def _make_encoder_kernel(n, lins, louts, couts, l3, hidden, latent):
    """Build the fused kernel for static dims.

    Activation slabs are 2D (n * length, channels); row index = b * length + pos.
    Ref layout (all in VMEM):
      refs[0]                : input slab (n*L0, Cin)
      refs[1 .. n_layers]    : stacked conv weights, each (K, Cin_i, Cout_i)
      refs[n_layers+1]       : conv params (n_layers, 3, max_cout)  rows: bias/gamma/beta
      refs[n_layers+2]       : dense1 weights (l3, c3, hidden)
      refs[n_layers+3]       : dense2 weights (hidden, latent)
      refs[n_layers+4]       : head params (3, width)  rows: b1 / ln_gamma / ln_beta
      refs[n_layers+5]       : output (n, latent)
      refs[n_layers+6 ..]    : activation scratch slabs (n*Lout_i, Cout_i)
    """
    n_layers = len(lins)

    def kernel(*refs):
        x_ref = refs[0]
        w_refs = refs[1:1 + n_layers]
        cp_ref = refs[1 + n_layers]
        wd1_ref = refs[2 + n_layers]
        wd2_ref = refs[3 + n_layers]
        hp_ref = refs[4 + n_layers]
        out_ref = refs[5 + n_layers]
        act_refs = refs[6 + n_layers:]

        src_refs = (x_ref,) + tuple(act_refs[:-1])

        for li in range(n_layers):
            src, dst, w = src_refs[li], act_refs[li], w_refs[li]
            lin, lout, cout = lins[li], louts[li], couts[li]

            bias = cp_ref[li, 0:1, :cout]          # (1, cout)
            gamma = cp_ref[li, 1:2, :cout]
            beta = cp_ref[li, 2:3, :cout]

            # Conv1d(stride=2, k=7) as tap-accumulated matmuls; bias + LeakyReLU fused.
            # Pre-BN activations stay in vregs; per-channel sums accumulated on the fly.
            zs = []
            s = None
            s2 = None
            for b in range(n):
                base = b * lin
                z = jnp.dot(src[pl.ds(base, lout, stride=STRIDE), :], w[0],
                            preferred_element_type=jnp.float32)
                for k in range(1, KSIZE):
                    z = z + jnp.dot(src[pl.ds(base + k, lout, stride=STRIDE), :], w[k],
                                    preferred_element_type=jnp.float32)
                z = z + bias
                z = jnp.where(z >= 0, z, NEG_SLOPE * z)
                zs.append(z)
                zsum = jnp.sum(z, axis=0, keepdims=True)
                zsq = jnp.sum(z * z, axis=0, keepdims=True)
                s = zsum if s is None else s + zsum
                s2 = zsq if s2 is None else s2 + zsq

            # BatchNorm1d (training-mode statistics over batch * positions), fused
            # scale/shift; variance clamped at 0 against cancellation.
            cnt = float(n * lout)
            mean = s / cnt
            var = jnp.maximum(s2 / cnt - mean * mean, 0.0)
            scale = gamma * lax.rsqrt(var + BN_EPS)
            shift = beta - mean * scale
            for b in range(n):
                dst[pl.ds(b * lout, lout), :] = zs[b] * scale + shift

        # Head: flatten (torch channel-major .view(N,-1)) + dense1 + LeakyReLU
        #       + dense2 (no bias) + LayerNorm.
        a3_ref = act_refs[-1]
        h = hp_ref[0:1, :hidden]                       # dense1 bias, (1, hidden)
        for l in range(l3):
            # rows b*l3 + l for every batch b, i.e. activation[:, :, l] as (n, c3)
            rows = a3_ref[pl.ds(l, n, stride=l3), :]
            h = h + jnp.dot(rows, wd1_ref[l], preferred_element_type=jnp.float32)
        h = jnp.where(h >= 0, h, NEG_SLOPE * h)
        z = jnp.dot(h, wd2_ref[...], preferred_element_type=jnp.float32)   # (n, latent)
        mean = jnp.mean(z, axis=-1, keepdims=True)
        var = jnp.maximum(jnp.mean(z * z, axis=-1, keepdims=True) - mean * mean, 0.0)
        zn = (z - mean) * lax.rsqrt(var + LN_EPS)
        out_ref[...] = zn * hp_ref[1:2, :latent] + hp_ref[2:3, :latent]

    return kernel


# ------------------------------ JAX-side glue --------------------------------------

def prepare_params(raw):
    """One-time (outside jit) conversion of torch-layout weights into kernel layouts."""
    conv_ws = []
    couts = []
    for (w, b, g, t) in raw["convs"]:
        cout, cin, k = w.shape
        conv_ws.append(jnp.transpose(w, (2, 1, 0)))            # (K, Cin, Cout)
        couts.append(cout)

    # One packed (n_layers, 3, max_cout) slab for bias / gamma / beta (zero padded).
    max_cout = max(couts)
    blocks = []
    for (w, b, g, t) in raw["convs"]:
        cout = w.shape[0]
        blk = jnp.stack([b, g, t], axis=0)                      # (3, cout)
        blocks.append(jnp.pad(blk, ((0, 0), (0, max_cout - cout))))
    conv_params = jnp.stack(blocks, axis=0)                     # (n_layers, 3, max_cout)

    # dense1: torch flatten index is c*l3 + l  ->  wd1[l, c, h] = W1[h, c*l3 + l]
    w1 = raw["w1"]                                              # (hidden, l3 * c_last)
    hidden, feat = w1.shape
    c_last = couts[-1]
    l3 = feat // c_last
    wd1 = jnp.transpose(w1.reshape(hidden, c_last, l3), (2, 1, 0))   # (l3, c_last, hidden)

    wd2 = jnp.transpose(raw["w2"])                              # (hidden, latent)
    latent = wd2.shape[1]

    # One packed head-params slab: rows = dense1 bias / LayerNorm gamma / LayerNorm beta.
    width = max(hidden, latent)
    head_params = jnp.stack([
        jnp.pad(raw["b1"], (0, width - hidden)),
        jnp.pad(raw["ln_g"], (0, width - latent)),
        jnp.pad(raw["ln_b"], (0, width - latent)),
    ], axis=0)                                                  # (3, width)

    return dict(conv_ws=conv_ws, conv_params=conv_params, couts=couts,
                wd1=wd1, wd2=wd2, head_params=head_params,
                l3=l3, c3=c_last, hidden=hidden, latent=latent)


def encoder_forward(x, p):
    """x: (N, Cin, L) in torch NCL layout; p: prepare_params(...) output."""
    n, cin, l0 = x.shape
    lins, louts = [], []
    lin = l0
    for _ in p["conv_ws"]:
        lout = _conv_out_len(lin)
        lins.append(lin)
        louts.append(lout)
        lin = lout
    couts = p["couts"]
    l3, hidden, latent = p["l3"], p["hidden"], p["latent"]
    assert louts[-1] == l3, "input length inconsistent with dense_out1 in_features"

    # One tiny relayout of the raw input into the lane-dense (batch*pos, channel) slab.
    x2d = jnp.transpose(x, (0, 2, 1)).reshape(n * l0, cin)

    kernel = _make_encoder_kernel(n, tuple(lins), tuple(louts), tuple(couts),
                                  l3, hidden, latent)

    flat_args = [x2d, *p["conv_ws"], p["conv_params"], p["wd1"], p["wd2"],
                 p["head_params"]]                               # 8 inputs total

    return pl.pallas_call(
        kernel,
        out_shape=jax.ShapeDtypeStruct((n, latent), jnp.float32),
        in_specs=[_VMEM_SPEC] * len(flat_args),
        out_specs=_VMEM_SPEC,
        scratch_shapes=[
            pltpu.VMEM((n * louts[i], couts[i]), jnp.float32)    # per-layer activations
            for i in range(len(louts))
        ],
    )(*flat_args)


# ---------------------------- pure-JAX reference ------------------------------------

def reference_forward(x, params):
    for (w, b, g, bta) in params["convs"]:
        y = lax.conv_general_dilated(x, w, window_strides=(STRIDE,), padding="VALID",
                                     dimension_numbers=("NCH", "OIH", "NCH"))
        y = y + b[None, :, None]
        y = jnp.where(y >= 0, y, NEG_SLOPE * y)
        mean = jnp.mean(y, axis=(0, 2), keepdims=True)
        var = jnp.mean((y - mean) ** 2, axis=(0, 2), keepdims=True)
        y = (y - mean) / jnp.sqrt(var + BN_EPS)
        x = y * g[None, :, None] + bta[None, :, None]
    xf = x.reshape(x.shape[0], -1)
    h = xf @ params["w1"].T + params["b1"]
    h = jnp.where(h >= 0, h, NEG_SLOPE * h)
    z = h @ params["w2"].T
    mean = jnp.mean(z, axis=-1, keepdims=True)
    var = jnp.mean((z - mean) ** 2, axis=-1, keepdims=True)
    return (z - mean) / jnp.sqrt(var + LN_EPS) * params["ln_g"] + params["ln_b"]


# ------------------------------------ main ------------------------------------------

if __name__ == "__main__":
    key = jax.random.PRNGKey(0)
    keys = jax.random.split(key, 24)

    latent_dim = 32
    hidden_channels = [64, 32, 16]
    conv_channels = [2] + hidden_channels

    # Input length 60 -> 27 -> 11 -> 3 so the flatten matches dense_out1's 3*16 inputs.
    N, CIN, L = 2, 2, 60

    ki = 0
    convs = []
    for i in range(len(conv_channels) - 1):
        cin, cout = conv_channels[i], conv_channels[i + 1]
        w = 0.1 * jax.random.normal(keys[ki], (cout, cin, KSIZE), jnp.float32); ki += 1
        b = 0.1 * jax.random.normal(keys[ki], (cout,), jnp.float32); ki += 1
        g = 1.0 + 0.1 * jax.random.normal(keys[ki], (cout,), jnp.float32); ki += 1
        bt = 0.1 * jax.random.normal(keys[ki], (cout,), jnp.float32); ki += 1
        convs.append((w, b, g, bt))

    feat = 3 * conv_channels[-1]   # 48
    w1 = 0.1 * jax.random.normal(keys[ki], (conv_channels[-1], feat), jnp.float32); ki += 1
    b1 = 0.1 * jax.random.normal(keys[ki], (conv_channels[-1],), jnp.float32); ki += 1
    w2 = 0.1 * jax.random.normal(keys[ki], (latent_dim, conv_channels[-1]), jnp.float32); ki += 1
    ln_g = 1.0 + 0.1 * jax.random.normal(keys[ki], (latent_dim,), jnp.float32); ki += 1
    ln_b = 0.1 * jax.random.normal(keys[ki], (latent_dim,), jnp.float32); ki += 1

    raw = dict(convs=convs, w1=w1, b1=b1, w2=w2, ln_g=ln_g, ln_b=ln_b)
    prepped = prepare_params(raw)   # weight relayouts done ONCE, outside jit

    x = jax.random.normal(keys[ki], (N, CIN, L), jnp.float32)

    fwd = jax.jit(lambda xx: encoder_forward(xx, prepped))
    out = jax.block_until_ready(fwd(x))

    ref = reference_forward(x, raw)
    assert out.shape == (N, latent_dim)
    np.testing.assert_allclose(np.asarray(out), np.asarray(ref), atol=1e-2, rtol=1e-2)
    print("KERNEL_OK")
</pallas_src>

<mosaic_0001>
module attributes {stable_mosaic.version = 11 : i64} {
  func.func @kernel(%arg0: memref<120x2xf32, #tpu.memory_space<vmem>>, %arg1: memref<7x2x64xf32, #tpu.memory_space<vmem>>, %arg2: memref<7x64x32xf32, #tpu.memory_space<vmem>>, %arg3: memref<7x32x16xf32, #tpu.memory_space<vmem>>, %arg4: memref<3x3x64xf32, #tpu.memory_space<vmem>>, %arg5: memref<3x16x16xf32, #tpu.memory_space<vmem>>, %arg6: memref<16x32xf32, #tpu.memory_space<vmem>>, %arg7: memref<3x32xf32, #tpu.memory_space<vmem>>, %arg8: memref<2x32xf32, #tpu.memory_space<vmem>>, %arg9: memref<54x64xf32, #tpu.memory_space<vmem>>, %arg10: memref<22x32xf32, #tpu.memory_space<vmem>>, %arg11: memref<6x16xf32, #tpu.memory_space<vmem>>) attributes {dimension_semantics = [], scalar_prefetch = 0 : i64, scratch_operands = 3 : i64, tpu.core_type = #tpu.core_type<tc>} {
    %c0 = arith.constant 0 : index
    %c0_0 = arith.constant 0 : index
    %c0_1 = arith.constant 0 : index
    %0 = vector.load %arg4[%c0, %c0_0, %c0_1] : memref<3x3x64xf32, #tpu.memory_space<vmem>>, vector<1x1x64xf32>
    %1 = vector.shape_cast %0 : vector<1x1x64xf32> to vector<1x64xf32>
    %c0_2 = arith.constant 0 : index
    %c1 = arith.constant 1 : index
    %c0_3 = arith.constant 0 : index
    %2 = vector.load %arg4[%c0_2, %c1, %c0_3] : memref<3x3x64xf32, #tpu.memory_space<vmem>>, vector<1x1x64xf32>
    %3 = vector.shape_cast %2 : vector<1x1x64xf32> to vector<1x64xf32>
    %c0_4 = arith.constant 0 : index
    %c2 = arith.constant 2 : index
    %c0_5 = arith.constant 0 : index
    %4 = vector.load %arg4[%c0_4, %c2, %c0_5] : memref<3x3x64xf32, #tpu.memory_space<vmem>>, vector<1x1x64xf32>
    %5 = vector.shape_cast %4 : vector<1x1x64xf32> to vector<1x64xf32>
    %c0_6 = arith.constant 0 : index
    %c0_7 = arith.constant 0 : index
    %6 = tpu.strided_load %arg0[%c0_6, %c0_7] {strides = array<i32: 2, 1>} : memref<120x2xf32, #tpu.memory_space<vmem>>, vector<27x2xf32>
    %c0_8 = arith.constant 0 : index
    %c0_9 = arith.constant 0 : index
    %c0_10 = arith.constant 0 : index
    %7 = vector.load %arg1[%c0_8, %c0_9, %c0_10] : memref<7x2x64xf32, #tpu.memory_space<vmem>>, vector<1x2x64xf32>
    %8 = vector.shape_cast %7 : vector<1x2x64xf32> to vector<2x64xf32>
    %cst = arith.constant dense<0.000000e+00> : vector<27x64xf32>
    %9 = tpu.matmul %6, %8, %cst {dimension_numbers = #tpu.dot_dimension_numbers<[1], [0], [0], [1], [0, 0, 1, 1], [], []>} : vector<27x2xf32>, vector<2x64xf32>, vector<27x64xf32> -> vector<27x64xf32>
    %c1_11 = arith.constant 1 : index
    %c0_12 = arith.constant 0 : index
    %10 = tpu.strided_load %arg0[%c1_11, %c0_12] {strides = array<i32: 2, 1>} : memref<120x2xf32, #tpu.memory_space<vmem>>, vector<27x2xf32>
    %c1_13 = arith.constant 1 : index
    %c0_14 = arith.constant 0 : index
    %c0_15 = arith.constant 0 : index
    %11 = vector.load %arg1[%c1_13, %c0_14, %c0_15] : memref<7x2x64xf32, #tpu.memory_space<vmem>>, vector<1x2x64xf32>
    %12 = vector.shape_cast %11 : vector<1x2x64xf32> to vector<2x64xf32>
    %cst_16 = arith.constant dense<0.000000e+00> : vector<27x64xf32>
    %13 = tpu.matmul %10, %12, %cst_16 {dimension_numbers = #tpu.dot_dimension_numbers<[1], [0], [0], [1], [0, 0, 1, 1], [], []>} : vector<27x2xf32>, vector<2x64xf32>, vector<27x64xf32> -> vector<27x64xf32>
    %14 = arith.addf %9, %13 : vector<27x64xf32>
    %c2_17 = arith.constant 2 : index
    %c0_18 = arith.constant 0 : index
    %15 = tpu.strided_load %arg0[%c2_17, %c0_18] {strides = array<i32: 2, 1>} : memref<120x2xf32, #tpu.memory_space<vmem>>, vector<27x2xf32>
    %c2_19 = arith.constant 2 : index
    %c0_20 = arith.constant 0 : index
    %c0_21 = arith.constant 0 : index
    %16 = vector.load %arg1[%c2_19, %c0_20, %c0_21] : memref<7x2x64xf32, #tpu.memory_space<vmem>>, vector<1x2x64xf32>
    %17 = vector.shape_cast %16 : vector<1x2x64xf32> to vector<2x64xf32>
    %cst_22 = arith.constant dense<0.000000e+00> : vector<27x64xf32>
    %18 = tpu.matmul %15, %17, %cst_22 {dimension_numbers = #tpu.dot_dimension_numbers<[1], [0], [0], [1], [0, 0, 1, 1], [], []>} : vector<27x2xf32>, vector<2x64xf32>, vector<27x64xf32> -> vector<27x64xf32>
    %19 = arith.addf %14, %18 : vector<27x64xf32>
    %c3 = arith.constant 3 : index
    %c0_23 = arith.constant 0 : index
    %20 = tpu.strided_load %arg0[%c3, %c0_23] {strides = array<i32: 2, 1>} : memref<120x2xf32, #tpu.memory_space<vmem>>, vector<27x2xf32>
    %c3_24 = arith.constant 3 : index
    %c0_25 = arith.constant 0 : index
    %c0_26 = arith.constant 0 : index
    %21 = vector.load %arg1[%c3_24, %c0_25, %c0_26] : memref<7x2x64xf32, #tpu.memory_space<vmem>>, vector<1x2x64xf32>
    %22 = vector.shape_cast %21 : vector<1x2x64xf32> to vector<2x64xf32>
    %cst_27 = arith.constant dense<0.000000e+00> : vector<27x64xf32>
    %23 = tpu.matmul %20, %22, %cst_27 {dimension_numbers = #tpu.dot_dimension_numbers<[1], [0], [0], [1], [0, 0, 1, 1], [], []>} : vector<27x2xf32>, vector<2x64xf32>, vector<27x64xf32> -> vector<27x64xf32>
    %24 = arith.addf %19, %23 : vector<27x64xf32>
    %c4 = arith.constant 4 : index
    %c0_28 = arith.constant 0 : index
    %25 = tpu.strided_load %arg0[%c4, %c0_28] {strides = array<i32: 2, 1>} : memref<120x2xf32, #tpu.memory_space<vmem>>, vector<27x2xf32>
    %c4_29 = arith.constant 4 : index
    %c0_30 = arith.constant 0 : index
    %c0_31 = arith.constant 0 : index
    %26 = vector.load %arg1[%c4_29, %c0_30, %c0_31] : memref<7x2x64xf32, #tpu.memory_space<vmem>>, vector<1x2x64xf32>
    %27 = vector.shape_cast %26 : vector<1x2x64xf32> to vector<2x64xf32>
    %cst_32 = arith.constant dense<0.000000e+00> : vector<27x64xf32>
    %28 = tpu.matmul %25, %27, %cst_32 {dimension_numbers = #tpu.dot_dimension_numbers<[1], [0], [0], [1], [0, 0, 1, 1], [], []>} : vector<27x2xf32>, vector<2x64xf32>, vector<27x64xf32> -> vector<27x64xf32>
    %29 = arith.addf %24, %28 : vector<27x64xf32>
    %c5 = arith.constant 5 : index
    %c0_33 = arith.constant 0 : index
    %30 = tpu.strided_load %arg0[%c5, %c0_33] {strides = array<i32: 2, 1>} : memref<120x2xf32, #tpu.memory_space<vmem>>, vector<27x2xf32>
    %c5_34 = arith.constant 5 : index
    %c0_35 = arith.constant 0 : index
    %c0_36 = arith.constant 0 : index
    %31 = vector.load %arg1[%c5_34, %c0_35, %c0_36] : memref<7x2x64xf32, #tpu.memory_space<vmem>>, vector<1x2x64xf32>
    %32 = vector.shape_cast %31 : vector<1x2x64xf32> to vector<2x64xf32>
    %cst_37 = arith.constant dense<0.000000e+00> : vector<27x64xf32>
    %33 = tpu.matmul %30, %32, %cst_37 {dimension_numbers = #tpu.dot_dimension_numbers<[1], [0], [0], [1], [0, 0, 1, 1], [], []>} : vector<27x2xf32>, vector<2x64xf32>, vector<27x64xf32> -> vector<27x64xf32>
    %34 = arith.addf %29, %33 : vector<27x64xf32>
    %c6 = arith.constant 6 : index
    %c0_38 = arith.constant 0 : index
    %35 = tpu.strided_load %arg0[%c6, %c0_38] {strides = array<i32: 2, 1>} : memref<120x2xf32, #tpu.memory_space<vmem>>, vector<27x2xf32>
    %c6_39 = arith.constant 6 : index
    %c0_40 = arith.constant 0 : index
    %c0_41 = arith.constant 0 : index
    %36 = vector.load %arg1[%c6_39, %c0_40, %c0_41] : memref<7x2x64xf32, #tpu.memory_space<vmem>>, vector<1x2x64xf32>
    %37 = vector.shape_cast %36 : vector<1x2x64xf32> to vector<2x64xf32>
    %cst_42 = arith.constant dense<0.000000e+00> : vector<27x64xf32>
    %38 = tpu.matmul %35, %37, %cst_42 {dimension_numbers = #tpu.dot_dimension_numbers<[1], [0], [0], [1], [0, 0, 1, 1], [], []>} : vector<27x2xf32>, vector<2x64xf32>, vector<27x64xf32> -> vector<27x64xf32>
    %39 = arith.addf %34, %38 : vector<27x64xf32>
    %40 = vector.broadcast %1 : vector<1x64xf32> to vector<27x64xf32>
    %41 = arith.addf %39, %40 : vector<27x64xf32>
    %cst_43 = arith.constant 0.000000e+00 : f32
    %42 = vector.broadcast %cst_43 : f32 to vector<27x64xf32>
    %43 = arith.cmpf oge, %41, %42 : vector<27x64xf32>
    %cst_44 = arith.constant 0.00999999977 : f32
    %44 = vector.broadcast %cst_44 : f32 to vector<27x64xf32>
    %45 = arith.mulf %44, %41 : vector<27x64xf32>
    %46 = arith.select %43, %41, %45 : vector<27x64xi1>, vector<27x64xf32>
    %cst_45 = arith.constant dense<0.000000e+00> : vector<64xf32>
    %47 = vector.multi_reduction <add>, %46, %cst_45 [0] : vector<27x64xf32> to vector<64xf32>
    %48 = vector.shape_cast %47 : vector<64xf32> to vector<1x64xf32>
    %49 = arith.mulf %46, %46 : vector<27x64xf32>
    %cst_46 = arith.constant dense<0.000000e+00> : vector<64xf32>
    %50 = vector.multi_reduction <add>, %49, %cst_46 [0] : vector<27x64xf32> to vector<64xf32>
    %51 = vector.shape_cast %50 : vector<64xf32> to vector<1x64xf32>
    %c60 = arith.constant 60 : index
    %c0_47 = arith.constant 0 : index
    %52 = tpu.strided_load %arg0[%c60, %c0_47] {strides = array<i32: 2, 1>} : memref<120x2xf32, #tpu.memory_space<vmem>>, vector<27x2xf32>
    %c0_48 = arith.constant 0 : index
    %c0_49 = arith.constant 0 : index
    %c0_50 = arith.constant 0 : index
    %53 = vector.load %arg1[%c0_48, %c0_49, %c0_50] : memref<7x2x64xf32, #tpu.memory_space<vmem>>, vector<1x2x64xf32>
    %54 = vector.shape_cast %53 : vector<1x2x64xf32> to vector<2x64xf32>
    %cst_51 = arith.constant dense<0.000000e+00> : vector<27x64xf32>
    %55 = tpu.matmul %52, %54, %cst_51 {dimension_numbers = #tpu.dot_dimension_numbers<[1], [0], [0], [1], [0, 0, 1, 1], [], []>} : vector<27x2xf32>, vector<2x64xf32>, vector<27x64xf32> -> vector<27x64xf32>
    %c61 = arith.constant 61 : index
    %c0_52 = arith.constant 0 : index
    %56 = tpu.strided_load %arg0[%c61, %c0_52] {strides = array<i32: 2, 1>} : memref<120x2xf32, #tpu.memory_space<vmem>>, vector<27x2xf32>
    %c1_53 = arith.constant 1 : index
    %c0_54 = arith.constant 0 : index
    %c0_55 = arith.constant 0 : index
    %57 = vector.load %arg1[%c1_53, %c0_54, %c0_55] : memref<7x2x64xf32, #tpu.memory_space<vmem>>, vector<1x2x64xf32>
    %58 = vector.shape_cast %57 : vector<1x2x64xf32> to vector<2x64xf32>
    %cst_56 = arith.constant dense<0.000000e+00> : vector<27x64xf32>
    %59 = tpu.matmul %56, %58, %cst_56 {dimension_numbers = #tpu.dot_dimension_numbers<[1], [0], [0], [1], [0, 0, 1, 1], [], []>} : vector<27x2xf32>, vector<2x64xf32>, vector<27x64xf32> -> vector<27x64xf32>
    %60 = arith.addf %55, %59 : vector<27x64xf32>
    %c62 = arith.constant 62 : index
    %c0_57 = arith.constant 0 : index
    %61 = tpu.strided_load %arg0[%c62, %c0_57] {strides = array<i32: 2, 1>} : memref<120x2xf32, #tpu.memory_space<vmem>>, vector<27x2xf32>
    %c2_58 = arith.constant 2 : index
    %c0_59 = arith.constant 0 : index
    %c0_60 = arith.constant 0 : index
    %62 = vector.load %arg1[%c2_58, %c0_59, %c0_60] : memref<7x2x64xf32, #tpu.memory_space<vmem>>, vector<1x2x64xf32>
    %63 = vector.shape_cast %62 : vector<1x2x64xf32> to vector<2x64xf32>
    %cst_61 = arith.constant dense<0.000000e+00> : vector<27x64xf32>
    %64 = tpu.matmul %61, %63, %cst_61 {dimension_numbers = #tpu.dot_dimension_numbers<[1], [0], [0], [1], [0, 0, 1, 1], [], []>} : vector<27x2xf32>, vector<2x64xf32>, vector<27x64xf32> -> vector<27x64xf32>
    %65 = arith.addf %60, %64 : vector<27x64xf32>
    %c63 = arith.constant 63 : index
    %c0_62 = arith.constant 0 : index
    %66 = tpu.strided_load %arg0[%c63, %c0_62] {strides = array<i32: 2, 1>} : memref<120x2xf32, #tpu.memory_space<vmem>>, vector<27x2xf32>
    %c3_63 = arith.constant 3 : index
    %c0_64 = arith.constant 0 : index
    %c0_65 = arith.constant 0 : index
    %67 = vector.load %arg1[%c3_63, %c0_64, %c0_65] : memref<7x2x64xf32, #tpu.memory_space<vmem>>, vector<1x2x64xf32>
    %68 = vector.shape_cast %67 : vector<1x2x64xf32> to vector<2x64xf32>
    %cst_66 = arith.constant dense<0.000000e+00> : vector<27x64xf32>
    %69 = tpu.matmul %66, %68, %cst_66 {dimension_numbers = #tpu.dot_dimension_numbers<[1], [0], [0], [1], [0, 0, 1, 1], [], []>} : vector<27x2xf32>, vector<2x64xf32>, vector<27x64xf32> -> vector<27x64xf32>
    %70 = arith.addf %65, %69 : vector<27x64xf32>
    %c64 = arith.constant 64 : index
    %c0_67 = arith.constant 0 : index
    %71 = tpu.strided_load %arg0[%c64, %c0_67] {strides = array<i32: 2, 1>} : memref<120x2xf32, #tpu.memory_space<vmem>>, vector<27x2xf32>
    %c4_68 = arith.constant 4 : index
    %c0_69 = arith.constant 0 : index
    %c0_70 = arith.constant 0 : index
    %72 = vector.load %arg1[%c4_68, %c0_69, %c0_70] : memref<7x2x64xf32, #tpu.memory_space<vmem>>, vector<1x2x64xf32>
    %73 = vector.shape_cast %72 : vector<1x2x64xf32> to vector<2x64xf32>
    %cst_71 = arith.constant dense<0.000000e+00> : vector<27x64xf32>
    %74 = tpu.matmul %71, %73, %cst_71 {dimension_numbers = #tpu.dot_dimension_numbers<[1], [0], [0], [1], [0, 0, 1, 1], [], []>} : vector<27x2xf32>, vector<2x64xf32>, vector<27x64xf32> -> vector<27x64xf32>
    %75 = arith.addf %70, %74 : vector<27x64xf32>
    %c65 = arith.constant 65 : index
    %c0_72 = arith.constant 0 : index
    %76 = tpu.strided_load %arg0[%c65, %c0_72] {strides = array<i32: 2, 1>} : memref<120x2xf32, #tpu.memory_space<vmem>>, vector<27x2xf32>
    %c5_73 = arith.constant 5 : index
    %c0_74 = arith.constant 0 : index
    %c0_75 = arith.constant 0 : index
    %77 = vector.load %arg1[%c5_73, %c0_74, %c0_75] : memref<7x2x64xf32, #tpu.memory_space<vmem>>, vector<1x2x64xf32>
    %78 = vector.shape_cast %77 : vector<1x2x64xf32> to vector<2x64xf32>
    %cst_76 = arith.constant dense<0.000000e+00> : vector<27x64xf32>
    %79 = tpu.matmul %76, %78, %cst_76 {dimension_numbers = #tpu.dot_dimension_numbers<[1], [0], [0], [1], [0, 0, 1, 1], [], []>} : vector<27x2xf32>, vector<2x64xf32>, vector<27x64xf32> -> vector<27x64xf32>
    %80 = arith.addf %75, %79 : vector<27x64xf32>
    %c66 = arith.constant 66 : index
    %c0_77 = arith.constant 0 : index
    %81 = tpu.strided_load %arg0[%c66, %c0_77] {strides = array<i32: 2, 1>} : memref<120x2xf32, #tpu.memory_space<vmem>>, vector<27x2xf32>
    %c6_78 = arith.constant 6 : index
    %c0_79 = arith.constant 0 : index
    %c0_80 = arith.constant 0 : index
    %82 = vector.load %arg1[%c6_78, %c0_79, %c0_80] : memref<7x2x64xf32, #tpu.memory_space<vmem>>, vector<1x2x64xf32>
    %83 = vector.shape_cast %82 : vector<1x2x64xf32> to vector<2x64xf32>
    %cst_81 = arith.constant dense<0.000000e+00> : vector<27x64xf32>
    %84 = tpu.matmul %81, %83, %cst_81 {dimension_numbers = #tpu.dot_dimension_numbers<[1], [0], [0], [1], [0, 0, 1, 1], [], []>} : vector<27x2xf32>, vector<2x64xf32>, vector<27x64xf32> -> vector<27x64xf32>
    %85 = arith.addf %80, %84 : vector<27x64xf32>
    %86 = vector.broadcast %1 : vector<1x64xf32> to vector<27x64xf32>
    %87 = arith.addf %85, %86 : vector<27x64xf32>
    %cst_82 = arith.constant 0.000000e+00 : f32
    %88 = vector.broadcast %cst_82 : f32 to vector<27x64xf32>
    %89 = arith.cmpf oge, %87, %88 : vector<27x64xf32>
    %cst_83 = arith.constant 0.00999999977 : f32
    %90 = vector.broadcast %cst_83 : f32 to vector<27x64xf32>
    %91 = arith.mulf %90, %87 : vector<27x64xf32>
    %92 = arith.select %89, %87, %91 : vector<27x64xi1>, vector<27x64xf32>
    %cst_84 = arith.constant dense<0.000000e+00> : vector<64xf32>
    %93 = vector.multi_reduction <add>, %92, %cst_84 [0] : vector<27x64xf32> to vector<64xf32>
    %94 = vector.shape_cast %93 : vector<64xf32> to vector<1x64xf32>
    %95 = arith.mulf %92, %92 : vector<27x64xf32>
    %cst_85 = arith.constant dense<0.000000e+00> : vector<64xf32>
    %96 = vector.multi_reduction <add>, %95, %cst_85 [0] : vector<27x64xf32> to vector<64xf32>
    %97 = vector.shape_cast %96 : vector<64xf32> to vector<1x64xf32>
    %98 = arith.addf %48, %94 : vector<1x64xf32>
    %99 = arith.addf %51, %97 : vector<1x64xf32>
    %cst_86 = arith.constant 5.400000e+01 : f32
    %100 = vector.broadcast %cst_86 : f32 to vector<1x64xf32>
    %101 = arith.divf %98, %100 : vector<1x64xf32>
    %cst_87 = arith.constant 5.400000e+01 : f32
    %102 = vector.broadcast %cst_87 : f32 to vector<1x64xf32>
    %103 = arith.divf %99, %102 : vector<1x64xf32>
    %104 = arith.mulf %101, %101 : vector<1x64xf32>
    %105 = arith.subf %103, %104 : vector<1x64xf32>
    %cst_88 = arith.constant 0.000000e+00 : f32
    %106 = vector.broadcast %cst_88 : f32 to vector<1x64xf32>
    %107 = arith.maximumf %105, %106 : vector<1x64xf32>
    %cst_89 = arith.constant 9.99999974E-6 : f32
    %108 = vector.broadcast %cst_89 : f32 to vector<1x64xf32>
    %109 = arith.addf %107, %108 : vector<1x64xf32>
    %110 = math.rsqrt %109 : vector<1x64xf32>
    %111 = arith.mulf %3, %110 : vector<1x64xf32>
    %112 = arith.mulf %101, %111 : vector<1x64xf32>
    %113 = arith.subf %5, %112 : vector<1x64xf32>
    %114 = vector.broadcast %111 : vector<1x64xf32> to vector<27x64xf32>
    %115 = arith.mulf %46, %114 : vector<27x64xf32>
    %116 = vector.broadcast %113 : vector<1x64xf32> to vector<27x64xf32>
    %117 = arith.addf %115, %116 : vector<27x64xf32>
    %c0_90 = arith.constant 0 : index
    %c0_91 = arith.constant 0 : index
    %118 = vector.load %arg9[%c0_90, %c0_91] : memref<54x64xf32, #tpu.memory_space<vmem>>, vector<27x64xf32>
    tpu.vector_store %arg9[%c0_90, %c0_91], %117 {strides = array<i32>} : memref<54x64xf32, #tpu.memory_space<vmem>>, vector<27x64xf32>,
    %119 = vector.broadcast %111 : vector<1x64xf32> to vector<27x64xf32>
    %120 = arith.mulf %92, %119 : vector<27x64xf32>
    %121 = vector.broadcast %113 : vector<1x64xf32> to vector<27x64xf32>
    %122 = arith.addf %120, %121 : vector<27x64xf32>
    %c27 = arith.constant 27 : index
    %c0_92 = arith.constant 0 : index
    %123 = vector.load %arg9[%c27, %c0_92] : memref<54x64xf32, #tpu.memory_space<vmem>>, vector<27x64xf32>
    tpu.vector_store %arg9[%c27, %c0_92], %122 {strides = array<i32>} : memref<54x64xf32, #tpu.memory_space<vmem>>, vector<27x64xf32>,
    %c1_93 = arith.constant 1 : index
    %c0_94 = arith.constant 0 : index
    %c0_95 = arith.constant 0 : index
    %124 = vector.load %arg4[%c1_93, %c0_94, %c0_95] : memref<3x3x64xf32, #tpu.memory_space<vmem>>, vector<1x1x32xf32>
    %125 = vector.shape_cast %124 : vector<1x1x32xf32> to vector<1x32xf32>
    %c1_96 = arith.constant 1 : index
    %c1_97 = arith.constant 1 : index
    %c0_98 = arith.constant 0 : index
    %126 = vector.load %arg4[%c1_96, %c1_97, %c0_98] : memref<3x3x64xf32, #tpu.memory_space<vmem>>, vector<1x1x32xf32>
    %127 = vector.shape_cast %126 : vector<1x1x32xf32> to vector<1x32xf32>
    %c1_99 = arith.constant 1 : index
    %c2_100 = arith.constant 2 : index
    %c0_101 = arith.constant 0 : index
    %128 = vector.load %arg4[%c1_99, %c2_100, %c0_101] : memref<3x3x64xf32, #tpu.memory_space<vmem>>, vector<1x1x32xf32>
    %129 = vector.shape_cast %128 : vector<1x1x32xf32> to vector<1x32xf32>
    %c0_102 = arith.constant 0 : index
    %c0_103 = arith.constant 0 : index
    %130 = tpu.strided_load %arg9[%c0_102, %c0_103] {strides = array<i32: 2, 1>} : memref<54x64xf32, #tpu.memory_space<vmem>>, vector<11x64xf32>
    %c0_104 = arith.constant 0 : index
    %c0_105 = arith.constant 0 : index
    %c0_106 = arith.constant 0 : index
    %131 = vector.load %arg2[%c0_104, %c0_105, %c0_106] : memref<7x64x32xf32, #tpu.memory_space<vmem>>, vector<1x64x32xf32>
    %132 = vector.shape_cast %131 : vector<1x64x32xf32> to vector<64x32xf32>
    %cst_107 = arith.constant dense<0.000000e+00> : vector<11x32xf32>
    %133 = tpu.matmul %130, %132, %cst_107 {dimension_numbers = #tpu.dot_dimension_numbers<[1], [0], [0], [1], [0, 0, 1, 1], [], []>} : vector<11x64xf32>, vector<64x32xf32>, vector<11x32xf32> -> vector<11x32xf32>
    %c1_108 = arith.constant 1 : index
    %c0_109 = arith.constant 0 : index
    %134 = tpu.strided_load %arg9[%c1_108, %c0_109] {strides = array<i32: 2, 1>} : memref<54x64xf32, #tpu.memory_space<vmem>>, vector<11x64xf32>
    %c1_110 = arith.constant 1 : index
    %c0_111 = arith.constant 0 : index
    %c0_112 = arith.constant 0 : index
    %135 = vector.load %arg2[%c1_110, %c0_111, %c0_112] : memref<7x64x32xf32, #tpu.memory_space<vmem>>, vector<1x64x32xf32>
    %136 = vector.shape_cast %135 : vector<1x64x32xf32> to vector<64x32xf32>
    %cst_113 = arith.constant dense<0.000000e+00> : vector<11x32xf32>
    %137 = tpu.matmul %134, %136, %cst_113 {dimension_numbers = #tpu.dot_dimension_numbers<[1], [0], [0], [1], [0, 0, 1, 1], [], []>} : vector<11x64xf32>, vector<64x32xf32>, vector<11x32xf32> -> vector<11x32xf32>
    %138 = arith.addf %133, %137 : vector<11x32xf32>
    %c2_114 = arith.constant 2 : index
    %c0_115 = arith.constant 0 : index
    %139 = tpu.strided_load %arg9[%c2_114, %c0_115] {strides = array<i32: 2, 1>} : memref<54x64xf32, #tpu.memory_space<vmem>>, vector<11x64xf32>
    %c2_116 = arith.constant 2 : index
    %c0_117 = arith.constant 0 : index
    %c0_118 = arith.constant 0 : index
    %140 = vector.load %arg2[%c2_116, %c0_117, %c0_118] : memref<7x64x32xf32, #tpu.memory_space<vmem>>, vector<1x64x32xf32>
    %141 = vector.shape_cast %140 : vector<1x64x32xf32> to vector<64x32xf32>
    %cst_119 = arith.constant dense<0.000000e+00> : vector<11x32xf32>
    %142 = tpu.matmul %139, %141, %cst_119 {dimension_numbers = #tpu.dot_dimension_numbers<[1], [0], [0], [1], [0, 0, 1, 1], [], []>} : vector<11x64xf32>, vector<64x32xf32>, vector<11x32xf32> -> vector<11x32xf32>
    %143 = arith.addf %138, %142 : vector<11x32xf32>
    %c3_120 = arith.constant 3 : index
    %c0_121 = arith.constant 0 : index
    %144 = tpu.strided_load %arg9[%c3_120, %c0_121] {strides = array<i32: 2, 1>} : memref<54x64xf32, #tpu.memory_space<vmem>>, vector<11x64xf32>
    %c3_122 = arith.constant 3 : index
    %c0_123 = arith.constant 0 : index
    %c0_124 = arith.constant 0 : index
    %145 = vector.load %arg2[%c3_122, %c0_123, %c0_124] : memref<7x64x32xf32, #tpu.memory_space<vmem>>, vector<1x64x32xf32>
    %146 = vector.shape_cast %145 : vector<1x64x32xf32> to vector<64x32xf32>
    %cst_125 = arith.constant dense<0.000000e+00> : vector<11x32xf32>
    %147 = tpu.matmul %144, %146, %cst_125 {dimension_numbers = #tpu.dot_dimension_numbers<[1], [0], [0], [1], [0, 0, 1, 1], [], []>} : vector<11x64xf32>, vector<64x32xf32>, vector<11x32xf32> -> vector<11x32xf32>
    %148 = arith.addf %143, %147 : vector<11x32xf32>
    %c4_126 = arith.constant 4 : index
    %c0_127 = arith.constant 0 : index
    %149 = tpu.strided_load %arg9[%c4_126, %c0_127] {strides = array<i32: 2, 1>} : memref<54x64xf32, #tpu.memory_space<vmem>>, vector<11x64xf32>
    %c4_128 = arith.constant 4 : index
    %c0_129 = arith.constant 0 : index
    %c0_130 = arith.constant 0 : index
    %150 = vector.load %arg2[%c4_128, %c0_129, %c0_130] : memref<7x64x32xf32, #tpu.memory_space<vmem>>, vector<1x64x32xf32>
    %151 = vector.shape_cast %150 : vector<1x64x32xf32> to vector<64x32xf32>
    %cst_131 = arith.constant dense<0.000000e+00> : vector<11x32xf32>
    %152 = tpu.matmul %149, %151, %cst_131 {dimension_numbers = #tpu.dot_dimension_numbers<[1], [0], [0], [1], [0, 0, 1, 1], [], []>} : vector<11x64xf32>, vector<64x32xf32>, vector<11x32xf32> -> vector<11x32xf32>
    %153 = arith.addf %148, %152 : vector<11x32xf32>
    %c5_132 = arith.constant 5 : index
    %c0_133 = arith.constant 0 : index
    %154 = tpu.strided_load %arg9[%c5_132, %c0_133] {strides = array<i32: 2, 1>} : memref<54x64xf32, #tpu.memory_space<vmem>>, vector<11x64xf32>
    %c5_134 = arith.constant 5 : index
    %c0_135 = arith.constant 0 : index
    %c0_136 = arith.constant 0 : index
    %155 = vector.load %arg2[%c5_134, %c0_135, %c0_136] : memref<7x64x32xf32, #tpu.memory_space<vmem>>, vector<1x64x32xf32>
    %156 = vector.shape_cast %155 : vector<1x64x32xf32> to vector<64x32xf32>
    %cst_137 = arith.constant dense<0.000000e+00> : vector<11x32xf32>
    %157 = tpu.matmul %154, %156, %cst_137 {dimension_numbers = #tpu.dot_dimension_numbers<[1], [0], [0], [1], [0, 0, 1, 1], [], []>} : vector<11x64xf32>, vector<64x32xf32>, vector<11x32xf32> -> vector<11x32xf32>
    %158 = arith.addf %153, %157 : vector<11x32xf32>
    %c6_138 = arith.constant 6 : index
    %c0_139 = arith.constant 0 : index
    %159 = tpu.strided_load %arg9[%c6_138, %c0_139] {strides = array<i32: 2, 1>} : memref<54x64xf32, #tpu.memory_space<vmem>>, vector<11x64xf32>
    %c6_140 = arith.constant 6 : index
    %c0_141 = arith.constant 0 : index
    %c0_142 = arith.constant 0 : index
    %160 = vector.load %arg2[%c6_140, %c0_141, %c0_142] : memref<7x64x32xf32, #tpu.memory_space<vmem>>, vector<1x64x32xf32>
    %161 = vector.shape_cast %160 : vector<1x64x32xf32> to vector<64x32xf32>
    %cst_143 = arith.constant dense<0.000000e+00> : vector<11x32xf32>
    %162 = tpu.matmul %159, %161, %cst_143 {dimension_numbers = #tpu.dot_dimension_numbers<[1], [0], [0], [1], [0, 0, 1, 1], [], []>} : vector<11x64xf32>, vector<64x32xf32>, vector<11x32xf32> -> vector<11x32xf32>
    %163 = arith.addf %158, %162 : vector<11x32xf32>
    %164 = vector.broadcast %125 : vector<1x32xf32> to vector<11x32xf32>
    %165 = arith.addf %163, %164 : vector<11x32xf32>
    %cst_144 = arith.constant 0.000000e+00 : f32
    %166 = vector.broadcast %cst_144 : f32 to vector<11x32xf32>
    %167 = arith.cmpf oge, %165, %166 : vector<11x32xf32>
    %cst_145 = arith.constant 0.00999999977 : f32
    %168 = vector.broadcast %cst_145 : f32 to vector<11x32xf32>
    %169 = arith.mulf %168, %165 : vector<11x32xf32>
    %170 = arith.select %167, %165, %169 : vector<11x32xi1>, vector<11x32xf32>
    %cst_146 = arith.constant dense<0.000000e+00> : vector<32xf32>
    %171 = vector.multi_reduction <add>, %170, %cst_146 [0] : vector<11x32xf32> to vector<32xf32>
    %172 = vector.shape_cast %171 : vector<32xf32> to vector<1x32xf32>
    %173 = arith.mulf %170, %170 : vector<11x32xf32>
    %cst_147 = arith.constant dense<0.000000e+00> : vector<32xf32>
    %174 = vector.multi_reduction <add>, %173, %cst_147 [0] : vector<11x32xf32> to vector<32xf32>
    %175 = vector.shape_cast %174 : vector<32xf32> to vector<1x32xf32>
    %c27_148 = arith.constant 27 : index
    %c0_149 = arith.constant 0 : index
    %176 = tpu.strided_load %arg9[%c27_148, %c0_149] {strides = array<i32: 2, 1>} : memref<54x64xf32, #tpu.memory_space<vmem>>, vector<11x64xf32>
    %c0_150 = arith.constant 0 : index
    %c0_151 = arith.constant 0 : index
    %c0_152 = arith.constant 0 : index
    %177 = vector.load %arg2[%c0_150, %c0_151, %c0_152] : memref<7x64x32xf32, #tpu.memory_space<vmem>>, vector<1x64x32xf32>
    %178 = vector.shape_cast %177 : vector<1x64x32xf32> to vector<64x32xf32>
    %cst_153 = arith.constant dense<0.000000e+00> : vector<11x32xf32>
    %179 = tpu.matmul %176, %178, %cst_153 {dimension_numbers = #tpu.dot_dimension_numbers<[1], [0], [0], [1], [0, 0, 1, 1], [], []>} : vector<11x64xf32>, vector<64x32xf32>, vector<11x32xf32> -> vector<11x32xf32>
    %c28 = arith.constant 28 : index
    %c0_154 = arith.constant 0 : index
    %180 = tpu.strided_load %arg9[%c28, %c0_154] {strides = array<i32: 2, 1>} : memref<54x64xf32, #tpu.memory_space<vmem>>, vector<11x64xf32>
    %c1_155 = arith.constant 1 : index
    %c0_156 = arith.constant 0 : index
    %c0_157 = arith.constant 0 : index
    %181 = vector.load %arg2[%c1_155, %c0_156, %c0_157] : memref<7x64x32xf32, #tpu.memory_space<vmem>>, vector<1x64x32xf32>
    %182 = vector.shape_cast %181 : vector<1x64x32xf32> to vector<64x32xf32>
    %cst_158 = arith.constant dense<0.000000e+00> : vector<11x32xf32>
    %183 = tpu.matmul %180, %182, %cst_158 {dimension_numbers = #tpu.dot_dimension_numbers<[1], [0], [0], [1], [0, 0, 1, 1], [], []>} : vector<11x64xf32>, vector<64x32xf32>, vector<11x32xf32> -> vector<11x32xf32>
    %184 = arith.addf %179, %183 : vector<11x32xf32>
    %c29 = arith.constant 29 : index
    %c0_159 = arith.constant 0 : index
    %185 = tpu.strided_load %arg9[%c29, %c0_159] {strides = array<i32: 2, 1>} : memref<54x64xf32, #tpu.memory_space<vmem>>, vector<11x64xf32>
    %c2_160 = arith.constant 2 : index
    %c0_161 = arith.constant 0 : index
    %c0_162 = arith.constant 0 : index
    %186 = vector.load %arg2[%c2_160, %c0_161, %c0_162] : memref<7x64x32xf32, #tpu.memory_space<vmem>>, vector<1x64x32xf32>
    %187 = vector.shape_cast %186 : vector<1x64x32xf32> to vector<64x32xf32>
    %cst_163 = arith.constant dense<0.000000e+00> : vector<11x32xf32>
    %188 = tpu.matmul %185, %187, %cst_163 {dimension_numbers = #tpu.dot_dimension_numbers<[1], [0], [0], [1], [0, 0, 1, 1], [], []>} : vector<11x64xf32>, vector<64x32xf32>, vector<11x32xf32> -> vector<11x32xf32>
    %189 = arith.addf %184, %188 : vector<11x32xf32>
    %c30 = arith.constant 30 : index
    %c0_164 = arith.constant 0 : index
    %190 = tpu.strided_load %arg9[%c30, %c0_164] {strides = array<i32: 2, 1>} : memref<54x64xf32, #tpu.memory_space<vmem>>, vector<11x64xf32>
    %c3_165 = arith.constant 3 : index
    %c0_166 = arith.constant 0 : index
    %c0_167 = arith.constant 0 : index
    %191 = vector.load %arg2[%c3_165, %c0_166, %c0_167] : memref<7x64x32xf32, #tpu.memory_space<vmem>>, vector<1x64x32xf32>
    %192 = vector.shape_cast %191 : vector<1x64x32xf32> to vector<64x32xf32>
    %cst_168 = arith.constant dense<0.000000e+00> : vector<11x32xf32>
    %193 = tpu.matmul %190, %192, %cst_168 {dimension_numbers = #tpu.dot_dimension_numbers<[1], [0], [0], [1], [0, 0, 1, 1], [], []>} : vector<11x64xf32>, vector<64x32xf32>, vector<11x32xf32> -> vector<11x32xf32>
    %194 = arith.addf %189, %193 : vector<11x32xf32>
    %c31 = arith.constant 31 : index
    %c0_169 = arith.constant 0 : index
    %195 = tpu.strided_load %arg9[%c31, %c0_169] {strides = array<i32: 2, 1>} : memref<54x64xf32, #tpu.memory_space<vmem>>, vector<11x64xf32>
    %c4_170 = arith.constant 4 : index
    %c0_171 = arith.constant 0 : index
    %c0_172 = arith.constant 0 : index
    %196 = vector.load %arg2[%c4_170, %c0_171, %c0_172] : memref<7x64x32xf32, #tpu.memory_space<vmem>>, vector<1x64x32xf32>
    %197 = vector.shape_cast %196 : vector<1x64x32xf32> to vector<64x32xf32>
    %cst_173 = arith.constant dense<0.000000e+00> : vector<11x32xf32>
    %198 = tpu.matmul %195, %197, %cst_173 {dimension_numbers = #tpu.dot_dimension_numbers<[1], [0], [0], [1], [0, 0, 1, 1], [], []>} : vector<11x64xf32>, vector<64x32xf32>, vector<11x32xf32> -> vector<11x32xf32>
    %199 = arith.addf %194, %198 : vector<11x32xf32>
    %c32 = arith.constant 32 : index
    %c0_174 = arith.constant 0 : index
    %200 = tpu.strided_load %arg9[%c32, %c0_174] {strides = array<i32: 2, 1>} : memref<54x64xf32, #tpu.memory_space<vmem>>, vector<11x64xf32>
    %c5_175 = arith.constant 5 : index
    %c0_176 = arith.constant 0 : index
    %c0_177 = arith.constant 0 : index
    %201 = vector.load %arg2[%c5_175, %c0_176, %c0_177] : memref<7x64x32xf32, #tpu.memory_space<vmem>>, vector<1x64x32xf32>
    %202 = vector.shape_cast %201 : vector<1x64x32xf32> to vector<64x32xf32>
    %cst_178 = arith.constant dense<0.000000e+00> : vector<11x32xf32>
    %203 = tpu.matmul %200, %202, %cst_178 {dimension_numbers = #tpu.dot_dimension_numbers<[1], [0], [0], [1], [0, 0, 1, 1], [], []>} : vector<11x64xf32>, vector<64x32xf32>, vector<11x32xf32> -> vector<11x32xf32>
    %204 = arith.addf %199, %203 : vector<11x32xf32>
    %c33 = arith.constant 33 : index
    %c0_179 = arith.constant 0 : index
    %205 = tpu.strided_load %arg9[%c33, %c0_179] {strides = array<i32: 2, 1>} : memref<54x64xf32, #tpu.memory_space<vmem>>, vector<11x64xf32>
    %c6_180 = arith.constant 6 : index
    %c0_181 = arith.constant 0 : index
    %c0_182 = arith.constant 0 : index
    %206 = vector.load %arg2[%c6_180, %c0_181, %c0_182] : memref<7x64x32xf32, #tpu.memory_space<vmem>>, vector<1x64x32xf32>
    %207 = vector.shape_cast %206 : vector<1x64x32xf32> to vector<64x32xf32>
    %cst_183 = arith.constant dense<0.000000e+00> : vector<11x32xf32>
    %208 = tpu.matmul %205, %207, %cst_183 {dimension_numbers = #tpu.dot_dimension_numbers<[1], [0], [0], [1], [0, 0, 1, 1], [], []>} : vector<11x64xf32>, vector<64x32xf32>, vector<11x32xf32> -> vector<11x32xf32>
    %209 = arith.addf %204, %208 : vector<11x32xf32>
    %210 = vector.broadcast %125 : vector<1x32xf32> to vector<11x32xf32>
    %211 = arith.addf %209, %210 : vector<11x32xf32>
    %cst_184 = arith.constant 0.000000e+00 : f32
    %212 = vector.broadcast %cst_184 : f32 to vector<11x32xf32>
    %213 = arith.cmpf oge, %211, %212 : vector<11x32xf32>
    %cst_185 = arith.constant 0.00999999977 : f32
    %214 = vector.broadcast %cst_185 : f32 to vector<11x32xf32>
    %215 = arith.mulf %214, %211 : vector<11x32xf32>
    %216 = arith.select %213, %211, %215 : vector<11x32xi1>, vector<11x32xf32>
    %cst_186 = arith.constant dense<0.000000e+00> : vector<32xf32>
    %217 = vector.multi_reduction <add>, %216, %cst_186 [0] : vector<11x32xf32> to vector<32xf32>
    %218 = vector.shape_cast %217 : vector<32xf32> to vector<1x32xf32>
    %219 = arith.mulf %216, %216 : vector<11x32xf32>
    %cst_187 = arith.constant dense<0.000000e+00> : vector<32xf32>
    %220 = vector.multi_reduction <add>, %219, %cst_187 [0] : vector<11x32xf32> to vector<32xf32>
    %221 = vector.shape_cast %220 : vector<32xf32> to vector<1x32xf32>
    %222 = arith.addf %172, %218 : vector<1x32xf32>
    %223 = arith.addf %175, %221 : vector<1x32xf32>
    %cst_188 = arith.constant 2.200000e+01 : f32
    %224 = vector.broadcast %cst_188 : f32 to vector<1x32xf32>
    %225 = arith.divf %222, %224 : vector<1x32xf32>
    %cst_189 = arith.constant 2.200000e+01 : f32
    %226 = vector.broadcast %cst_189 : f32 to vector<1x32xf32>
    %227 = arith.divf %223, %226 : vector<1x32xf32>
    %228 = arith.mulf %225, %225 : vector<1x32xf32>
    %229 = arith.subf %227, %228 : vector<1x32xf32>
    %cst_190 = arith.constant 0.000000e+00 : f32
    %230 = vector.broadcast %cst_190 : f32 to vector<1x32xf32>
    %231 = arith.maximumf %229, %230 : vector<1x32xf32>
    %cst_191 = arith.constant 9.99999974E-6 : f32
    %232 = vector.broadcast %cst_191 : f32 to vector<1x32xf32>
    %233 = arith.addf %231, %232 : vector<1x32xf32>
    %234 = math.rsqrt %233 : vector<1x32xf32>
    %235 = arith.mulf %127, %234 : vector<1x32xf32>
    %236 = arith.mulf %225, %235 : vector<1x32xf32>
    %237 = arith.subf %129, %236 : vector<1x32xf32>
    %238 = vector.broadcast %235 : vector<1x32xf32> to vector<11x32xf32>
    %239 = arith.mulf %170, %238 : vector<11x32xf32>
    %240 = vector.broadcast %237 : vector<1x32xf32> to vector<11x32xf32>
    %241 = arith.addf %239, %240 : vector<11x32xf32>
    %c0_192 = arith.constant 0 : index
    %c0_193 = arith.constant 0 : index
    %242 = vector.load %arg10[%c0_192, %c0_193] : memref<22x32xf32, #tpu.memory_space<vmem>>, vector<11x32xf32>
    tpu.vector_store %arg10[%c0_192, %c0_193], %241 {strides = array<i32>} : memref<22x32xf32, #tpu.memory_space<vmem>>, vector<11x32xf32>,
    %243 = vector.broadcast %235 : vector<1x32xf32> to vector<11x32xf32>
    %244 = arith.mulf %216, %243 : vector<11x32xf32>
    %245 = vector.broadcast %237 : vector<1x32xf32> to vector<11x32xf32>
    %246 = arith.addf %244, %245 : vector<11x32xf32>
    %c11 = arith.constant 11 : index
    %c0_194 = arith.constant 0 : index
    %247 = vector.load %arg10[%c11, %c0_194] : memref<22x32xf32, #tpu.memory_space<vmem>>, vector<11x32xf32>
    tpu.vector_store %arg10[%c11, %c0_194], %246 {strides = array<i32>} : memref<22x32xf32, #tpu.memory_space<vmem>>, vector<11x32xf32>,
    %c2_195 = arith.constant 2 : index
    %c0_196 = arith.constant 0 : index
    %c0_197 = arith.constant 0 : index
    %248 = vector.load %arg4[%c2_195, %c0_196, %c0_197] : memref<3x3x64xf32, #tpu.memory_space<vmem>>, vector<1x1x16xf32>
    %249 = vector.shape_cast %248 : vector<1x1x16xf32> to vector<1x16xf32>
    %c2_198 = arith.constant 2 : index
    %c1_199 = arith.constant 1 : index
    %c0_200 = arith.constant 0 : index
    %250 = vector.load %arg4[%c2_198, %c1_199, %c0_200] : memref<3x3x64xf32, #tpu.memory_space<vmem>>, vector<1x1x16xf32>
    %251 = vector.shape_cast %250 : vector<1x1x16xf32> to vector<1x16xf32>
    %c2_201 = arith.constant 2 : index
    %c2_202 = arith.constant 2 : index
    %c0_203 = arith.constant 0 : index
    %252 = vector.load %arg4[%c2_201, %c2_202, %c0_203] : memref<3x3x64xf32, #tpu.memory_space<vmem>>, vector<1x1x16xf32>
    %253 = vector.shape_cast %252 : vector<1x1x16xf32> to vector<1x16xf32>
    %c0_204 = arith.constant 0 : index
    %c0_205 = arith.constant 0 : index
    %254 = tpu.strided_load %arg10[%c0_204, %c0_205] {strides = array<i32: 2, 1>} : memref<22x32xf32, #tpu.memory_space<vmem>>, vector<3x32xf32>
    %c0_206 = arith.constant 0 : index
    %c0_207 = arith.constant 0 : index
    %c0_208 = arith.constant 0 : index
    %255 = vector.load %arg3[%c0_206, %c0_207, %c0_208] : memref<7x32x16xf32, #tpu.memory_space<vmem>>, vector<1x32x16xf32>
    %256 = vector.shape_cast %255 : vector<1x32x16xf32> to vector<32x16xf32>
    %cst_209 = arith.constant dense<0.000000e+00> : vector<3x16xf32>
    %257 = tpu.matmul %254, %256, %cst_209 {dimension_numbers = #tpu.dot_dimension_numbers<[1], [0], [0], [1], [0, 0, 1, 1], [], []>} : vector<3x32xf32>, vector<32x16xf32>, vector<3x16xf32> -> vector<3x16xf32>
    %c1_210 = arith.constant 1 : index
    %c0_211 = arith.constant 0 : index
    %258 = tpu.strided_load %arg10[%c1_210, %c0_211] {strides = array<i32: 2, 1>} : memref<22x32xf32, #tpu.memory_space<vmem>>, vector<3x32xf32>
    %c1_212 = arith.constant 1 : index
    %c0_213 = arith.constant 0 : index
    %c0_214 = arith.constant 0 : index
    %259 = vector.load %arg3[%c1_212, %c0_213, %c0_214] : memref<7x32x16xf32, #tpu.memory_space<vmem>>, vector<1x32x16xf32>
    %260 = vector.shape_cast %259 : vector<1x32x16xf32> to vector<32x16xf32>
    %cst_215 = arith.constant dense<0.000000e+00> : vector<3x16xf32>
    %261 = tpu.matmul %258, %260, %cst_215 {dimension_numbers = #tpu.dot_dimension_numbers<[1], [0], [0], [1], [0, 0, 1, 1], [], []>} : vector<3x32xf32>, vector<32x16xf32>, vector<3x16xf32> -> vector<3x16xf32>
    %262 = arith.addf %257, %261 : vector<3x16xf32>
    %c2_216 = arith.constant 2 : index
    %c0_217 = arith.constant 0 : index
    %263 = tpu.strided_load %arg10[%c2_216, %c0_217] {strides = array<i32: 2, 1>} : memref<22x32xf32, #tpu.memory_space<vmem>>, vector<3x32xf32>
    %c2_218 = arith.constant 2 : index
    %c0_219 = arith.constant 0 : index
    %c0_220 = arith.constant 0 : index
    %264 = vector.load %arg3[%c2_218, %c0_219, %c0_220] : memref<7x32x16xf32, #tpu.memory_space<vmem>>, vector<1x32x16xf32>
    %265 = vector.shape_cast %264 : vector<1x32x16xf32> to vector<32x16xf32>
    %cst_221 = arith.constant dense<0.000000e+00> : vector<3x16xf32>
    %266 = tpu.matmul %263, %265, %cst_221 {dimension_numbers = #tpu.dot_dimension_numbers<[1], [0], [0], [1], [0, 0, 1, 1], [], []>} : vector<3x32xf32>, vector<32x16xf32>, vector<3x16xf32> -> vector<3x16xf32>
    %267 = arith.addf %262, %266 : vector<3x16xf32>
    %c3_222 = arith.constant 3 : index
    %c0_223 = arith.constant 0 : index
    %268 = tpu.strided_load %arg10[%c3_222, %c0_223] {strides = array<i32: 2, 1>} : memref<22x32xf32, #tpu.memory_space<vmem>>, vector<3x32xf32>
    %c3_224 = arith.constant 3 : index
    %c0_225 = arith.constant 0 : index
    %c0_226 = arith.constant 0 : index
    %269 = vector.load %arg3[%c3_224, %c0_225, %c0_226] : memref<7x32x16xf32, #tpu.memory_space<vmem>>, vector<1x32x16xf32>
    %270 = vector.shape_cast %269 : vector<1x32x16xf32> to vector<32x16xf32>
    %cst_227 = arith.constant dense<0.000000e+00> : vector<3x16xf32>
    %271 = tpu.matmul %268, %270, %cst_227 {dimension_numbers = #tpu.dot_dimension_numbers<[1], [0], [0], [1], [0, 0, 1, 1], [], []>} : vector<3x32xf32>, vector<32x16xf32>, vector<3x16xf32> -> vector<3x16xf32>
    %272 = arith.addf %267, %271 : vector<3x16xf32>
    %c4_228 = arith.constant 4 : index
    %c0_229 = arith.constant 0 : index
    %273 = tpu.strided_load %arg10[%c4_228, %c0_229] {strides = array<i32: 2, 1>} : memref<22x32xf32, #tpu.memory_space<vmem>>, vector<3x32xf32>
    %c4_230 = arith.constant 4 : index
    %c0_231 = arith.constant 0 : index
    %c0_232 = arith.constant 0 : index
    %274 = vector.load %arg3[%c4_230, %c0_231, %c0_232] : memref<7x32x16xf32, #tpu.memory_space<vmem>>, vector<1x32x16xf32>
    %275 = vector.shape_cast %274 : vector<1x32x16xf32> to vector<32x16xf32>
    %cst_233 = arith.constant dense<0.000000e+00> : vector<3x16xf32>
    %276 = tpu.matmul %273, %275, %cst_233 {dimension_numbers = #tpu.dot_dimension_numbers<[1], [0], [0], [1], [0, 0, 1, 1], [], []>} : vector<3x32xf32>, vector<32x16xf32>, vector<3x16xf32> -> vector<3x16xf32>
    %277 = arith.addf %272, %276 : vector<3x16xf32>
    %c5_234 = arith.constant 5 : index
    %c0_235 = arith.constant 0 : index
    %278 = tpu.strided_load %arg10[%c5_234, %c0_235] {strides = array<i32: 2, 1>} : memref<22x32xf32, #tpu.memory_space<vmem>>, vector<3x32xf32>
    %c5_236 = arith.constant 5 : index
    %c0_237 = arith.constant 0 : index
    %c0_238 = arith.constant 0 : index
    %279 = vector.load %arg3[%c5_236, %c0_237, %c0_238] : memref<7x32x16xf32, #tpu.memory_space<vmem>>, vector<1x32x16xf32>
    %280 = vector.shape_cast %279 : vector<1x32x16xf32> to vector<32x16xf32>
    %cst_239 = arith.constant dense<0.000000e+00> : vector<3x16xf32>
    %281 = tpu.matmul %278, %280, %cst_239 {dimension_numbers = #tpu.dot_dimension_numbers<[1], [0], [0], [1], [0, 0, 1, 1], [], []>} : vector<3x32xf32>, vector<32x16xf32>, vector<3x16xf32> -> vector<3x16xf32>
    %282 = arith.addf %277, %281 : vector<3x16xf32>
    %c6_240 = arith.constant 6 : index
    %c0_241 = arith.constant 0 : index
    %283 = tpu.strided_load %arg10[%c6_240, %c0_241] {strides = array<i32: 2, 1>} : memref<22x32xf32, #tpu.memory_space<vmem>>, vector<3x32xf32>
    %c6_242 = arith.constant 6 : index
    %c0_243 = arith.constant 0 : index
    %c0_244 = arith.constant 0 : index
    %284 = vector.load %arg3[%c6_242, %c0_243, %c0_244] : memref<7x32x16xf32, #tpu.memory_space<vmem>>, vector<1x32x16xf32>
    %285 = vector.shape_cast %284 : vector<1x32x16xf32> to vector<32x16xf32>
    %cst_245 = arith.constant dense<0.000000e+00> : vector<3x16xf32>
    %286 = tpu.matmul %283, %285, %cst_245 {dimension_numbers = #tpu.dot_dimension_numbers<[1], [0], [0], [1], [0, 0, 1, 1], [], []>} : vector<3x32xf32>, vector<32x16xf32>, vector<3x16xf32> -> vector<3x16xf32>
    %287 = arith.addf %282, %286 : vector<3x16xf32>
    %288 = vector.broadcast %249 : vector<1x16xf32> to vector<3x16xf32>
    %289 = arith.addf %287, %288 : vector<3x16xf32>
    %cst_246 = arith.constant 0.000000e+00 : f32
    %290 = vector.broadcast %cst_246 : f32 to vector<3x16xf32>
    %291 = arith.cmpf oge, %289, %290 : vector<3x16xf32>
    %cst_247 = arith.constant 0.00999999977 : f32
    %292 = vector.broadcast %cst_247 : f32 to vector<3x16xf32>
    %293 = arith.mulf %292, %289 : vector<3x16xf32>
    %294 = arith.select %291, %289, %293 : vector<3x16xi1>, vector<3x16xf32>
    %cst_248 = arith.constant dense<0.000000e+00> : vector<16xf32>
    %295 = vector.multi_reduction <add>, %294, %cst_248 [0] : vector<3x16xf32> to vector<16xf32>
    %296 = vector.shape_cast %295 : vector<16xf32> to vector<1x16xf32>
    %297 = arith.mulf %294, %294 : vector<3x16xf32>
    %cst_249 = arith.constant dense<0.000000e+00> : vector<16xf32>
    %298 = vector.multi_reduction <add>, %297, %cst_249 [0] : vector<3x16xf32> to vector<16xf32>
    %299 = vector.shape_cast %298 : vector<16xf32> to vector<1x16xf32>
    %c11_250 = arith.constant 11 : index
    %c0_251 = arith.constant 0 : index
    %300 = tpu.strided_load %arg10[%c11_250, %c0_251] {strides = array<i32: 2, 1>} : memref<22x32xf32, #tpu.memory_space<vmem>>, vector<3x32xf32>
    %c0_252 = arith.constant 0 : index
    %c0_253 = arith.constant 0 : index
    %c0_254 = arith.constant 0 : index
    %301 = vector.load %arg3[%c0_252, %c0_253, %c0_254] : memref<7x32x16xf32, #tpu.memory_space<vmem>>, vector<1x32x16xf32>
    %302 = vector.shape_cast %301 : vector<1x32x16xf32> to vector<32x16xf32>
    %cst_255 = arith.constant dense<0.000000e+00> : vector<3x16xf32>
    %303 = tpu.matmul %300, %302, %cst_255 {dimension_numbers = #tpu.dot_dimension_numbers<[1], [0], [0], [1], [0, 0, 1, 1], [], []>} : vector<3x32xf32>, vector<32x16xf32>, vector<3x16xf32> -> vector<3x16xf32>
    %c12 = arith.constant 12 : index
    %c0_256 = arith.constant 0 : index
    %304 = tpu.strided_load %arg10[%c12, %c0_256] {strides = array<i32: 2, 1>} : memref<22x32xf32, #tpu.memory_space<vmem>>, vector<3x32xf32>
    %c1_257 = arith.constant 1 : index
    %c0_258 = arith.constant 0 : index
    %c0_259 = arith.constant 0 : index
    %305 = vector.load %arg3[%c1_257, %c0_258, %c0_259] : memref<7x32x16xf32, #tpu.memory_space<vmem>>, vector<1x32x16xf32>
    %306 = vector.shape_cast %305 : vector<1x32x16xf32> to vector<32x16xf32>
    %cst_260 = arith.constant dense<0.000000e+00> : vector<3x16xf32>
    %307 = tpu.matmul %304, %306, %cst_260 {dimension_numbers = #tpu.dot_dimension_numbers<[1], [0], [0], [1], [0, 0, 1, 1], [], []>} : vector<3x32xf32>, vector<32x16xf32>, vector<3x16xf32> -> vector<3x16xf32>
    %308 = arith.addf %303, %307 : vector<3x16xf32>
    %c13 = arith.constant 13 : index
    %c0_261 = arith.constant 0 : index
    %309 = tpu.strided_load %arg10[%c13, %c0_261] {strides = array<i32: 2, 1>} : memref<22x32xf32, #tpu.memory_space<vmem>>, vector<3x32xf32>
    %c2_262 = arith.constant 2 : index
    %c0_263 = arith.constant 0 : index
    %c0_264 = arith.constant 0 : index
    %310 = vector.load %arg3[%c2_262, %c0_263, %c0_264] : memref<7x32x16xf32, #tpu.memory_space<vmem>>, vector<1x32x16xf32>
    %311 = vector.shape_cast %310 : vector<1x32x16xf32> to vector<32x16xf32>
    %cst_265 = arith.constant dense<0.000000e+00> : vector<3x16xf32>
    %312 = tpu.matmul %309, %311, %cst_265 {dimension_numbers = #tpu.dot_dimension_numbers<[1], [0], [0], [1], [0, 0, 1, 1], [], []>} : vector<3x32xf32>, vector<32x16xf32>, vector<3x16xf32> -> vector<3x16xf32>
    %313 = arith.addf %308, %312 : vector<3x16xf32>
    %c14 = arith.constant 14 : index
    %c0_266 = arith.constant 0 : index
    %314 = tpu.strided_load %arg10[%c14, %c0_266] {strides = array<i32: 2, 1>} : memref<22x32xf32, #tpu.memory_space<vmem>>, vector<3x32xf32>
    %c3_267 = arith.constant 3 : index
    %c0_268 = arith.constant 0 : index
    %c0_269 = arith.constant 0 : index
    %315 = vector.load %arg3[%c3_267, %c0_268, %c0_269] : memref<7x32x16xf32, #tpu.memory_space<vmem>>, vector<1x32x16xf32>
    %316 = vector.shape_cast %315 : vector<1x32x16xf32> to vector<32x16xf32>
    %cst_270 = arith.constant dense<0.000000e+00> : vector<3x16xf32>
    %317 = tpu.matmul %314, %316, %cst_270 {dimension_numbers = #tpu.dot_dimension_numbers<[1], [0], [0], [1], [0, 0, 1, 1], [], []>} : vector<3x32xf32>, vector<32x16xf32>, vector<3x16xf32> -> vector<3x16xf32>
    %318 = arith.addf %313, %317 : vector<3x16xf32>
    %c15 = arith.constant 15 : index
    %c0_271 = arith.constant 0 : index
    %319 = tpu.strided_load %arg10[%c15, %c0_271] {strides = array<i32: 2, 1>} : memref<22x32xf32, #tpu.memory_space<vmem>>, vector<3x32xf32>
    %c4_272 = arith.constant 4 : index
    %c0_273 = arith.constant 0 : index
    %c0_274 = arith.constant 0 : index
    %320 = vector.load %arg3[%c4_272, %c0_273, %c0_274] : memref<7x32x16xf32, #tpu.memory_space<vmem>>, vector<1x32x16xf32>
    %321 = vector.shape_cast %320 : vector<1x32x16xf32> to vector<32x16xf32>
    %cst_275 = arith.constant dense<0.000000e+00> : vector<3x16xf32>
    %322 = tpu.matmul %319, %321, %cst_275 {dimension_numbers = #tpu.dot_dimension_numbers<[1], [0], [0], [1], [0, 0, 1, 1], [], []>} : vector<3x32xf32>, vector<32x16xf32>, vector<3x16xf32> -> vector<3x16xf32>
    %323 = arith.addf %318, %322 : vector<3x16xf32>
    %c16 = arith.constant 16 : index
    %c0_276 = arith.constant 0 : index
    %324 = tpu.strided_load %arg10[%c16, %c0_276] {strides = array<i32: 2, 1>} : memref<22x32xf32, #tpu.memory_space<vmem>>, vector<3x32xf32>
    %c5_277 = arith.constant 5 : index
    %c0_278 = arith.constant 0 : index
    %c0_279 = arith.constant 0 : index
    %325 = vector.load %arg3[%c5_277, %c0_278, %c0_279] : memref<7x32x16xf32, #tpu.memory_space<vmem>>, vector<1x32x16xf32>
    %326 = vector.shape_cast %325 : vector<1x32x16xf32> to vector<32x16xf32>
    %cst_280 = arith.constant dense<0.000000e+00> : vector<3x16xf32>
    %327 = tpu.matmul %324, %326, %cst_280 {dimension_numbers = #tpu.dot_dimension_numbers<[1], [0], [0], [1], [0, 0, 1, 1], [], []>} : vector<3x32xf32>, vector<32x16xf32>, vector<3x16xf32> -> vector<3x16xf32>
    %328 = arith.addf %323, %327 : vector<3x16xf32>
    %c17 = arith.constant 17 : index
    %c0_281 = arith.constant 0 : index
    %329 = tpu.strided_load %arg10[%c17, %c0_281] {strides = array<i32: 2, 1>} : memref<22x32xf32, #tpu.memory_space<vmem>>, vector<3x32xf32>
    %c6_282 = arith.constant 6 : index
    %c0_283 = arith.constant 0 : index
    %c0_284 = arith.constant 0 : index
    %330 = vector.load %arg3[%c6_282, %c0_283, %c0_284] : memref<7x32x16xf32, #tpu.memory_space<vmem>>, vector<1x32x16xf32>
    %331 = vector.shape_cast %330 : vector<1x32x16xf32> to vector<32x16xf32>
    %cst_285 = arith.constant dense<0.000000e+00> : vector<3x16xf32>
    %332 = tpu.matmul %329, %331, %cst_285 {dimension_numbers = #tpu.dot_dimension_numbers<[1], [0], [0], [1], [0, 0, 1, 1], [], []>} : vector<3x32xf32>, vector<32x16xf32>, vector<3x16xf32> -> vector<3x16xf32>
    %333 = arith.addf %328, %332 : vector<3x16xf32>
    %334 = vector.broadcast %249 : vector<1x16xf32> to vector<3x16xf32>
    %335 = arith.addf %333, %334 : vector<3x16xf32>
    %cst_286 = arith.constant 0.000000e+00 : f32
    %336 = vector.broadcast %cst_286 : f32 to vector<3x16xf32>
    %337 = arith.cmpf oge, %335, %336 : vector<3x16xf32>
    %cst_287 = arith.constant 0.00999999977 : f32
    %338 = vector.broadcast %cst_287 : f32 to vector<3x16xf32>
    %339 = arith.mulf %338, %335 : vector<3x16xf32>
    %340 = arith.select %337, %335, %339 : vector<3x16xi1>, vector<3x16xf32>
    %cst_288 = arith.constant dense<0.000000e+00> : vector<16xf32>
    %341 = vector.multi_reduction <add>, %340, %cst_288 [0] : vector<3x16xf32> to vector<16xf32>
    %342 = vector.shape_cast %341 : vector<16xf32> to vector<1x16xf32>
    %343 = arith.mulf %340, %340 : vector<3x16xf32>
    %cst_289 = arith.constant dense<0.000000e+00> : vector<16xf32>
    %344 = vector.multi_reduction <add>, %343, %cst_289 [0] : vector<3x16xf32> to vector<16xf32>
    %345 = vector.shape_cast %344 : vector<16xf32> to vector<1x16xf32>
    %346 = arith.addf %296, %342 : vector<1x16xf32>
    %347 = arith.addf %299, %345 : vector<1x16xf32>
    %cst_290 = arith.constant 6.000000e+00 : f32
    %348 = vector.broadcast %cst_290 : f32 to vector<1x16xf32>
    %349 = arith.divf %346, %348 : vector<1x16xf32>
    %cst_291 = arith.constant 6.000000e+00 : f32
    %350 = vector.broadcast %cst_291 : f32 to vector<1x16xf32>
    %351 = arith.divf %347, %350 : vector<1x16xf32>
    %352 = arith.mulf %349, %349 : vector<1x16xf32>
    %353 = arith.subf %351, %352 : vector<1x16xf32>
    %cst_292 = arith.constant 0.000000e+00 : f32
    %354 = vector.broadcast %cst_292 : f32 to vector<1x16xf32>
    %355 = arith.maximumf %353, %354 : vector<1x16xf32>
    %cst_293 = arith.constant 9.99999974E-6 : f32
    %356 = vector.broadcast %cst_293 : f32 to vector<1x16xf32>
    %357 = arith.addf %355, %356 : vector<1x16xf32>
    %358 = math.rsqrt %357 : vector<1x16xf32>
    %359 = arith.mulf %251, %358 : vector<1x16xf32>
    %360 = arith.mulf %349, %359 : vector<1x16xf32>
    %361 = arith.subf %253, %360 : vector<1x16xf32>
    %362 = vector.broadcast %359 : vector<1x16xf32> to vector<3x16xf32>
    %363 = arith.mulf %294, %362 : vector<3x16xf32>
    %364 = vector.broadcast %361 : vector<1x16xf32> to vector<3x16xf32>
    %365 = arith.addf %363, %364 : vector<3x16xf32>
    %c0_294 = arith.constant 0 : index
    %c0_295 = arith.constant 0 : index
    %366 = vector.load %arg11[%c0_294, %c0_295] : memref<6x16xf32, #tpu.memory_space<vmem>>, vector<3x16xf32>
    tpu.vector_store %arg11[%c0_294, %c0_295], %365 {strides = array<i32>} : memref<6x16xf32, #tpu.memory_space<vmem>>, vector<3x16xf32>,
    %367 = vector.broadcast %359 : vector<1x16xf32> to vector<3x16xf32>
    %368 = arith.mulf %340, %367 : vector<3x16xf32>
    %369 = vector.broadcast %361 : vector<1x16xf32> to vector<3x16xf32>
    %370 = arith.addf %368, %369 : vector<3x16xf32>
    %c3_296 = arith.constant 3 : index
    %c0_297 = arith.constant 0 : index
    %371 = vector.load %arg11[%c3_296, %c0_297] : memref<6x16xf32, #tpu.memory_space<vmem>>, vector<3x16xf32>
    tpu.vector_store %arg11[%c3_296, %c0_297], %370 {strides = array<i32>} : memref<6x16xf32, #tpu.memory_space<vmem>>, vector<3x16xf32>,
    %c0_298 = arith.constant 0 : index
    %c0_299 = arith.constant 0 : index
    %372 = vector.load %arg7[%c0_298, %c0_299] : memref<3x32xf32, #tpu.memory_space<vmem>>, vector<1x16xf32>
    %c0_300 = arith.constant 0 : index
    %c0_301 = arith.constant 0 : index
    %373 = tpu.strided_load %arg11[%c0_300, %c0_301] {strides = array<i32: 3, 1>} : memref<6x16xf32, #tpu.memory_space<vmem>>, vector<2x16xf32>
    %c0_302 = arith.constant 0 : index
    %c0_303 = arith.constant 0 : index
    %c0_304 = arith.constant 0 : index
    %374 = vector.load %arg5[%c0_302, %c0_303, %c0_304] : memref<3x16x16xf32, #tpu.memory_space<vmem>>, vector<1x16x16xf32>
    %375 = vector.shape_cast %374 : vector<1x16x16xf32> to vector<16x16xf32>
    %cst_305 = arith.constant dense<0.000000e+00> : vector<2x16xf32>
    %376 = tpu.matmul %373, %375, %cst_305 {dimension_numbers = #tpu.dot_dimension_numbers<[1], [0], [0], [1], [0, 0, 1, 1], [], []>} : vector<2x16xf32>, vector<16x16xf32>, vector<2x16xf32> -> vector<2x16xf32>
    %377 = vector.broadcast %372 : vector<1x16xf32> to vector<2x16xf32>
    %378 = arith.addf %377, %376 : vector<2x16xf32>
    %c1_306 = arith.constant 1 : index
    %c0_307 = arith.constant 0 : index
    %379 = tpu.strided_load %arg11[%c1_306, %c0_307] {strides = array<i32: 3, 1>} : memref<6x16xf32, #tpu.memory_space<vmem>>, vector<2x16xf32>
    %c1_308 = arith.constant 1 : index
    %c0_309 = arith.constant 0 : index
    %c0_310 = arith.constant 0 : index
    %380 = vector.load %arg5[%c1_308, %c0_309, %c0_310] : memref<3x16x16xf32, #tpu.memory_space<vmem>>, vector<1x16x16xf32>
    %381 = vector.shape_cast %380 : vector<1x16x16xf32> to vector<16x16xf32>
    %cst_311 = arith.constant dense<0.000000e+00> : vector<2x16xf32>
    %382 = tpu.matmul %379, %381, %cst_311 {dimension_numbers = #tpu.dot_dimension_numbers<[1], [0], [0], [1], [0, 0, 1, 1], [], []>} : vector<2x16xf32>, vector<16x16xf32>, vector<2x16xf32> -> vector<2x16xf32>
    %383 = arith.addf %378, %382 : vector<2x16xf32>
    %c2_312 = arith.constant 2 : index
    %c0_313 = arith.constant 0 : index
    %384 = tpu.strided_load %arg11[%c2_312, %c0_313] {strides = array<i32: 3, 1>} : memref<6x16xf32, #tpu.memory_space<vmem>>, vector<2x16xf32>
    %c2_314 = arith.constant 2 : index
    %c0_315 = arith.constant 0 : index
    %c0_316 = arith.constant 0 : index
    %385 = vector.load %arg5[%c2_314, %c0_315, %c0_316] : memref<3x16x16xf32, #tpu.memory_space<vmem>>, vector<1x16x16xf32>
    %386 = vector.shape_cast %385 : vector<1x16x16xf32> to vector<16x16xf32>
    %cst_317 = arith.constant dense<0.000000e+00> : vector<2x16xf32>
    %387 = tpu.matmul %384, %386, %cst_317 {dimension_numbers = #tpu.dot_dimension_numbers<[1], [0], [0], [1], [0, 0, 1, 1], [], []>} : vector<2x16xf32>, vector<16x16xf32>, vector<2x16xf32> -> vector<2x16xf32>
    %388 = arith.addf %383, %387 : vector<2x16xf32>
    %cst_318 = arith.constant 0.000000e+00 : f32
    %389 = vector.broadcast %cst_318 : f32 to vector<2x16xf32>
    %390 = arith.cmpf oge, %388, %389 : vector<2x16xf32>
    %cst_319 = arith.constant 0.00999999977 : f32
    %391 = vector.broadcast %cst_319 : f32 to vector<2x16xf32>
    %392 = arith.mulf %391, %388 : vector<2x16xf32>
    %393 = arith.select %390, %388, %392 : vector<2x16xi1>, vector<2x16xf32>
    %c0_320 = arith.constant 0 : index
    %c0_321 = arith.constant 0 : index
    %394 = vector.load %arg6[%c0_320, %c0_321] : memref<16x32xf32, #tpu.memory_space<vmem>>, vector<16x32xf32>
    %cst_322 = arith.constant dense<0.000000e+00> : vector<2x32xf32>
    %395 = tpu.matmul %393, %394, %cst_322 {dimension_numbers = #tpu.dot_dimension_numbers<[1], [0], [0], [1], [0, 0, 1, 1], [], []>} : vector<2x16xf32>, vector<16x32xf32>, vector<2x32xf32> -> vector<2x32xf32>
    %cst_323 = arith.constant dense<0.000000e+00> : vector<2xf32>
    %396 = vector.multi_reduction <add>, %395, %cst_323 [1] : vector<2x32xf32> to vector<2xf32>
    %397 = vector.shape_cast %396 : vector<2xf32> to vector<2x1xf32>
    %cst_324 = arith.constant 3.200000e+01 : f32
    %398 = vector.broadcast %cst_324 : f32 to vector<2x1xf32>
    %399 = arith.divf %397, %398 : vector<2x1xf32>
    %400 = arith.mulf %395, %395 : vector<2x32xf32>
    %cst_325 = arith.constant dense<0.000000e+00> : vector<2xf32>
    %401 = vector.multi_reduction <add>, %400, %cst_325 [1] : vector<2x32xf32> to vector<2xf32>
    %402 = vector.shape_cast %401 : vector<2xf32> to vector<2x1xf32>
    %cst_326 = arith.constant 3.200000e+01 : f32
    %403 = vector.broadcast %cst_326 : f32 to vector<2x1xf32>
    %404 = arith.divf %402, %403 : vector<2x1xf32>
    %405 = arith.mulf %399, %399 : vector<2x1xf32>
    %406 = arith.subf %404, %405 : vector<2x1xf32>
    %cst_327 = arith.constant 0.000000e+00 : f32
    %407 = vector.broadcast %cst_327 : f32 to vector<2x1xf32>
    %408 = arith.maximumf %406, %407 : vector<2x1xf32>
    %409 = vector.broadcast %399 : vector<2x1xf32> to vector<2x32xf32>
    %410 = arith.subf %395, %409 : vector<2x32xf32>
    %cst_328 = arith.constant 9.99999974E-6 : f32
    %411 = vector.broadcast %cst_328 : f32 to vector<2x1xf32>
    %412 = arith.addf %408, %411 : vector<2x1xf32>
    %413 = math.rsqrt %412 : vector<2x1xf32>
    %414 = vector.broadcast %413 : vector<2x1xf32> to vector<2x32xf32>
    %415 = arith.mulf %410, %414 : vector<2x32xf32>
    %c1_329 = arith.constant 1 : index
    %c0_330 = arith.constant 0 : index
    %416 = vector.load %arg7[%c1_329, %c0_330] : memref<3x32xf32, #tpu.memory_space<vmem>>, vector<1x32xf32>
    %417 = vector.broadcast %416 : vector<1x32xf32> to vector<2x32xf32>
    %418 = arith.mulf %415, %417 : vector<2x32xf32>
    %c2_331 = arith.constant 2 : index
    %c0_332 = arith.constant 0 : index
    %419 = vector.load %arg7[%c2_331, %c0_332] : memref<3x32xf32, #tpu.memory_space<vmem>>, vector<1x32xf32>
    %420 = vector.broadcast %419 : vector<1x32xf32> to vector<2x32xf32>
    %421 = arith.addf %418, %420 : vector<2x32xf32>
    %c0_333 = arith.constant 0 : index
    %c0_334 = arith.constant 0 : index
    %422 = vector.load %arg8[%c0_333, %c0_334] : memref<2x32xf32, #tpu.memory_space<vmem>>, vector<2x32xf32>
    tpu.vector_store %arg8[%c0_333, %c0_334], %421 {strides = array<i32>} : memref<2x32xf32, #tpu.memory_space<vmem>>, vector<2x32xf32>,
    return
  }
}

</mosaic_0001>

<llo_original>
// kernel: _lambda_.1
$region0: #{_lambda_.1}
  #allocation0 [shape = 'u32[]', space=smem, size = 0x4, offset = 0x4, fixed_abs, tag = 'smem constant byte address 0x4 - core index']
  #allocation1 [shape = 'u32[144,128]{1,0:T(1,128)}', space=vmem, size = 0x12000, scoped, tag = 'internal scratch']
  #allocation2 [shape = 'f32[54,64]{1,0:T(8,128)}', space=vmem, size = 0x7000, scoped, tag = 'scratch operand']
  #allocation3 [shape = 'f32[22,32]{1,0:T(8,128)}', space=vmem, size = 0x3000, scoped, tag = 'scratch operand']
  #allocation4 [shape = 'f32[6,16]{1,0:T(8,128)}', space=vmem, size = 0x1000, scoped, tag = 'scratch operand']
  %s0 = inlined_call_operand.vmem [shape: f32[120,2], index: 0, kind: input, shape index: {}]
  %s1 = inlined_call_operand.vmem [shape: f32[7,2,64], index: 1, kind: input, shape index: {}]
  %s2 = inlined_call_operand.hbm [shape: f32[7,64,32], index: 2, kind: input, shape index: {}]
  %s3 = inlined_call_operand.hbm [shape: f32[7,32,16], index: 3, kind: input, shape index: {}]
  %s4 = inlined_call_operand.vmem [shape: f32[3,3,64], index: 4, kind: input, shape index: {}]
  %s5 = inlined_call_operand.vmem [shape: f32[3,16,16], index: 5, kind: input, shape index: {}]
  %s6 = inlined_call_operand.vmem [shape: f32[16,32], index: 6, kind: input, shape index: {}]
  %s7 = inlined_call_operand.vmem [shape: f32[3,32], index: 7, kind: input, shape index: {}]
  %s8 = inlined_call_operand.hbm [shape: f32[2,32], index: 8, kind: output, shape index: {}]
  %s9 = sld [smem:[#allocation0]]
  $region50: #{_lambda_.1} parent=0
    _
  %s11 = ssub.s32 1, %s9
  %s12 = scalar_select 0, %s11, %s9
  $region1: #{_lambda_.1} parent=0
    #allocation5 [shape = 'u8[229376]{0}', space=vmem, size = 0x38000, scoped, tag = 'input window, operand 2, single buffered']
    #allocation6 [shape = 's32[1]{0}', space=sflag, size = 0x4, scoped, tag = 'scoped memory for _lambda_.1']
    #allocation7 [shape = 's32[1]{0}', space=sflag, size = 0x4, scoped, tag = 'scoped memory for _lambda_.1']
    #allocation8 [shape = 'u8[114688]{0}', space=vmem, size = 0x1c000, scoped, tag = 'input window, operand 3, single buffered']
    #allocation9 [shape = 's32[1]{0}', space=sflag, size = 0x4, scoped, tag = 'scoped memory for _lambda_.1']
    #allocation10 [shape = 'u8[1024]{0}', space=vmem, size = 0x400, scoped, tag = 'output window, operand 0, single buffered']
    %13 = vsyncpa [#allocation6], 0
    %14 = vsyncpa [#allocation9], 0
    %15 = vsyncpa [#allocation7], 0
    // Predicated region
    $region2: #{_lambda_.1} parent=1 // pred_check
      _
    $region3: #{_lambda_.1} parent=1 // pred_check_branch
      %17 = sbr.rel (0) target = $region5
    $region4: #{_lambda_.1} parent=1 // pred_region
      _
    $region5: #{_lambda_.1} parent=1 // pred_fallthru
      _
    // Predicated region
    $region6: #{_lambda_.1} parent=1 // pred_check
      _
    $region7: #{_lambda_.1} parent=1 // pred_check_branch
      %19 = sbr.rel (0) target = $region9
    $region8: #{_lambda_.1} parent=1 // pred_region
      _
    $region9: #{_lambda_.1} parent=1 // pred_fallthru
      _
    // Predicated region
    $region10: #{_lambda_.1} parent=1 // pred_check
      _
    $region11: #{_lambda_.1} parent=1 // pred_check_branch
      %21 = sbr.rel (0) target = $region13
    $region12: #{_lambda_.1} parent=1 // pred_region
      %s23 = ssub.s32 7168, 7168
      %24 = vsyncadd [#allocation6], %s23
      %s25 = sshll.u32 [#allocation5], 4
      %s26 = int_to_ptr.vmem [resolvable:$true] %s25
      %31 = dma.hbm_to_vmem [thread:$0]  %s2, 7168, %s26, [#allocation6], 128, 128, 8
    $region13: #{_lambda_.1} parent=1 // pred_fallthru
      _
    // Predicated region
    $region14: #{_lambda_.1} parent=1 // pred_check
      _
    $region15: #{_lambda_.1} parent=1 // pred_check_branch
      %33 = sbr.rel (0) target = $region17
    $region16: #{_lambda_.1} parent=1 // pred_region
      %s35 = ssub.s32 3584, 3584
      %36 = vsyncadd [#allocation9], %s35
      %s37 = sshll.u32 [#allocation8], 4
      %s38 = int_to_ptr.vmem [resolvable:$true] %s37
      %43 = dma.hbm_to_vmem [thread:$0]  %s3, 3584, %s38, [#allocation9], 128, 128, 8
    $region17: #{_lambda_.1} parent=1 // pred_fallthru
      _
    // Predicated region
    $region18: #{_lambda_.1} parent=1 // pred_check
      _
    $region19: #{_lambda_.1} parent=1 // pred_check_branch
      %45 = sbr.rel (0) target = $region21
    $region20: #{_lambda_.1} parent=1 // pred_region
      _
    $region21: #{_lambda_.1} parent=1 // pred_fallthru
      _
    // Predicated region
    $region22: #{_lambda_.1} parent=1 // pred_check
      _
    $region23: #{_lambda_.1} parent=1 // pred_check_branch
      %47 = sbr.rel (0) target = $region25
    $region24: #{_lambda_.1} parent=1 // pred_region
      _
    $region25: #{_lambda_.1} parent=1 // pred_fallthru
      _
    // Predicated region
    $region26: #{_lambda_.1} parent=1 // pred_check
      _
    $region27: #{_lambda_.1} parent=1 // pred_check_branch
      %49 = sbr.rel (0) target = $region29
    $region28: #{_lambda_.1} parent=1 // pred_region
      _
    $region29: #{_lambda_.1} parent=1 // pred_fallthru
      _
    // Predicated region
    $region30: #{_lambda_.1} parent=1 // pred_check
      _
    $region31: #{_lambda_.1} parent=1 // pred_check_branch
      %51 = sbr.rel (0) target = $region33
    $region32: #{_lambda_.1} parent=1 // pred_region
      _
    $region33: #{_lambda_.1} parent=1 // pred_fallthru
      _
    // Predicated region
    $region34: #{_lambda_.1} parent=1 // pred_check
      _
    $region35: #{_lambda_.1} parent=1 // pred_check_branch
      %53 = sbr.rel (0) target = $region37
    $region36: #{_lambda_.1} parent=1 // pred_region
      %54 = dma.done [#allocation6], 7168
    $region37: #{_lambda_.1} parent=1 // pred_fallthru
      _
    // Predicated region
    $region38: #{_lambda_.1} parent=1 // pred_check
      _
    $region39: #{_lambda_.1} parent=1 // pred_check_branch
      %56 = sbr.rel (0) target = $region41
    $region40: #{_lambda_.1} parent=1 // pred_region
      %57 = dma.done [#allocation9], 3584
    $region41: #{_lambda_.1} parent=1 // pred_fallthru
      _
    %v58 = vld [vmem:[%s4] sm:$0x1]
    %v59 = vld [vmem:[%s4 + $0x1] sm:$0x1]
    %v60 = vld [vmem:[%s4 + $0x2] sm:$0x1]
    %v61 = vld [vmem:[%s0] ss:$2 sm:$0xff]
    %s62 = scalar_lea.vmem %s0, 16
    %v63 = vld [vmem:[%s62] ss:$2 sm:$0xff]
    %s64 = scalar_lea.vmem %s0, 32
    %v65 = vld [vmem:[%s64] ss:$2 sm:$0xff]
    %s66 = scalar_lea.vmem %s0, 48
    %v67 = vld [vmem:[%s66] ss:$2 sm:$0x7]
    %v68 = vld [vmem:[%s1] sm:$0x3]
    %s69 = scalar_lea.vmem %s0, 1
    %v70 = vld [vmem:[%s69] ss:$2 sm:$0xff]
    %s71 = scalar_lea.vmem %s0, 17
    %v72 = vld [vmem:[%s71] ss:$2 sm:$0xff]
    %s73 = scalar_lea.vmem %s0, 33
    %v74 = vld [vmem:[%s73] ss:$2 sm:$0xff]
    %s75 = scalar_lea.vmem %s0, 49
    %v76 = vld [vmem:[%s75] ss:$2 sm:$0x7]
    %s77 = scalar_lea.vmem %s1, 2
    %v78 = vld [vmem:[%s77] sm:$0x3]
    %vm79 = vcmask 15360
    %v81 = vsel %vm79, %v70, 0
    %v84 = vsel %vm79, %v72, 0
    %v87 = vsel %vm79, %v74, 0
    %v90 = vsel %vm79, %v76, 0
    %vm92 = vcmask 1041408
    %v94 = vsel %vm92, %v78, 0
    %96 = vmatprep.subr.mxu0 0.0
    %97 = vmatpush1.msra.mxu0 0.0
    %98 = vmatprep.subr.mxu0 0.0
    %99 = vmatpush1.msra.mxu0 0.0
    %100 = vmatprep.subr.mxu0 0.0
    %101 = vmatpush1.msra.mxu0 0.0
    %102 = vmatprep.subr.mxu0 0.0
    %103 = vmatpush1.msra.mxu0 0.0
    %104 = vmatprep.subr.mxu0 0.0
    %105 = vmatpush1.msra.mxu0 0.0
    %106 = vmatprep.subr.mxu0 0.0
    %107 = vmatpush1.msra.mxu0 0.0
    %108 = vmatprep.subr.mxu0 0.0
    %109 = vmatpush1.msra.mxu0 0.0
    %110 = vmatprep.subr.mxu0 0.0
    %111 = vmatpush1.msra.mxu0 0.0
    %112 = vmatprep.subr.mxu0 0.0
    %113 = vmatpush1.msra.mxu0 0.0
    %114 = vmatprep.subr.mxu0 0.0
    %115 = vmatpush1.msra.mxu0 0.0
    %116 = vmatprep.subr.mxu0 0.0
    %117 = vmatpush1.msra.mxu0 0.0
    %118 = vmatprep.subr.mxu0 0.0
    %119 = vmatpush1.msra.mxu0 0.0
    %120 = vmatprep.subr.mxu0 0.0
    %121 = vmatpush1.msra.mxu0 0.0
    %122 = vmatprep.subr.mxu0 0.0
    %123 = vmatpush1.msra.mxu0 0.0
    %124 = vmatprep.subr.mxu0 0.0
    %125 = vmatpush1.msra.mxu0 0.0
    %126 = vmatprep.subr.mxu0 0.0
    %127 = vmatpush1.msra.mxu0 %v94
    %128 = vmatprep.subr.mxu0 0.0
    %129 = vmatpush2.msra.mxu0 0.0
    %130 = vmatprep.subr.mxu0 0.0
    %131 = vmatpush2.msra.mxu0 0.0
    %132 = vmatprep.subr.mxu0 0.0
    %133 = vmatpush2.msra.mxu0 0.0
    %134 = vmatprep.subr.mxu0 0.0
    %135 = vmatpush2.msra.mxu0 0.0
    %136 = vmatprep.subr.mxu0 0.0
    %137 = vmatpush2.msra.mxu0 0.0
    %138 = vmatprep.subr.mxu0 0.0
    %139 = vmatpush2.msra.mxu0 0.0
    %140 = vmatprep.subr.mxu0 0.0
    %141 = vmatpush2.msra.mxu0 0.0
    %142 = vmatprep.subr.mxu0 0.0
    %143 = vmatpush2.msra.mxu0 0.0
    %144 = vmatprep.subr.mxu0 0.0
    %145 = vmatpush2.msra.mxu0 0.0
    %146 = vmatprep.subr.mxu0 0.0
    %147 = vmatpush2.msra.mxu0 0.0
    %148 = vmatprep.subr.mxu0 0.0
    %149 = vmatpush2.msra.mxu0 0.0
    %150 = vmatprep.subr.mxu0 0.0
    %151 = vmatpush2.msra.mxu0 0.0
    %152 = vmatprep.subr.mxu0 0.0
    %153 = vmatpush2.msra.mxu0 0.0
    %154 = vmatprep.subr.mxu0 0.0
    %155 = vmatpush2.msra.mxu0 0.0
    %156 = vmatprep.subr.mxu0 0.0
    %157 = vmatpush2.msra.mxu0 0.0
    %158 = vmatprep.subr.mxu0 0.0
    %159 = vmatpush2.msra.mxu0 0.0
    %160 = vmatprep.mubr.f32.mxu0 0.0
    %161 = vmatmul.mubr.f32.gmra.mxu0 %v81
    %v162 = vpop.f32.mrf.mxu0
    %v163 = vadd.f32 0.0, %v162
    %v164 = vpop.f32.mrf.mxu0
    %165 = vmatprep.mubr.f32.mxu0 0.0
    %166 = vmatmul.mubr.f32.gmra.mxu0 %v84
    %v167 = vpop.f32.mrf.mxu0
    %v168 = vadd.f32 0.0, %v167
    %v169 = vpop.f32.mrf.mxu0
    %170 = vmatprep.mubr.f32.mxu0 0.0
    %171 = vmatmul.mubr.f32.gmra.mxu0 %v87
    %v172 = vpop.f32.mrf.mxu0
    %v173 = vadd.f32 0.0, %v172
    %v174 = vpop.f32.mrf.mxu0
    %175 = vmatprep.mubr.f32.mxu0 0.0
    %176 = vmatmul.mubr.f32.gmra.mxu0 %v90
    %v177 = vpop.f32.mrf.mxu0
    %v178 = vadd.f32 0.0, %v177
    %v179 = vpop.f32.mrf.mxu0
    %180 = vdwg.mxu0
    %v182 = vsel %vm79, %v61, 0
    %v185 = vsel %vm79, %v63, 0
    %v188 = vsel %vm79, %v65, 0
    %v191 = vsel %vm79, %v67, 0
    %v194 = vsel %vm92, %v68, 0
    %196 = vmatprep.subr.mxu0 0.0
    %197 = vmatpush1.msra.mxu0 0.0
    %198 = vmatprep.subr.mxu0 0.0
    %199 = vmatpush1.msra.mxu0 0.0
    %200 = vmatprep.subr.mxu0 0.0
    %201 = vmatpush1.msra.mxu0 0.0
    %202 = vmatprep.subr.mxu0 0.0
    %203 = vmatpush1.msra.mxu0 0.0
    %204 = vmatprep.subr.mxu0 0.0
    %205 = vmatpush1.msra.mxu0 0.0
    %206 = vmatprep.subr.mxu0 0.0
    %207 = vmatpush1.msra.mxu0 0.0
    %208 = vmatprep.subr.mxu0 0.0
    %209 = vmatpush1.msra.mxu0 0.0
    %210 = vmatprep.subr.mxu0 0.0
    %211 = vmatpush1.msra.mxu0 0.0
    %212 = vmatprep.subr.mxu0 0.0
    %213 = vmatpush1.msra.mxu0 0.0
    %214 = vmatprep.subr.mxu0 0.0
    %215 = vmatpush1.msra.mxu0 0.0
    %216 = vmatprep.subr.mxu0 0.0
    %217 = vmatpush1.msra.mxu0 0.0
    %218 = vmatprep.subr.mxu0 0.0
    %219 = vmatpush1.msra.mxu0 0.0
    %220 = vmatprep.subr.mxu0 0.0
    %221 = vmatpush1.msra.mxu0 0.0
    %222 = vmatprep.subr.mxu0 0.0
    %223 = vmatpush1.msra.mxu0 0.0
    %224 = vmatprep.subr.mxu0 0.0
    %225 = vmatpush1.msra.mxu0 0.0
    %226 = vmatprep.subr.mxu0 0.0
    %227 = vmatpush1.msra.mxu0 %v194
    %228 = vmatprep.subr.mxu0 0.0
    %229 = vmatpush2.msra.mxu0 0.0
    %230 = vmatprep.subr.mxu0 0.0
    %231 = vmatpush2.msra.mxu0 0.0
    %232 = vmatprep.subr.mxu0 0.0
    %233 = vmatpush2.msra.mxu0 0.0
    %234 = vmatprep.subr.mxu0 0.0
    %235 = vmatpush2.msra.mxu0 0.0
    %236 = vmatprep.subr.mxu0 0.0
    %237 = vmatpush2.msra.mxu0 0.0
    %238 = vmatprep.subr.mxu0 0.0
    %239 = vmatpush2.msra.mxu0 0.0
    %240 = vmatprep.subr.mxu0 0.0
    %241 = vmatpush2.msra.mxu0 0.0
    %242 = vmatprep.subr.mxu0 0.0
    %243 = vmatpush2.msra.mxu0 0.0
    %244 = vmatprep.subr.mxu0 0.0
    %245 = vmatpush2.msra.mxu0 0.0
    %246 = vmatprep.subr.mxu0 0.0
    %247 = vmatpush2.msra.mxu0 0.0
    %248 = vmatprep.subr.mxu0 0.0
    %249 = vmatpush2.msra.mxu0 0.0
    %250 = vmatprep.subr.mxu0 0.0
    %251 = vmatpush2.msra.mxu0 0.0
    %252 = vmatprep.subr.mxu0 0.0
    %253 = vmatpush2.msra.mxu0 0.0
    %254 = vmatprep.subr.mxu0 0.0
    %255 = vmatpush2.msra.mxu0 0.0
    %256 = vmatprep.subr.mxu0 0.0
    %257 = vmatpush2.msra.mxu0 0.0
    %258 = vmatprep.subr.mxu0 0.0
    %259 = vmatpush2.msra.mxu0 0.0
    %260 = vmatprep.mubr.f32.mxu0 0.0
    %261 = vmatmul.mubr.f32.gmra.mxu0 %v182
    %v262 = vpop.f32.mrf.mxu0
    %v263 = vadd.f32 %v163, %v262
    %v264 = vpop.f32.mrf.mxu0
    %265 = vmatprep.mubr.f32.mxu0 0.0
    %266 = vmatmul.mubr.f32.gmra.mxu0 %v185
    %v267 = vpop.f32.mrf.mxu0
    %v268 = vadd.f32 %v168, %v267
    %v269 = vpop.f32.mrf.mxu0
    %270 = vmatprep.mubr.f32.mxu0 0.0
    %271 = vmatmul.mubr.f32.gmra.mxu0 %v188
    %v272 = vpop.f32.mrf.mxu0
    %v273 = vadd.f32 %v173, %v272
    %v274 = vpop.f32.mrf.mxu0
    %275 = vmatprep.mubr.f32.mxu0 0.0
    %276 = vmatmul.mubr.f32.gmra.mxu0 %v191
    %v277 = vpop.f32.mrf.mxu0
    %v278 = vadd.f32 %v178, %v277
    %v279 = vpop.f32.mrf.mxu0
    %280 = vdwg.mxu0
    %s281 = scalar_lea.vmem %s0, 2
    %v282 = vld [vmem:[%s281] ss:$2 sm:$0xff]
    %s283 = scalar_lea.vmem %s0, 18
    %v284 = vld [vmem:[%s283] ss:$2 sm:$0xff]
    %s285 = scalar_lea.vmem %s0, 34
    %v286 = vld [vmem:[%s285] ss:$2 sm:$0xff]
    %s287 = scalar_lea.vmem %s0, 50
    %v288 = vld [vmem:[%s287] ss:$2 sm:$0x7]
    %s289 = scalar_lea.vmem %s1, 4
    %v290 = vld [vmem:[%s289] sm:$0x3]
    %v292 = vsel %vm79, %v282, 0
    %v295 = vsel %vm79, %v284, 0
    %v298 = vsel %vm79, %v286, 0
    %v301 = vsel %vm79, %v288, 0
    %v304 = vsel %vm92, %v290, 0
    %306 = vmatprep.subr.mxu0 0.0
    %307 = vmatpush1.msra.mxu0 0.0
    %308 = vmatprep.subr.mxu0 0.0
    %309 = vmatpush1.msra.mxu0 0.0
    %310 = vmatprep.subr.mxu0 0.0
    %311 = vmatpush1.msra.mxu0 0.0
    %312 = vmatprep.subr.mxu0 0.0
    %313 = vmatpush1.msra.mxu0 0.0
    %314 = vmatprep.subr.mxu0 0.0
    %315 = vmatpush1.msra.mxu0 0.0
    %316 = vmatprep.subr.mxu0 0.0
    %317 = vmatpush1.msra.mxu0 0.0
    %318 = vmatprep.subr.mxu0 0.0
    %319 = vmatpush1.msra.mxu0 0.0
    %320 = vmatprep.subr.mxu0 0.0
    %321 = vmatpush1.msra.mxu0 0.0
    %322 = vmatprep.subr.mxu0 0.0
    %323 = vmatpush1.msra.mxu0 0.0
    %324 = vmatprep.subr.mxu0 0.0
    %325 = vmatpush1.msra.mxu0 0.0
    %326 = vmatprep.subr.mxu0 0.0
    %327 = vmatpush1.msra.mxu0 0.0
    %328 = vmatprep.subr.mxu0 0.0
    %329 = vmatpush1.msra.mxu0 0.0
    %330 = vmatprep.subr.mxu0 0.0
    %331 = vmatpush1.msra.mxu0 0.0
    %332 = vmatprep.subr.mxu0 0.0
    %333 = vmatpush1.msra.mxu0 0.0
    %334 = vmatprep.subr.mxu0 0.0
    %335 = vmatpush1.msra.mxu0 0.0
    %336 = vmatprep.subr.mxu0 0.0
    %337 = vmatpush1.msra.mxu0 %v304
    %338 = vmatprep.subr.mxu0 0.0
    %339 = vmatpush2.msra.mxu0 0.0
    %340 = vmatprep.subr.mxu0 0.0
    %341 = vmatpush2.msra.mxu0 0.0
    %342 = vmatprep.subr.mxu0 0.0
    %343 = vmatpush2.msra.mxu0 0.0
    %344 = vmatprep.subr.mxu0 0.0
    %345 = vmatpush2.msra.mxu0 0.0
    %346 = vmatprep.subr.mxu0 0.0
    %347 = vmatpush2.msra.mxu0 0.0
    %348 = vmatprep.subr.mxu0 0.0
    %349 = vmatpush2.msra.mxu0 0.0
    %350 = vmatprep.subr.mxu0 0.0
    %351 = vmatpush2.msra.mxu0 0.0
    %352 = vmatprep.subr.mxu0 0.0
    %353 = vmatpush2.msra.mxu0 0.0
    %354 = vmatprep.subr.mxu0 0.0
    %355 = vmatpush2.msra.mxu0 0.0
    %356 = vmatprep.subr.mxu0 0.0
    %357 = vmatpush2.msra.mxu0 0.0
    %358 = vmatprep.subr.mxu0 0.0
    %359 = vmatpush2.msra.mxu0 0.0
    %360 = vmatprep.subr.mxu0 0.0
    %361 = vmatpush2.msra.mxu0 0.0
    %362 = vmatprep.subr.mxu0 0.0
    %363 = vmatpush2.msra.mxu0 0.0
    %364 = vmatprep.subr.mxu0 0.0
    %365 = vmatpush2.msra.mxu0 0.0
    %366 = vmatprep.subr.mxu0 0.0
    %367 = vmatpush2.msra.mxu0 0.0
    %368 = vmatprep.subr.mxu0 0.0
    %369 = vmatpush2.msra.mxu0 0.0
    %370 = vmatprep.mubr.f32.mxu0 0.0
    %371 = vmatmul.mubr.f32.gmra.mxu0 %v292
    %v372 = vpop.f32.mrf.mxu0
    %v373 = vadd.f32 0.0, %v372
    %v374 = vpop.f32.mrf.mxu0
    %375 = vmatprep.mubr.f32.mxu0 0.0
    %376 = vmatmul.mubr.f32.gmra.mxu0 %v295
    %v377 = vpop.f32.mrf.mxu0
    %v378 = vadd.f32 0.0, %v377
    %v379 = vpop.f32.mrf.mxu0
    %380 = vmatprep.mubr.f32.mxu0 0.0
    %381 = vmatmul.mubr.f32.gmra.mxu0 %v298
    %v382 = vpop.f32.mrf.mxu0
    %v383 = vadd.f32 0.0, %v382
    %v384 = vpop.f32.mrf.mxu0
    %385 = vmatprep.mubr.f32.mxu0 0.0
    %386 = vmatmul.mubr.f32.gmra.mxu0 %v301
    %v387 = vpop.f32.mrf.mxu0
    %v388 = vadd.f32 0.0, %v387
    %v389 = vpop.f32.mrf.mxu0
    %390 = vdwg.mxu0
    %v391 = vadd.f32 %v263, %v373
    %v392 = vadd.f32 %v268, %v378
    %v393 = vadd.f32 %v273, %v383
    %v394 = vadd.f32 %v278, %v388
    %s395 = scalar_lea.vmem %s0, 3
    %v396 = vld [vmem:[%s395] ss:$2 sm:$0xff]
    %s397 = scalar_lea.vmem %s0, 19
    %v398 = vld [vmem:[%s397] ss:$2 sm:$0xff]
    %s399 = scalar_lea.vmem %s0, 35
    %v400 = vld [vmem:[%s399] ss:$2 sm:$0xff]
    %s401 = scalar_lea.vmem %s0, 51
    %v402 = vld [vmem:[%s401] ss:$2 sm:$0x7]
    %s403 = scalar_lea.vmem %s1, 6
    %v404 = vld [vmem:[%s403] sm:$0x3]
    %v406 = vsel %vm79, %v396, 0
    %v409 = vsel %vm79, %v398, 0
    %v412 = vsel %vm79, %v400, 0
    %v415 = vsel %vm79, %v402, 0
    %v418 = vsel %vm92, %v404, 0
    %420 = vmatprep.subr.mxu0 0.0
    %421 = vmatpush1.msra.mxu0 0.0
    %422 = vmatprep.subr.mxu0 0.0
    %423 = vmatpush1.msra.mxu0 0.0
    %424 = vmatprep.subr.mxu0 0.0
    %425 = vmatpush1.msra.mxu0 0.0
    %426 = vmatprep.subr.mxu0 0.0
    %427 = vmatpush1.msra.mxu0 0.0
    %428 = vmatprep.subr.mxu0 0.0
    %429 = vmatpush1.msra.mxu0 0.0
    %430 = vmatprep.subr.mxu0 0.0
    %431 = vmatpush1.msra.mxu0 0.0
    %432 = vmatprep.subr.mxu0 0.0
    %433 = vmatpush1.msra.mxu0 0.0
    %434 = vmatprep.subr.mxu0 0.0
    %435 = vmatpush1.msra.mxu0 0.0
    %436 = vmatprep.subr.mxu0 0.0
    %437 = vmatpush1.msra.mxu0 0.0
    %438 = vmatprep.subr.mxu0 0.0
    %439 = vmatpush1.msra.mxu0 0.0
    %440 = vmatprep.subr.mxu0 0.0
    %441 = vmatpush1.msra.mxu0 0.0
    %442 = vmatprep.subr.mxu0 0.0
    %443 = vmatpush1.msra.mxu0 0.0
    %444 = vmatprep.subr.mxu0 0.0
    %445 = vmatpush1.msra.mxu0 0.0
    %446 = vmatprep.subr.mxu0 0.0
    %447 = vmatpush1.msra.mxu0 0.0
    %448 = vmatprep.subr.mxu0 0.0
    %449 = vmatpush1.msra.mxu0 0.0
    %450 = vmatprep.subr.mxu0 0.0
    %451 = vmatpush1.msra.mxu0 %v418
    %452 = vmatprep.subr.mxu0 0.0
    %453 = vmatpush2.msra.mxu0 0.0
    %454 = vmatprep.subr.mxu0 0.0
    %455 = vmatpush2.msra.mxu0 0.0
    %456 = vmatprep.subr.mxu0 0.0
    %457 = vmatpush2.msra.mxu0 0.0
    %458 = vmatprep.subr.mxu0 0.0
    %459 = vmatpush2.msra.mxu0 0.0
    %460 = vmatprep.subr.mxu0 0.0
    %461 = vmatpush2.msra.mxu0 0.0
    %462 = vmatprep.subr.mxu0 0.0
    %463 = vmatpush2.msra.mxu0 0.0
    %464 = vmatprep.subr.mxu0 0.0
    %465 = vmatpush2.msra.mxu0 0.0
    %466 = vmatprep.subr.mxu0 0.0
    %467 = vmatpush2.msra.mxu0 0.0
    %468 = vmatprep.subr.mxu0 0.0
    %469 = vmatpush2.msra.mxu0 0.0
    %470 = vmatprep.subr.mxu0 0.0
    %471 = vmatpush2.msra.mxu0 0.0
    %472 = vmatprep.subr.mxu0 0.0
    %473 = vmatpush2.msra.mxu0 0.0
    %474 = vmatprep.subr.mxu0 0.0
    %475 = vmatpush2.msra.mxu0 0.0
    %476 = vmatprep.subr.mxu0 0.0
    %477 = vmatpush2.msra.mxu0 0.0
    %478 = vmatprep.subr.mxu0 0.0
    %479 = vmatpush2.msra.mxu0 0.0
    %480 = vmatprep.subr.mxu0 0.0
    %481 = vmatpush2.msra.mxu0 0.0
    %482 = vmatprep.subr.mxu0 0.0
    %483 = vmatpush2.msra.mxu0 0.0
    %484 = vmatprep.mubr.f32.mxu0 0.0
    %485 = vmatmul.mubr.f32.gmra.mxu0 %v406
    %v486 = vpop.f32.mrf.mxu0
    %v487 = vadd.f32 0.0, %v486
    %v488 = vpop.f32.mrf.mxu0
    %489 = vmatprep.mubr.f32.mxu0 0.0
    %490 = vmatmul.mubr.f32.gmra.mxu0 %v409
    %v491 = vpop.f32.mrf.mxu0
    %v492 = vadd.f32 0.0, %v491
    %v493 = vpop.f32.mrf.mxu0
    %494 = vmatprep.mubr.f32.mxu0 0.0
    %495 = vmatmul.mubr.f32.gmra.mxu0 %v412
    %v496 = vpop.f32.mrf.mxu0
    %v497 = vadd.f32 0.0, %v496
    %v498 = vpop.f32.mrf.mxu0
    %499 = vmatprep.mubr.f32.mxu0 0.0
    %500 = vmatmul.mubr.f32.gmra.mxu0 %v415
    %v501 = vpop.f32.mrf.mxu0
    %v502 = vadd.f32 0.0, %v501
    %v503 = vpop.f32.mrf.mxu0
    %504 = vdwg.mxu0
    %v505 = vadd.f32 %v391, %v487
    %v506 = vadd.f32 %v392, %v492
    %v507 = vadd.f32 %v393, %v497
    %v508 = vadd.f32 %v394, %v502
    %s509 = scalar_lea.vmem %s0, 4
    %v510 = vld [vmem:[%s509] ss:$2 sm:$0xff]
    %s511 = scalar_lea.vmem %s0, 20
    %v512 = vld [vmem:[%s511] ss:$2 sm:$0xff]
    %s513 = scalar_lea.vmem %s0, 36
    %v514 = vld [vmem:[%s513] ss:$2 sm:$0xff]
    %s515 = scalar_lea.vmem %s0, 52
    %v516 = vld [vmem:[%s515] ss:$2 sm:$0x7]
    %s517 = scalar_lea.vmem %s1, 8
    %v518 = vld [vmem:[%s517] sm:$0x3]
    %v520 = vsel %vm79, %v510, 0
    %v523 = vsel %vm79, %v512, 0
    %v526 = vsel %vm79, %v514, 0
    %v529 = vsel %vm79, %v516, 0
    %v532 = vsel %vm92, %v518, 0
    %534 = vmatprep.subr.mxu0 0.0
    %535 = vmatpush1.msra.mxu0 0.0
    %536 = vmatprep.subr.mxu0 0.0
    %537 = vmatpush1.msra.mxu0 0.0
    %538 = vmatprep.subr.mxu0 0.0
    %539 = vmatpush1.msra.mxu0 0.0
    %540 = vmatprep.subr.mxu0 0.0
    %541 = vmatpush1.msra.mxu0 0.0
    %542 = vmatprep.subr.mxu0 0.0
    %543 = vmatpush1.msra.mxu0 0.0
    %544 = vmatprep.subr.mxu0 0.0
    %545 = vmatpush1.msra.mxu0 0.0
    %546 = vmatprep.subr.mxu0 0.0
    %547 = vmatpush1.msra.mxu0 0.0
    %548 = vmatprep.subr.mxu0 0.0
    %549 = vmatpush1.msra.mxu0 0.0
    %550 = vmatprep.subr.mxu0 0.0
    %551 = vmatpush1.msra.mxu0 0.0
    %552 = vmatprep.subr.mxu0 0.0
    %553 = vmatpush1.msra.mxu0 0.0
    %554 = vmatprep.subr.mxu0 0.0
    %555 = vmatpush1.msra.mxu0 0.0
    %556 = vmatprep.subr.mxu0 0.0
    %557 = vmatpush1.msra.mxu0 0.0
    %558 = vmatprep.subr.mxu0 0.0
    %559 = vmatpush1.msra.mxu0 0.0
    %560 = vmatprep.subr.mxu0 0.0
    %561 = vmatpush1.msra.mxu0 0.0
    %562 = vmatprep.subr.mxu0 0.0
    %563 = vmatpush1.msra.mxu0 0.0
    %564 = vmatprep.subr.mxu0 0.0
    %565 = vmatpush1.msra.mxu0 %v532
    %566 = vmatprep.subr.mxu0 0.0
    %567 = vmatpush2.msra.mxu0 0.0
    %568 = vmatprep.subr.mxu0 0.0
    %569 = vmatpush2.msra.mxu0 0.0
    %570 = vmatprep.subr.mxu0 0.0
    %571 = vmatpush2.msra.mxu0 0.0
    %572 = vmatprep.subr.mxu0 0.0
    %573 = vmatpush2.msra.mxu0 0.0
    %574 = vmatprep.subr.mxu0 0.0
    %575 = vmatpush2.msra.mxu0 0.0
    %576 = vmatprep.subr.mxu0 0.0
    %577 = vmatpush2.msra.mxu0 0.0
    %578 = vmatprep.subr.mxu0 0.0
    %579 = vmatpush2.msra.mxu0 0.0
    %580 = vmatprep.subr.mxu0 0.0
    %581 = vmatpush2.msra.mxu0 0.0
    %582 = vmatprep.subr.mxu0 0.0
    %583 = vmatpush2.msra.mxu0 0.0
    %584 = vmatprep.subr.mxu0 0.0
    %585 = vmatpush2.msra.mxu0 0.0
    %586 = vmatprep.subr.mxu0 0.0
    %587 = vmatpush2.msra.mxu0 0.0
    %588 = vmatprep.subr.mxu0 0.0
    %589 = vmatpush2.msra.mxu0 0.0
    %590 = vmatprep.subr.mxu0 0.0
    %591 = vmatpush2.msra.mxu0 0.0
    %592 = vmatprep.subr.mxu0 0.0
    %593 = vmatpush2.msra.mxu0 0.0
    %594 = vmatprep.subr.mxu0 0.0
    %595 = vmatpush2.msra.mxu0 0.0
    %596 = vmatprep.subr.mxu0 0.0
    %597 = vmatpush2.msra.mxu0 0.0
    %598 = vmatprep.mubr.f32.mxu0 0.0
    %599 = vmatmul.mubr.f32.gmra.mxu0 %v520
    %v600 = vpop.f32.mrf.mxu0
    %v601 = vadd.f32 0.0, %v600
    %v602 = vpop.f32.mrf.mxu0
    %603 = vmatprep.mubr.f32.mxu0 0.0
    %604 = vmatmul.mubr.f32.gmra.mxu0 %v523
    %v605 = vpop.f32.mrf.mxu0
    %v606 = vadd.f32 0.0, %v605
    %v607 = vpop.f32.mrf.mxu0
    %608 = vmatprep.mubr.f32.mxu0 0.0
    %609 = vmatmul.mubr.f32.gmra.mxu0 %v526
    %v610 = vpop.f32.mrf.mxu0
    %v611 = vadd.f32 0.0, %v610
    %v612 = vpop.f32.mrf.mxu0
    %613 = vmatprep.mubr.f32.mxu0 0.0
    %614 = vmatmul.mubr.f32.gmra.mxu0 %v529
    %v615 = vpop.f32.mrf.mxu0
    %v616 = vadd.f32 0.0, %v615
    %v617 = vpop.f32.mrf.mxu0
    %618 = vdwg.mxu0
    %v619 = vadd.f32 %v505, %v601
    %v620 = vadd.f32 %v506, %v606
    %v621 = vadd.f32 %v507, %v611
    %v622 = vadd.f32 %v508, %v616
    %s623 = scalar_lea.vmem %s0, 5
    %v624 = vld [vmem:[%s623] ss:$2 sm:$0xff]
    %s625 = scalar_lea.vmem %s0, 21
    %v626 = vld [vmem:[%s625] ss:$2 sm:$0xff]
    %s627 = scalar_lea.vmem %s0, 37
    %v628 = vld [vmem:[%s627] ss:$2 sm:$0xff]
    %s629 = scalar_lea.vmem %s0, 53
    %v630 = vld [vmem:[%s629] ss:$2 sm:$0x7]
    %s631 = scalar_lea.vmem %s1, 10
    %v632 = vld [vmem:[%s631] sm:$0x3]
    %v634 = vsel %vm79, %v624, 0
    %v637 = vsel %vm79, %v626, 0
    %v640 = vsel %vm79, %v628, 0
    %v643 = vsel %vm79, %v630, 0
    %v646 = vsel %vm92, %v632, 0
    %648 = vmatprep.subr.mxu0 0.0
    %649 = vmatpush1.msra.mxu0 0.0
    %650 = vmatprep.subr.mxu0 0.0
    %651 = vmatpush1.msra.mxu0 0.0
    %652 = vmatprep.subr.mxu0 0.0
    %653 = vmatpush1.msra.mxu0 0.0
    %654 = vmatprep.subr.mxu0 0.0
    %655 = vmatpush1.msra.mxu0 0.0
    %656 = vmatprep.subr.mxu0 0.0
    %657 = vmatpush1.msra.mxu0 0.0
    %658 = vmatprep.subr.mxu0 0.0
    %659 = vmatpush1.msra.mxu0 0.0
    %660 = vmatprep.subr.mxu0 0.0
    %661 = vmatpush1.msra.mxu0 0.0
    %662 = vmatprep.subr.mxu0 0.0
    %663 = vmatpush1.msra.mxu0 0.0
    %664 = vmatprep.subr.mxu0 0.0
    %665 = vmatpush1.msra.mxu0 0.0
    %666 = vmatprep.subr.mxu0 0.0
    %667 = vmatpush1.msra.mxu0 0.0
    %668 = vmatprep.subr.mxu0 0.0
    %669 = vmatpush1.msra.mxu0 0.0
    %670 = vmatprep.subr.mxu0 0.0
    %671 = vmatpush1.msra.mxu0 0.0
    %672 = vmatprep.subr.mxu0 0.0
    %673 = vmatpush1.msra.mxu0 0.0
    %674 = vmatprep.subr.mxu0 0.0
    %675 = vmatpush1.msra.mxu0 0.0
    %676 = vmatprep.subr.mxu0 0.0
    %677 = vmatpush1.msra.mxu0 0.0
    %678 = vmatprep.subr.mxu0 0.0
    %679 = vmatpush1.msra.mxu0 %v646
    %680 = vmatprep.subr.mxu0 0.0
    %681 = vmatpush2.msra.mxu0 0.0
    %682 = vmatprep.subr.mxu0 0.0
    %683 = vmatpush2.msra.mxu0 0.0
    %684 = vmatprep.subr.mxu0 0.0
    %685 = vmatpush2.msra.mxu0 0.0
    %686 = vmatprep.subr.mxu0 0.0
    %687 = vmatpush2.msra.mxu0 0.0
    %688 = vmatprep.subr.mxu0 0.0
    %689 = vmatpush2.msra.mxu0 0.0
    %690 = vmatprep.subr.mxu0 0.0
    %691 = vmatpush2.msra.mxu0 0.0
    %692 = vmatprep.subr.mxu0 0.0
    %693 = vmatpush2.msra.mxu0 0.0
    %694 = vmatprep.subr.mxu0 0.0
    %695 = vmatpush2.msra.mxu0 0.0
    %696 = vmatprep.subr.mxu0 0.0
    %697 = vmatpush2.msra.mxu0 0.0
    %698 = vmatprep.subr.mxu0 0.0
    %699 = vmatpush2.msra.mxu0 0.0
    %700 = vmatprep.subr.mxu0 0.0
    %701 = vmatpush2.msra.mxu0 0.0
    %702 = vmatprep.subr.mxu0 0.0
    %703 = vmatpush2.msra.mxu0 0.0
    %704 = vmatprep.subr.mxu0 0.0
    %705 = vmatpush2.msra.mxu0 0.0
    %706 = vmatprep.subr.mxu0 0.0
    %707 = vmatpush2.msra.mxu0 0.0
    %708 = vmatprep.subr.mxu0 0.0
    %709 = vmatpush2.msra.mxu0 0.0
    %710 = vmatprep.subr.mxu0 0.0
    %711 = vmatpush2.msra.mxu0 0.0
    %712 = vmatprep.mubr.f32.mxu0 0.0
    %713 = vmatmul.mubr.f32.gmra.mxu0 %v634
    %v714 = vpop.f32.mrf.mxu0
    %v715 = vadd.f32 0.0, %v714
    %v716 = vpop.f32.mrf.mxu0
    %717 = vmatprep.mubr.f32.mxu0 0.0
    %718 = vmatmul.mubr.f32.gmra.mxu0 %v637
    %v719 = vpop.f32.mrf.mxu0
    %v720 = vadd.f32 0.0, %v719
    %v721 = vpop.f32.mrf.mxu0
    %722 = vmatprep.mubr.f32.mxu0 0.0
    %723 = vmatmul.mubr.f32.gmra.mxu0 %v640
    %v724 = vpop.f32.mrf.mxu0
    %v725 = vadd.f32 0.0, %v724
    %v726 = vpop.f32.mrf.mxu0
    %727 = vmatprep.mubr.f32.mxu0 0.0
    %728 = vmatmul.mubr.f32.gmra.mxu0 %v643
    %v729 = vpop.f32.mrf.mxu0
    %v730 = vadd.f32 0.0, %v729
    %v731 = vpop.f32.mrf.mxu0
    %732 = vdwg.mxu0
    %v733 = vadd.f32 %v619, %v715
    %v734 = vadd.f32 %v620, %v720
    %v735 = vadd.f32 %v621, %v725
    %v736 = vadd.f32 %v622, %v730
    %s737 = scalar_lea.vmem %s0, 6
    %v738 = vld [vmem:[%s737] ss:$2 sm:$0xff]
    %s739 = scalar_lea.vmem %s0, 22
    %v740 = vld [vmem:[%s739] ss:$2 sm:$0xff]
    %s741 = scalar_lea.vmem %s0, 38
    %v742 = vld [vmem:[%s741] ss:$2 sm:$0xff]
    %s743 = scalar_lea.vmem %s0, 54
    %v744 = vld [vmem:[%s743] ss:$2 sm:$0x7]
    %s745 = scalar_lea.vmem %s1, 12
    %v746 = vld [vmem:[%s745] sm:$0x3]
    %v748 = vsel %vm79, %v738, 0
    %v751 = vsel %vm79, %v740, 0
    %v754 = vsel %vm79, %v742, 0
    %v757 = vsel %vm79, %v744, 0
    %v760 = vsel %vm92, %v746, 0
    %762 = vmatprep.subr.mxu0 0.0
    %763 = vmatpush1.msra.mxu0 0.0
    %764 = vmatprep.subr.mxu0 0.0
    %765 = vmatpush1.msra.mxu0 0.0
    %766 = vmatprep.subr.mxu0 0.0
    %767 = vmatpush1.msra.mxu0 0.0
    %768 = vmatprep.subr.mxu0 0.0
    %769 = vmatpush1.msra.mxu0 0.0
    %770 = vmatprep.subr.mxu0 0.0
    %771 = vmatpush1.msra.mxu0 0.0
    %772 = vmatprep.subr.mxu0 0.0
    %773 = vmatpush1.msra.mxu0 0.0
    %774 = vmatprep.subr.mxu0 0.0
    %775 = vmatpush1.msra.mxu0 0.0
    %776 = vmatprep.subr.mxu0 0.0
    %777 = vmatpush1.msra.mxu0 0.0
    %778 = vmatprep.subr.mxu0 0.0
    %779 = vmatpush1.msra.mxu0 0.0
    %780 = vmatprep.subr.mxu0 0.0
    %781 = vmatpush1.msra.mxu0 0.0
    %782 = vmatprep.subr.mxu0 0.0
    %783 = vmatpush1.msra.mxu0 0.0
    %784 = vmatprep.subr.mxu0 0.0
    %785 = vmatpush1.msra.mxu0 0.0
    %786 = vmatprep.subr.mxu0 0.0
    %787 = vmatpush1.msra.mxu0 0.0
    %788 = vmatprep.subr.mxu0 0.0
    %789 = vmatpush1.msra.mxu0 0.0
    %790 = vmatprep.subr.mxu0 0.0
    %791 = vmatpush1.msra.mxu0 0.0
    %792 = vmatprep.subr.mxu0 0.0
    %793 = vmatpush1.msra.mxu0 %v760
    %794 = vmatprep.subr.mxu0 0.0
    %795 = vmatpush2.msra.mxu0 0.0
    %796 = vmatprep.subr.mxu0 0.0
    %797 = vmatpush2.msra.mxu0 0.0
    %798 = vmatprep.subr.mxu0 0.0
    %799 = vmatpush2.msra.mxu0 0.0
    %800 = vmatprep.subr.mxu0 0.0
    %801 = vmatpush2.msra.mxu0 0.0
    %802 = vmatprep.subr.mxu0 0.0
    %803 = vmatpush2.msra.mxu0 0.0
    %804 = vmatprep.subr.mxu0 0.0
    %805 = vmatpush2.msra.mxu0 0.0
    %806 = vmatprep.subr.mxu0 0.0
    %807 = vmatpush2.msra.mxu0 0.0
    %808 = vmatprep.subr.mxu0 0.0
    %809 = vmatpush2.msra.mxu0 0.0
    %810 = vmatprep.subr.mxu0 0.0
    %811 = vmatpush2.msra.mxu0 0.0
    %812 = vmatprep.subr.mxu0 0.0
    %813 = vmatpush2.msra.mxu0 0.0
    %814 = vmatprep.subr.mxu0 0.0
    %815 = vmatpush2.msra.mxu0 0.0
    %816 = vmatprep.subr.mxu0 0.0
    %817 = vmatpush2.msra.mxu0 0.0
    %818 = vmatprep.subr.mxu0 0.0
    %819 = vmatpush2.msra.mxu0 0.0
    %820 = vmatprep.subr.mxu0 0.0
    %821 = vmatpush2.msra.mxu0 0.0
    %822 = vmatprep.subr.mxu0 0.0
    %823 = vmatpush2.msra.mxu0 0.0
    %824 = vmatprep.subr.mxu0 0.0
    %825 = vmatpush2.msra.mxu0 0.0
    %826 = vmatprep.mubr.f32.mxu0 0.0
    %827 = vmatmul.mubr.f32.gmra.mxu0 %v748
    %v828 = vpop.f32.mrf.mxu0
    %v829 = vadd.f32 0.0, %v828
    %v830 = vpop.f32.mrf.mxu0
    %831 = vmatprep.mubr.f32.mxu0 0.0
    %832 = vmatmul.mubr.f32.gmra.mxu0 %v751
    %v833 = vpop.f32.mrf.mxu0
    %v834 = vadd.f32 0.0, %v833
    %v835 = vpop.f32.mrf.mxu0
    %836 = vmatprep.mubr.f32.mxu0 0.0
    %837 = vmatmul.mubr.f32.gmra.mxu0 %v754
    %v838 = vpop.f32.mrf.mxu0
    %v839 = vadd.f32 0.0, %v838
    %v840 = vpop.f32.mrf.mxu0
    %841 = vmatprep.mubr.f32.mxu0 0.0
    %842 = vmatmul.mubr.f32.gmra.mxu0 %v757
    %v843 = vpop.f32.mrf.mxu0
    %v844 = vadd.f32 0.0, %v843
    %v845 = vpop.f32.mrf.mxu0
    %846 = vdwg.mxu0
    %v847 = vadd.f32 %v733, %v829
    %v848 = vadd.f32 %v734, %v834
    %v849 = vadd.f32 %v735, %v839
    %v850 = vadd.f32 %v736, %v844
    %v851 = vlaneseq
    %v852 = vshrl.u32 %v851, 7
    %v853 = vsub.s32 0, %v852
    %v854 = vrot.slane %v58, %v853
    %v855 = vadd.f32 %v847, %v854
    %v856 = vadd.f32 %v848, %v854
    %v857 = vadd.f32 %v849, %v854
    %v858 = vadd.f32 %v850, %v854
    %vm859 = vcmp.ge.f32.partialorder %v855, 0.0
    %vm860 = vcmp.ge.f32.partialorder %v856, 0.0
    %vm861 = vcmp.ge.f32.partialorder %v857, 0.0
    %vm862 = vcmp.ge.f32.partialorder %v858, 0.0
    %v863 = vmul.f32 %v855, 0.01
    %v864 = vmul.f32 %v856, 0.01
    %v865 = vmul.f32 %v857, 0.01
    %v866 = vmul.f32 %v858, 0.01
    %v867 = vsel %vm859, %v855, %v863
    %v868 = vsel %vm860, %v856, %v864
    %v869 = vsel %vm861, %v857, %v865
    %v870 = vsel %vm862, %v858, %v866
    %vm871 = vcmask 523264
    %v872 = vsel %vm871, %v867, 0.0
    %v873 = vsel %vm871, %v868, 0.0
    %v874 = vadd.f32 %v872, %v873
    %v875 = vsel %vm871, %v869, 0.0
    %v876 = vadd.f32 %v874, %v875
    %vm877 = vcmask 518144
    %v878 = vsel %vm877, %v870, 0.0
    %v879 = vadd.f32 %v876, %v878
    %v880 = vrot.slane %v879, 4
    %v881 = vadd.f32 %v879, %v880
    %v882 = vrot.slane %v881, 2
    %v883 = vadd.f32 %v881, %v882
    %v884 = vrot.slane %v883, 1
    %v885 = vadd.f32 %v883, %v884
    %v886 = vmul.f32 %v867, %v867
    %v887 = vmul.f32 %v868, %v868
    %v888 = vmul.f32 %v869, %v869
    %v889 = vmul.f32 %v870, %v870
    %v890 = vsel %vm871, %v886, 0.0
    %v891 = vsel %vm871, %v887, 0.0
    %v892 = vadd.f32 %v890, %v891
    %v893 = vsel %vm871, %v888, 0.0
    %v894 = vadd.f32 %v892, %v893
    %v895 = vsel %vm877, %v889, 0.0
    %v896 = vadd.f32 %v894, %v895
    %v897 = vrot.slane %v896, 4
    %v898 = vadd.f32 %v896, %v897
    %v899 = vrot.slane %v898, 2
    %v900 = vadd.f32 %v898, %v899
    %v901 = vrot.slane %v900, 1
    %v902 = vadd.f32 %v900, %v901
    %s903 = scalar_lea.vmem %s0, 60
    %v904 = vld [vmem:[%s903] ss:$2 sm:$0xff]
    %s905 = scalar_lea.vmem %s0, 76
    %v906 = vld [vmem:[%s905] ss:$2 sm:$0xff]
    %s907 = scalar_lea.vmem %s0, 92
    %v908 = vld [vmem:[%s907] ss:$2 sm:$0xff]
    %s909 = scalar_lea.vmem %s0, 108
    %v910 = vld [vmem:[%s909] ss:$2 sm:$0x7]
    %s911 = scalar_lea.vmem %s0, 61
    %v912 = vld [vmem:[%s911] ss:$2 sm:$0xff]
    %s913 = scalar_lea.vmem %s0, 77
    %v914 = vld [vmem:[%s913] ss:$2 sm:$0xff]
    %s915 = scalar_lea.vmem %s0, 93
    %v916 = vld [vmem:[%s915] ss:$2 sm:$0xff]
    %s917 = scalar_lea.vmem %s0, 109
    %v918 = vld [vmem:[%s917] ss:$2 sm:$0x7]
    %v920 = vsel %vm79, %v912, 0
    %v923 = vsel %vm79, %v914, 0
    %v926 = vsel %vm79, %v916, 0
    %v929 = vsel %vm79, %v918, 0
    %931 = vmatprep.subr.mxu0 0.0
    %932 = vmatpush1.msra.mxu0 0.0
    %933 = vmatprep.subr.mxu0 0.0
    %934 = vmatpush1.msra.mxu0 0.0
    %935 = vmatprep.subr.mxu0 0.0
    %936 = vmatpush1.msra.mxu0 0.0
    %937 = vmatprep.subr.mxu0 0.0
    %938 = vmatpush1.msra.mxu0 0.0
    %939 = vmatprep.subr.mxu0 0.0
    %940 = vmatpush1.msra.mxu0 0.0
    %941 = vmatprep.subr.mxu0 0.0
    %942 = vmatpush1.msra.mxu0 0.0
    %943 = vmatprep.subr.mxu0 0.0
    %944 = vmatpush1.msra.mxu0 0.0
    %945 = vmatprep.subr.mxu0 0.0
    %946 = vmatpush1.msra.mxu0 0.0
    %947 = vmatprep.subr.mxu0 0.0
    %948 = vmatpush1.msra.mxu0 0.0
    %949 = vmatprep.subr.mxu0 0.0
    %950 = vmatpush1.msra.mxu0 0.0
    %951 = vmatprep.subr.mxu0 0.0
    %952 = vmatpush1.msra.mxu0 0.0
    %953 = vmatprep.subr.mxu0 0.0
    %954 = vmatpush1.msra.mxu0 0.0
    %955 = vmatprep.subr.mxu0 0.0
    %956 = vmatpush1.msra.mxu0 0.0
    %957 = vmatprep.subr.mxu0 0.0
    %958 = vmatpush1.msra.mxu0 0.0
    %959 = vmatprep.subr.mxu0 0.0
    %960 = vmatpush1.msra.mxu0 0.0
    %961 = vmatprep.subr.mxu0 0.0
    %962 = vmatpush1.msra.mxu0 %v94
    %963 = vmatprep.subr.mxu0 0.0
    %964 = vmatpush2.msra.mxu0 0.0
    %965 = vmatprep.subr.mxu0 0.0
    %966 = vmatpush2.msra.mxu0 0.0
    %967 = vmatprep.subr.mxu0 0.0
    %968 = vmatpush2.msra.mxu0 0.0
    %969 = vmatprep.subr.mxu0 0.0
    %970 = vmatpush2.msra.mxu0 0.0
    %971 = vmatprep.subr.mxu0 0.0
    %972 = vmatpush2.msra.mxu0 0.0
    %973 = vmatprep.subr.mxu0 0.0
    %974 = vmatpush2.msra.mxu0 0.0
    %975 = vmatprep.subr.mxu0 0.0
    %976 = vmatpush2.msra.mxu0 0.0
    %977 = vmatprep.subr.mxu0 0.0
    %978 = vmatpush2.msra.mxu0 0.0
    %979 = vmatprep.subr.mxu0 0.0
    %980 = vmatpush2.msra.mxu0 0.0
    %981 = vmatprep.subr.mxu0 0.0
    %982 = vmatpush2.msra.mxu0 0.0
    %983 = vmatprep.subr.mxu0 0.0
    %984 = vmatpush2.msra.mxu0 0.0
    %985 = vmatprep.subr.mxu0 0.0
    %986 = vmatpush2.msra.mxu0 0.0
    %987 = vmatprep.subr.mxu0 0.0
    %988 = vmatpush2.msra.mxu0 0.0
    %989 = vmatprep.subr.mxu0 0.0
    %990 = vmatpush2.msra.mxu0 0.0
    %991 = vmatprep.subr.mxu0 0.0
    %992 = vmatpush2.msra.mxu0 0.0
    %993 = vmatprep.subr.mxu0 0.0
    %994 = vmatpush2.msra.mxu0 0.0
    %995 = vmatprep.mubr.f32.mxu0 0.0
    %996 = vmatmul.mubr.f32.gmra.mxu0 %v920
    %v997 = vpop.f32.mrf.mxu0
    %v998 = vadd.f32 0.0, %v997
    %v999 = vpop.f32.mrf.mxu0
    %1000 = vmatprep.mubr.f32.mxu0 0.0
    %1001 = vmatmul.mubr.f32.gmra.mxu0 %v923
    %v1002 = vpop.f32.mrf.mxu0
    %v1003 = vadd.f32 0.0, %v1002
    %v1004 = vpop.f32.mrf.mxu0
    %1005 = vmatprep.mubr.f32.mxu0 0.0
    %1006 = vmatmul.mubr.f32.gmra.mxu0 %v926
    %v1007 = vpop.f32.mrf.mxu0
    %v1008 = vadd.f32 0.0, %v1007
    %v1009 = vpop.f32.mrf.mxu0
    %1010 = vmatprep.mubr.f32.mxu0 0.0
    %1011 = vmatmul.mubr.f32.gmra.mxu0 %v929
    %v1012 = vpop.f32.mrf.mxu0
    %v1013 = vadd.f32 0.0, %v1012
    %v1014 = vpop.f32.mrf.mxu0
    %1015 = vdwg.mxu0
    %v1017 = vsel %vm79, %v904, 0
    %v1020 = vsel %vm79, %v906, 0
    %v1023 = vsel %vm79, %v908, 0
    %v1026 = vsel %vm79, %v910, 0
    %1028 = vmatprep.subr.mxu0 0.0
    %1029 = vmatpush1.msra.mxu0 0.0
    %1030 = vmatprep.subr.mxu0 0.0
    %1031 = vmatpush1.msra.mxu0 0.0
    %1032 = vmatprep.subr.mxu0 0.0
    %1033 = vmatpush1.msra.mxu0 0.0
    %1034 = vmatprep.subr.mxu0 0.0
    %1035 = vmatpush1.msra.mxu0 0.0
    %1036 = vmatprep.subr.mxu0 0.0
    %1037 = vmatpush1.msra.mxu0 0.0
    %1038 = vmatprep.subr.mxu0 0.0
    %1039 = vmatpush1.msra.mxu0 0.0
    %1040 = vmatprep.subr.mxu0 0.0
    %1041 = vmatpush1.msra.mxu0 0.0
    %1042 = vmatprep.subr.mxu0 0.0
    %1043 = vmatpush1.msra.mxu0 0.0
    %1044 = vmatprep.subr.mxu0 0.0
    %1045 = vmatpush1.msra.mxu0 0.0
    %1046 = vmatprep.subr.mxu0 0.0
    %1047 = vmatpush1.msra.mxu0 0.0
    %1048 = vmatprep.subr.mxu0 0.0
    %1049 = vmatpush1.msra.mxu0 0.0
    %1050 = vmatprep.subr.mxu0 0.0
    %1051 = vmatpush1.msra.mxu0 0.0
    %1052 = vmatprep.subr.mxu0 0.0
    %1053 = vmatpush1.msra.mxu0 0.0
    %1054 = vmatprep.subr.mxu0 0.0
    %1055 = vmatpush1.msra.mxu0 0.0
    %1056 = vmatprep.subr.mxu0 0.0
    %1057 = vmatpush1.msra.mxu0 0.0
    %1058 = vmatprep.subr.mxu0 0.0
    %1059 = vmatpush1.msra.mxu0 %v194
    %1060 = vmatprep.subr.mxu0 0.0
    %1061 = vmatpush2.msra.mxu0 0.0
    %1062 = vmatprep.subr.mxu0 0.0
    %1063 = vmatpush2.msra.mxu0 0.0
    %1064 = vmatprep.subr.mxu0 0.0
    %1065 = vmatpush2.msra.mxu0 0.0
    %1066 = vmatprep.subr.mxu0 0.0
    %1067 = vmatpush2.msra.mxu0 0.0
    %1068 = vmatprep.subr.mxu0 0.0
    %1069 = vmatpush2.msra.mxu0 0.0
    %1070 = vmatprep.subr.mxu0 0.0
    %1071 = vmatpush2.msra.mxu0 0.0
    %1072 = vmatprep.subr.mxu0 0.0
    %1073 = vmatpush2.msra.mxu0 0.0
    %1074 = vmatprep.subr.mxu0 0.0
    %1075 = vmatpush2.msra.mxu0 0.0
    %1076 = vmatprep.subr.mxu0 0.0
    %1077 = vmatpush2.msra.mxu0 0.0
    %1078 = vmatprep.subr.mxu0 0.0
    %1079 = vmatpush2.msra.mxu0 0.0
    %1080 = vmatprep.subr.mxu0 0.0
    %1081 = vmatpush2.msra.mxu0 0.0
    %1082 = vmatprep.subr.mxu0 0.0
    %1083 = vmatpush2.msra.mxu0 0.0
    %1084 = vmatprep.subr.mxu0 0.0
    %1085 = vmatpush2.msra.mxu0 0.0
    %1086 = vmatprep.subr.mxu0 0.0
    %1087 = vmatpush2.msra.mxu0 0.0
    %1088 = vmatprep.subr.mxu0 0.0
    %1089 = vmatpush2.msra.mxu0 0.0
    %1090 = vmatprep.subr.mxu0 0.0
    %1091 = vmatpush2.msra.mxu0 0.0
    %1092 = vmatprep.mubr.f32.mxu0 0.0
    %1093 = vmatmul.mubr.f32.gmra.mxu0 %v1017
    %v1094 = vpop.f32.mrf.mxu0
    %v1095 = vadd.f32 %v998, %v1094
    %v1096 = vpop.f32.mrf.mxu0
    %1097 = vmatprep.mubr.f32.mxu0 0.0
    %1098 = vmatmul.mubr.f32.gmra.mxu0 %v1020
    %v1099 = vpop.f32.mrf.mxu0
    %v1100 = vadd.f32 %v1003, %v1099
    %v1101 = vpop.f32.mrf.mxu0
    %1102 = vmatprep.mubr.f32.mxu0 0.0
    %1103 = vmatmul.mubr.f32.gmra.mxu0 %v1023
    %v1104 = vpop.f32.mrf.mxu0
    %v1105 = vadd.f32 %v1008, %v1104
    %v1106 = vpop.f32.mrf.mxu0
    %1107 = vmatprep.mubr.f32.mxu0 0.0
    %1108 = vmatmul.mubr.f32.gmra.mxu0 %v1026
    %v1109 = vpop.f32.mrf.mxu0
    %v1110 = vadd.f32 %v1013, %v1109
    %v1111 = vpop.f32.mrf.mxu0
    %1112 = vdwg.mxu0
    %s1113 = scalar_lea.vmem %s0, 62
    %v1114 = vld [vmem:[%s1113] ss:$2 sm:$0xff]
    %s1115 = scalar_lea.vmem %s0, 78
    %v1116 = vld [vmem:[%s1115] ss:$2 sm:$0xff]
    %s1117 = scalar_lea.vmem %s0, 94
    %v1118 = vld [vmem:[%s1117] ss:$2 sm:$0xff]
    %s1119 = scalar_lea.vmem %s0, 110
    %v1120 = vld [vmem:[%s1119] ss:$2 sm:$0x7]
    %v1122 = vsel %vm79, %v1114, 0
    %v1125 = vsel %vm79, %v1116, 0
    %v1128 = vsel %vm79, %v1118, 0
    %v1131 = vsel %vm79, %v1120, 0
    %1133 = vmatprep.subr.mxu0 0.0
    %1134 = vmatpush1.msra.mxu0 0.0
    %1135 = vmatprep.subr.mxu0 0.0
    %1136 = vmatpush1.msra.mxu0 0.0
    %1137 = vmatprep.subr.mxu0 0.0
    %1138 = vmatpush1.msra.mxu0 0.0
    %1139 = vmatprep.subr.mxu0 0.0
    %1140 = vmatpush1.msra.mxu0 0.0
    %1141 = vmatprep.subr.mxu0 0.0
    %1142 = vmatpush1.msra.mxu0 0.0
    %1143 = vmatprep.subr.mxu0 0.0
    %1144 = vmatpush1.msra.mxu0 0.0
    %1145 = vmatprep.subr.mxu0 0.0
    %1146 = vmatpush1.msra.mxu0 0.0
    %1147 = vmatprep.subr.mxu0 0.0
    %1148 = vmatpush1.msra.mxu0 0.0
    %1149 = vmatprep.subr.mxu0 0.0
    %1150 = vmatpush1.msra.mxu0 0.0
    %1151 = vmatprep.subr.mxu0 0.0
    %1152 = vmatpush1.msra.mxu0 0.0
    %1153 = vmatprep.subr.mxu0 0.0
    %1154 = vmatpush1.msra.mxu0 0.0
    %1155 = vmatprep.subr.mxu0 0.0
    %1156 = vmatpush1.msra.mxu0 0.0
    %1157 = vmatprep.subr.mxu0 0.0
    %1158 = vmatpush1.msra.mxu0 0.0
    %1159 = vmatprep.subr.mxu0 0.0
    %1160 = vmatpush1.msra.mxu0 0.0
    %1161 = vmatprep.subr.mxu0 0.0
    %1162 = vmatpush1.msra.mxu0 0.0
    %1163 = vmatprep.subr.mxu0 0.0
    %1164 = vmatpush1.msra.mxu0 %v304
    %1165 = vmatprep.subr.mxu0 0.0
    %1166 = vmatpush2.msra.mxu0 0.0
    %1167 = vmatprep.subr.mxu0 0.0
    %1168 = vmatpush2.msra.mxu0 0.0
    %1169 = vmatprep.subr.mxu0 0.0
    %1170 = vmatpush2.msra.mxu0 0.0
    %1171 = vmatprep.subr.mxu0 0.0
    %1172 = vmatpush2.msra.mxu0 0.0
    %1173 = vmatprep.subr.mxu0 0.0
    %1174 = vmatpush2.msra.mxu0 0.0
    %1175 = vmatprep.subr.mxu0 0.0
    %1176 = vmatpush2.msra.mxu0 0.0
    %1177 = vmatprep.subr.mxu0 0.0
    %1178 = vmatpush2.msra.mxu0 0.0
    %1179 = vmatprep.subr.mxu0 0.0
    %1180 = vmatpush2.msra.mxu0 0.0
    %1181 = vmatprep.subr.mxu0 0.0
    %1182 = vmatpush2.msra.mxu0 0.0
    %1183 = vmatprep.subr.mxu0 0.0
    %1184 = vmatpush2.msra.mxu0 0.0
    %1185 = vmatprep.subr.mxu0 0.0
    %1186 = vmatpush2.msra.mxu0 0.0
    %1187 = vmatprep.subr.mxu0 0.0
    %1188 = vmatpush2.msra.mxu0 0.0
    %1189 = vmatprep.subr.mxu0 0.0
    %1190 = vmatpush2.msra.mxu0 0.0
    %1191 = vmatprep.subr.mxu0 0.0
    %1192 = vmatpush2.msra.mxu0 0.0
    %1193 = vmatprep.subr.mxu0 0.0
    %1194 = vmatpush2.msra.mxu0 0.0
    %1195 = vmatprep.subr.mxu0 0.0
    %1196 = vmatpush2.msra.mxu0 0.0
    %1197 = vmatprep.mubr.f32.mxu0 0.0
    %1198 = vmatmul.mubr.f32.gmra.mxu0 %v1122
    %v1199 = vpop.f32.mrf.mxu0
    %v1200 = vadd.f32 0.0, %v1199
    %v1201 = vpop.f32.mrf.mxu0
    %1202 = vmatprep.mubr.f32.mxu0 0.0
    %1203 = vmatmul.mubr.f32.gmra.mxu0 %v1125
    %v1204 = vpop.f32.mrf.mxu0
    %v1205 = vadd.f32 0.0, %v1204
    %v1206 = vpop.f32.mrf.mxu0
    %1207 = vmatprep.mubr.f32.mxu0 0.0
    %1208 = vmatmul.mubr.f32.gmra.mxu0 %v1128
    %v1209 = vpop.f32.mrf.mxu0
    %v1210 = vadd.f32 0.0, %v1209
    %v1211 = vpop.f32.mrf.mxu0
    %1212 = vmatprep.mubr.f32.mxu0 0.0
    %1213 = vmatmul.mubr.f32.gmra.mxu0 %v1131
    %v1214 = vpop.f32.mrf.mxu0
    %v1215 = vadd.f32 0.0, %v1214
    %v1216 = vpop.f32.mrf.mxu0
    %1217 = vdwg.mxu0
    %v1218 = vadd.f32 %v1095, %v1200
    %v1219 = vadd.f32 %v1100, %v1205
    %v1220 = vadd.f32 %v1105, %v1210
    %v1221 = vadd.f32 %v1110, %v1215
    %s1222 = scalar_lea.vmem %s0, 63
    %v1223 = vld [vmem:[%s1222] ss:$2 sm:$0xff]
    %s1224 = scalar_lea.vmem %s0, 79
    %v1225 = vld [vmem:[%s1224] ss:$2 sm:$0xff]
    %s1226 = scalar_lea.vmem %s0, 95
    %v1227 = vld [vmem:[%s1226] ss:$2 sm:$0xff]
    %s1228 = scalar_lea.vmem %s0, 111
    %v1229 = vld [vmem:[%s1228] ss:$2 sm:$0x7]
    %v1231 = vsel %vm79, %v1223, 0
    %v1234 = vsel %vm79, %v1225, 0
    %v1237 = vsel %vm79, %v1227, 0
    %v1240 = vsel %vm79, %v1229, 0
    %1242 = vmatprep.subr.mxu0 0.0
    %1243 = vmatpush1.msra.mxu0 0.0
    %1244 = vmatprep.subr.mxu0 0.0
    %1245 = vmatpush1.msra.mxu0 0.0
    %1246 = vmatprep.subr.mxu0 0.0
    %1247 = vmatpush1.msra.mxu0 0.0
    %1248 = vmatprep.subr.mxu0 0.0
    %1249 = vmatpush1.msra.mxu0 0.0
    %1250 = vmatprep.subr.mxu0 0.0
    %1251 = vmatpush1.msra.mxu0 0.0
    %1252 = vmatprep.subr.mxu0 0.0
    %1253 = vmatpush1.msra.mxu0 0.0
    %1254 = vmatprep.subr.mxu0 0.0
    %1255 = vmatpush1.msra.mxu0 0.0
    %1256 = vmatprep.subr.mxu0 0.0
    %1257 = vmatpush1.msra.mxu0 0.0
    %1258 = vmatprep.subr.mxu0 0.0
    %1259 = vmatpush1.msra.mxu0 0.0
    %1260 = vmatprep.subr.mxu0 0.0
    %1261 = vmatpush1.msra.mxu0 0.0
    %1262 = vmatprep.subr.mxu0 0.0
    %1263 = vmatpush1.msra.mxu0 0.0
    %1264 = vmatprep.subr.mxu0 0.0
    %1265 = vmatpush1.msra.mxu0 0.0
    %1266 = vmatprep.subr.mxu0 0.0
    %1267 = vmatpush1.msra.mxu0 0.0
    %1268 = vmatprep.subr.mxu0 0.0
    %1269 = vmatpush1.msra.mxu0 0.0
    %1270 = vmatprep.subr.mxu0 0.0
    %1271 = vmatpush1.msra.mxu0 0.0
    %1272 = vmatprep.subr.mxu0 0.0
    %1273 = vmatpush1.msra.mxu0 %v418
    %1274 = vmatprep.subr.mxu0 0.0
    %1275 = vmatpush2.msra.mxu0 0.0
    %1276 = vmatprep.subr.mxu0 0.0
    %1277 = vmatpush2.msra.mxu0 0.0
    %1278 = vmatprep.subr.mxu0 0.0
    %1279 = vmatpush2.msra.mxu0 0.0
    %1280 = vmatprep.subr.mxu0 0.0
    %1281 = vmatpush2.msra.mxu0 0.0
    %1282 = vmatprep.subr.mxu0 0.0
    %1283 = vmatpush2.msra.mxu0 0.0
    %1284 = vmatprep.subr.mxu0 0.0
    %1285 = vmatpush2.msra.mxu0 0.0
    %1286 = vmatprep.subr.mxu0 0.0
    %1287 = vmatpush2.msra.mxu0 0.0
    %1288 = vmatprep.subr.mxu0 0.0
    %1289 = vmatpush2.msra.mxu0 0.0
    %1290 = vmatprep.subr.mxu0 0.0
    %1291 = vmatpush2.msra.mxu0 0.0
    %1292 = vmatprep.subr.mxu0 0.0
    %1293 = vmatpush2.msra.mxu0 0.0
    %1294 = vmatprep.subr.mxu0 0.0
    %1295 = vmatpush2.msra.mxu0 0.0
    %1296 = vmatprep.subr.mxu0 0.0
    %1297 = vmatpush2.msra.mxu0 0.0
    %1298 = vmatprep.subr.mxu0 0.0
    %1299 = vmatpush2.msra.mxu0 0.0
    %1300 = vmatprep.subr.mxu0 0.0
    %1301 = vmatpush2.msra.mxu0 0.0
    %1302 = vmatprep.subr.mxu0 0.0
    %1303 = vmatpush2.msra.mxu0 0.0
    %1304 = vmatprep.subr.mxu0 0.0
    %1305 = vmatpush2.msra.mxu0 0.0
    %1306 = vmatprep.mubr.f32.mxu0 0.0
    %1307 = vmatmul.mubr.f32.gmra.mxu0 %v1231
    %v1308 = vpop.f32.mrf.mxu0
    %v1309 = vadd.f32 0.0, %v1308
    %v1310 = vpop.f32.mrf.mxu0
    %1311 = vmatprep.mubr.f32.mxu0 0.0
    %1312 = vmatmul.mubr.f32.gmra.mxu0 %v1234
    %v1313 = vpop.f32.mrf.mxu0
    %v1314 = vadd.f32 0.0, %v1313
    %v1315 = vpop.f32.mrf.mxu0
    %1316 = vmatprep.mubr.f32.mxu0 0.0
    %1317 = vmatmul.mubr.f32.gmra.mxu0 %v1237
    %v1318 = vpop.f32.mrf.mxu0
    %v1319 = vadd.f32 0.0, %v1318
    %v1320 = vpop.f32.mrf.mxu0
    %1321 = vmatprep.mubr.f32.mxu0 0.0
    %1322 = vmatmul.mubr.f32.gmra.mxu0 %v1240
    %v1323 = vpop.f32.mrf.mxu0
    %v1324 = vadd.f32 0.0, %v1323
    %v1325 = vpop.f32.mrf.mxu0
    %1326 = vdwg.mxu0
    %v1327 = vadd.f32 %v1218, %v1309
    %v1328 = vadd.f32 %v1219, %v1314
    %v1329 = vadd.f32 %v1220, %v1319
    %v1330 = vadd.f32 %v1221, %v1324
    %s1331 = scalar_lea.vmem %s0, 64
    %v1332 = vld [vmem:[%s1331] ss:$2 sm:$0xff]
    %s1333 = scalar_lea.vmem %s0, 80
    %v1334 = vld [vmem:[%s1333] ss:$2 sm:$0xff]
    %s1335 = scalar_lea.vmem %s0, 96
    %v1336 = vld [vmem:[%s1335] ss:$2 sm:$0xff]
    %s1337 = scalar_lea.vmem %s0, 112
    %v1338 = vld [vmem:[%s1337] ss:$2 sm:$0x7]
    %v1340 = vsel %vm79, %v1332, 0
    %v1343 = vsel %vm79, %v1334, 0
    %v1346 = vsel %vm79, %v1336, 0
    %v1349 = vsel %vm79, %v1338, 0
    %1351 = vmatprep.subr.mxu0 0.0
    %1352 = vmatpush1.msra.mxu0 0.0
    %1353 = vmatprep.subr.mxu0 0.0
    %1354 = vmatpush1.msra.mxu0 0.0
    %1355 = vmatprep.subr.mxu0 0.0
    %1356 = vmatpush1.msra.mxu0 0.0
    %1357 = vmatprep.subr.mxu0 0.0
    %1358 = vmatpush1.msra.mxu0 0.0
    %1359 = vmatprep.subr.mxu0 0.0
    %1360 = vmatpush1.msra.mxu0 0.0
    %1361 = vmatprep.subr.mxu0 0.0
    %1362 = vmatpush1.msra.mxu0 0.0
    %1363 = vmatprep.subr.mxu0 0.0
    %1364 = vmatpush1.msra.mxu0 0.0
    %1365 = vmatprep.subr.mxu0 0.0
    %1366 = vmatpush1.msra.mxu0 0.0
    %1367 = vmatprep.subr.mxu0 0.0
    %1368 = vmatpush1.msra.mxu0 0.0
    %1369 = vmatprep.subr.mxu0 0.0
    %1370 = vmatpush1.msra.mxu0 0.0
    %1371 = vmatprep.subr.mxu0 0.0
    %1372 = vmatpush1.msra.mxu0 0.0
    %1373 = vmatprep.subr.mxu0 0.0
    %1374 = vmatpush1.msra.mxu0 0.0
    %1375 = vmatprep.subr.mxu0 0.0
    %1376 = vmatpush1.msra.mxu0 0.0
    %1377 = vmatprep.subr.mxu0 0.0
    %1378 = vmatpush1.msra.mxu0 0.0
    %1379 = vmatprep.subr.mxu0 0.0
    %1380 = vmatpush1.msra.mxu0 0.0
    %1381 = vmatprep.subr.mxu0 0.0
    %1382 = vmatpush1.msra.mxu0 %v532
    %1383 = vmatprep.subr.mxu0 0.0
    %1384 = vmatpush2.msra.mxu0 0.0
    %1385 = vmatprep.subr.mxu0 0.0
    %1386 = vmatpush2.msra.mxu0 0.0
    %1387 = vmatprep.subr.mxu0 0.0
    %1388 = vmatpush2.msra.mxu0 0.0
    %1389 = vmatprep.subr.mxu0 0.0
    %1390 = vmatpush2.msra.mxu0 0.0
    %1391 = vmatprep.subr.mxu0 0.0
    %1392 = vmatpush2.msra.mxu0 0.0
    %1393 = vmatprep.subr.mxu0 0.0
    %1394 = vmatpush2.msra.mxu0 0.0
    %1395 = vmatprep.subr.mxu0 0.0
    %1396 = vmatpush2.msra.mxu0 0.0
    %1397 = vmatprep.subr.mxu0 0.0
    %1398 = vmatpush2.msra.mxu0 0.0
    %1399 = vmatprep.subr.mxu0 0.0
    %1400 = vmatpush2.msra.mxu0 0.0
    %1401 = vmatprep.subr.mxu0 0.0
    %1402 = vmatpush2.msra.mxu0 0.0
    %1403 = vmatprep.subr.mxu0 0.0
    %1404 = vmatpush2.msra.mxu0 0.0
    %1405 = vmatprep.subr.mxu0 0.0
    %1406 = vmatpush2.msra.mxu0 0.0
    %1407 = vmatprep.subr.mxu0 0.0
    %1408 = vmatpush2.msra.mxu0 0.0
    %1409 = vmatprep.subr.mxu0 0.0
    %1410 = vmatpush2.msra.mxu0 0.0
    %1411 = vmatprep.subr.mxu0 0.0
    %1412 = vmatpush2.msra.mxu0 0.0
    %1413 = vmatprep.subr.mxu0 0.0
    %1414 = vmatpush2.msra.mxu0 0.0
    %1415 = vmatprep.mubr.f32.mxu0 0.0
    %1416 = vmatmul.mubr.f32.gmra.mxu0 %v1340
    %v1417 = vpop.f32.mrf.mxu0
    %v1418 = vadd.f32 0.0, %v1417
    %v1419 = vpop.f32.mrf.mxu0
    %1420 = vmatprep.mubr.f32.mxu0 0.0
    %1421 = vmatmul.mubr.f32.gmra.mxu0 %v1343
    %v1422 = vpop.f32.mrf.mxu0
    %v1423 = vadd.f32 0.0, %v1422
    %v1424 = vpop.f32.mrf.mxu0
    %1425 = vmatprep.mubr.f32.mxu0 0.0
    %1426 = vmatmul.mubr.f32.gmra.mxu0 %v1346
    %v1427 = vpop.f32.mrf.mxu0
    %v1428 = vadd.f32 0.0, %v1427
    %v1429 = vpop.f32.mrf.mxu0
    %1430 = vmatprep.mubr.f32.mxu0 0.0
    %1431 = vmatmul.mubr.f32.gmra.mxu0 %v1349
    %v1432 = vpop.f32.mrf.mxu0
    %v1433 = vadd.f32 0.0, %v1432
    %v1434 = vpop.f32.mrf.mxu0
    %1435 = vdwg.mxu0
    %v1436 = vadd.f32 %v1327, %v1418
    %v1437 = vadd.f32 %v1328, %v1423
    %v1438 = vadd.f32 %v1329, %v1428
    %v1439 = vadd.f32 %v1330, %v1433
    %s1440 = scalar_lea.vmem %s0, 65
    %v1441 = vld [vmem:[%s1440] ss:$2 sm:$0xff]
    %s1442 = scalar_lea.vmem %s0, 81
    %v1443 = vld [vmem:[%s1442] ss:$2 sm:$0xff]
    %s1444 = scalar_lea.vmem %s0, 97
    %v1445 = vld [vmem:[%s1444] ss:$2 sm:$0xff]
    %s1446 = scalar_lea.vmem %s0, 113
    %v1447 = vld [vmem:[%s1446] ss:$2 sm:$0x7]
    %v1449 = vsel %vm79, %v1441, 0
    %v1452 = vsel %vm79, %v1443, 0
    %v1455 = vsel %vm79, %v1445, 0
    %v1458 = vsel %vm79, %v1447, 0
    %1460 = vmatprep.subr.mxu0 0.0
    %1461 = vmatpush1.msra.mxu0 0.0
    %1462 = vmatprep.subr.mxu0 0.0
    %1463 = vmatpush1.msra.mxu0 0.0
    %1464 = vmatprep.subr.mxu0 0.0
    %1465 = vmatpush1.msra.mxu0 0.0
    %1466 = vmatprep.subr.mxu0 0.0
    %1467 = vmatpush1.msra.mxu0 0.0
    %1468 = vmatprep.subr.mxu0 0.0
    %1469 = vmatpush1.msra.mxu0 0.0
    %1470 = vmatprep.subr.mxu0 0.0
    %1471 = vmatpush1.msra.mxu0 0.0
    %1472 = vmatprep.subr.mxu0 0.0
    %1473 = vmatpush1.msra.mxu0 0.0
    %1474 = vmatprep.subr.mxu0 0.0
    %1475 = vmatpush1.msra.mxu0 0.0
    %1476 = vmatprep.subr.mxu0 0.0
    %1477 = vmatpush1.msra.mxu0 0.0
    %1478 = vmatprep.subr.mxu0 0.0
    %1479 = vmatpush1.msra.mxu0 0.0
    %1480 = vmatprep.subr.mxu0 0.0
    %1481 = vmatpush1.msra.mxu0 0.0
    %1482 = vmatprep.subr.mxu0 0.0
    %1483 = vmatpush1.msra.mxu0 0.0
    %1484 = vmatprep.subr.mxu0 0.0
    %1485 = vmatpush1.msra.mxu0 0.0
    %1486 = vmatprep.subr.mxu0 0.0
    %1487 = vmatpush1.msra.mxu0 0.0
    %1488 = vmatprep.subr.mxu0 0.0
    %1489 = vmatpush1.msra.mxu0 0.0
    %1490 = vmatprep.subr.mxu0 0.0
    %1491 = vmatpush1.msra.mxu0 %v646
    %1492 = vmatprep.subr.mxu0 0.0
    %1493 = vmatpush2.msra.mxu0 0.0
    %1494 = vmatprep.subr.mxu0 0.0
    %1495 = vmatpush2.msra.mxu0 0.0
    %1496 = vmatprep.subr.mxu0 0.0
    %1497 = vmatpush2.msra.mxu0 0.0
    %1498 = vmatprep.subr.mxu0 0.0
    %1499 = vmatpush2.msra.mxu0 0.0
    %1500 = vmatprep.subr.mxu0 0.0
    %1501 = vmatpush2.msra.mxu0 0.0
    %1502 = vmatprep.subr.mxu0 0.0
    %1503 = vmatpush2.msra.mxu0 0.0
    %1504 = vmatprep.subr.mxu0 0.0
    %1505 = vmatpush2.msra.mxu0 0.0
    %1506 = vmatprep.subr.mxu0 0.0
    %1507 = vmatpush2.msra.mxu0 0.0
    %1508 = vmatprep.subr.mxu0 0.0
    %1509 = vmatpush2.msra.mxu0 0.0
    %1510 = vmatprep.subr.mxu0 0.0
    %1511 = vmatpush2.msra.mxu0 0.0
    %1512 = vmatprep.subr.mxu0 0.0
    %1513 = vmatpush2.msra.mxu0 0.0
    %1514 = vmatprep.subr.mxu0 0.0
    %1515 = vmatpush2.msra.mxu0 0.0
    %1516 = vmatprep.subr.mxu0 0.0
    %1517 = vmatpush2.msra.mxu0 0.0
    %1518 = vmatprep.subr.mxu0 0.0
    %1519 = vmatpush2.msra.mxu0 0.0
    %1520 = vmatprep.subr.mxu0 0.0
    %1521 = vmatpush2.msra.mxu0 0.0
    %1522 = vmatprep.subr.mxu0 0.0
    %1523 = vmatpush2.msra.mxu0 0.0
    %1524 = vmatprep.mubr.f32.mxu0 0.0
    %1525 = vmatmul.mubr.f32.gmra.mxu0 %v1449
    %v1526 = vpop.f32.mrf.mxu0
    %v1527 = vadd.f32 0.0, %v1526
    %v1528 = vpop.f32.mrf.mxu0
    %1529 = vmatprep.mubr.f32.mxu0 0.0
    %1530 = vmatmul.mubr.f32.gmra.mxu0 %v1452
    %v1531 = vpop.f32.mrf.mxu0
    %v1532 = vadd.f32 0.0, %v1531
    %v1533 = vpop.f32.mrf.mxu0
    %1534 = vmatprep.mubr.f32.mxu0 0.0
    %1535 = vmatmul.mubr.f32.gmra.mxu0 %v1455
    %v1536 = vpop.f32.mrf.mxu0
    %v1537 = vadd.f32 0.0, %v1536
    %v1538 = vpop.f32.mrf.mxu0
    %1539 = vmatprep.mubr.f32.mxu0 0.0
    %1540 = vmatmul.mubr.f32.gmra.mxu0 %v1458
    %v1541 = vpop.f32.mrf.mxu0
    %v1542 = vadd.f32 0.0, %v1541
    %v1543 = vpop.f32.mrf.mxu0
    %1544 = vdwg.mxu0
    %v1545 = vadd.f32 %v1436, %v1527
    %v1546 = vadd.f32 %v1437, %v1532
    %v1547 = vadd.f32 %v1438, %v1537
    %v1548 = vadd.f32 %v1439, %v1542
    %s1549 = scalar_lea.vmem %s0, 66
    %v1550 = vld [vmem:[%s1549] ss:$2 sm:$0xff]
    %s1551 = scalar_lea.vmem %s0, 82
    %v1552 = vld [vmem:[%s1551] ss:$2 sm:$0xff]
    %s1553 = scalar_lea.vmem %s0, 98
    %v1554 = vld [vmem:[%s1553] ss:$2 sm:$0xff]
    %s1555 = scalar_lea.vmem %s0, 114
    %v1556 = vld [vmem:[%s1555] ss:$2 sm:$0x7]
    %v1558 = vsel %vm79, %v1550, 0
    %v1561 = vsel %vm79, %v1552, 0
    %v1564 = vsel %vm79, %v1554, 0
    %v1567 = vsel %vm79, %v1556, 0
    %1569 = vmatprep.subr.mxu0 0.0
    %1570 = vmatpush1.msra.mxu0 0.0
    %1571 = vmatprep.subr.mxu0 0.0
    %1572 = vmatpush1.msra.mxu0 0.0
    %1573 = vmatprep.subr.mxu0 0.0
    %1574 = vmatpush1.msra.mxu0 0.0
    %1575 = vmatprep.subr.mxu0 0.0
    %1576 = vmatpush1.msra.mxu0 0.0
    %1577 = vmatprep.subr.mxu0 0.0
    %1578 = vmatpush1.msra.mxu0 0.0
    %1579 = vmatprep.subr.mxu0 0.0
    %1580 = vmatpush1.msra.mxu0 0.0
    %1581 = vmatprep.subr.mxu0 0.0
    %1582 = vmatpush1.msra.mxu0 0.0
    %1583 = vmatprep.subr.mxu0 0.0
    %1584 = vmatpush1.msra.mxu0 0.0
    %1585 = vmatprep.subr.mxu0 0.0
    %1586 = vmatpush1.msra.mxu0 0.0
    %1587 = vmatprep.subr.mxu0 0.0
    %1588 = vmatpush1.msra.mxu0 0.0
    %1589 = vmatprep.subr.mxu0 0.0
    %1590 = vmatpush1.msra.mxu0 0.0
    %1591 = vmatprep.subr.mxu0 0.0
    %1592 = vmatpush1.msra.mxu0 0.0
    %1593 = vmatprep.subr.mxu0 0.0
    %1594 = vmatpush1.msra.mxu0 0.0
    %1595 = vmatprep.subr.mxu0 0.0
    %1596 = vmatpush1.msra.mxu0 0.0
    %1597 = vmatprep.subr.mxu0 0.0
    %1598 = vmatpush1.msra.mxu0 0.0
    %1599 = vmatprep.subr.mxu0 0.0
    %1600 = vmatpush1.msra.mxu0 %v760
    %1601 = vmatprep.subr.mxu0 0.0
    %1602 = vmatpush2.msra.mxu0 0.0
    %1603 = vmatprep.subr.mxu0 0.0
    %1604 = vmatpush2.msra.mxu0 0.0
    %1605 = vmatprep.subr.mxu0 0.0
    %1606 = vmatpush2.msra.mxu0 0.0
    %1607 = vmatprep.subr.mxu0 0.0
    %1608 = vmatpush2.msra.mxu0 0.0
    %1609 = vmatprep.subr.mxu0 0.0
    %1610 = vmatpush2.msra.mxu0 0.0
    %1611 = vmatprep.subr.mxu0 0.0
    %1612 = vmatpush2.msra.mxu0 0.0
    %1613 = vmatprep.subr.mxu0 0.0
    %1614 = vmatpush2.msra.mxu0 0.0
    %1615 = vmatprep.subr.mxu0 0.0
    %1616 = vmatpush2.msra.mxu0 0.0
    %1617 = vmatprep.subr.mxu0 0.0
    %1618 = vmatpush2.msra.mxu0 0.0
    %1619 = vmatprep.subr.mxu0 0.0
    %1620 = vmatpush2.msra.mxu0 0.0
    %1621 = vmatprep.subr.mxu0 0.0
    %1622 = vmatpush2.msra.mxu0 0.0
    %1623 = vmatprep.subr.mxu0 0.0
    %1624 = vmatpush2.msra.mxu0 0.0
    %1625 = vmatprep.subr.mxu0 0.0
    %1626 = vmatpush2.msra.mxu0 0.0
    %1627 = vmatprep.subr.mxu0 0.0
    %1628 = vmatpush2.msra.mxu0 0.0
    %1629 = vmatprep.subr.mxu0 0.0
    %1630 = vmatpush2.msra.mxu0 0.0
    %1631 = vmatprep.subr.mxu0 0.0
    %1632 = vmatpush2.msra.mxu0 0.0
    %1633 = vmatprep.mubr.f32.mxu0 0.0
    %1634 = vmatmul.mubr.f32.gmra.mxu0 %v1558
    %v1635 = vpop.f32.mrf.mxu0
    %v1636 = vadd.f32 0.0, %v1635
    %v1637 = vpop.f32.mrf.mxu0
    %1638 = vmatprep.mubr.f32.mxu0 0.0
    %1639 = vmatmul.mubr.f32.gmra.mxu0 %v1561
    %v1640 = vpop.f32.mrf.mxu0
    %v1641 = vadd.f32 0.0, %v1640
    %v1642 = vpop.f32.mrf.mxu0
    %1643 = vmatprep.mubr.f32.mxu0 0.0
    %1644 = vmatmul.mubr.f32.gmra.mxu0 %v1564
    %v1645 = vpop.f32.mrf.mxu0
    %v1646 = vadd.f32 0.0, %v1645
    %v1647 = vpop.f32.mrf.mxu0
    %1648 = vmatprep.mubr.f32.mxu0 0.0
    %1649 = vmatmul.mubr.f32.gmra.mxu0 %v1567
    %v1650 = vpop.f32.mrf.mxu0
    %v1651 = vadd.f32 0.0, %v1650
    %v1652 = vpop.f32.mrf.mxu0
    %1653 = vdwg.mxu0
    %v1654 = vadd.f32 %v1545, %v1636
    %v1655 = vadd.f32 %v1546, %v1641
    %v1656 = vadd.f32 %v1547, %v1646
    %v1657 = vadd.f32 %v1548, %v1651
    %v1658 = vadd.f32 %v1654, %v854
    %v1659 = vadd.f32 %v1655, %v854
    %v1660 = vadd.f32 %v1656, %v854
    %v1661 = vadd.f32 %v1657, %v854
    %vm1662 = vcmp.ge.f32.partialorder %v1658, 0.0
    %vm1663 = vcmp.ge.f32.partialorder %v1659, 0.0
    %vm1664 = vcmp.ge.f32.partialorder %v1660, 0.0
    %vm1665 = vcmp.ge.f32.partialorder %v1661, 0.0
    %v1666 = vmul.f32 %v1658, 0.01
    %v1667 = vmul.f32 %v1659, 0.01
    %v1668 = vmul.f32 %v1660, 0.01
    %v1669 = vmul.f32 %v1661, 0.01
    %v1670 = vsel %vm1662, %v1658, %v1666
    %v1671 = vsel %vm1663, %v1659, %v1667
    %v1672 = vsel %vm1664, %v1660, %v1668
    %v1673 = vsel %vm1665, %v1661, %v1669
    %v1674 = vsel %vm871, %v1670, 0.0
    %v1675 = vsel %vm871, %v1671, 0.0
    %v1676 = vadd.f32 %v1674, %v1675
    %v1677 = vsel %vm871, %v1672, 0.0
    %v1678 = vadd.f32 %v1676, %v1677
    %v1679 = vsel %vm877, %v1673, 0.0
    %v1680 = vadd.f32 %v1678, %v1679
    %v1681 = vrot.slane %v1680, 4
    %v1682 = vadd.f32 %v1680, %v1681
    %v1683 = vrot.slane %v1682, 2
    %v1684 = vadd.f32 %v1682, %v1683
    %v1685 = vrot.slane %v1684, 1
    %v1686 = vadd.f32 %v1684, %v1685
    %v1687 = vmul.f32 %v1670, %v1670
    %v1688 = vmul.f32 %v1671, %v1671
    %v1689 = vmul.f32 %v1672, %v1672
    %v1690 = vmul.f32 %v1673, %v1673
    %v1691 = vsel %vm871, %v1687, 0.0
    %v1692 = vsel %vm871, %v1688, 0.0
    %v1693 = vadd.f32 %v1691, %v1692
    %v1694 = vsel %vm871, %v1689, 0.0
    %v1695 = vadd.f32 %v1693, %v1694
    %v1696 = vsel %vm877, %v1690, 0.0
    %v1697 = vadd.f32 %v1695, %v1696
    %v1698 = vrot.slane %v1697, 4
    %v1699 = vadd.f32 %v1697, %v1698
    %v1700 = vrot.slane %v1699, 2
    %v1701 = vadd.f32 %v1699, %v1700
    %v1702 = vrot.slane %v1701, 1
    %v1703 = vadd.f32 %v1701, %v1702
    %v1704 = vadd.f32 %v885, %v1686
    %v1705 = vadd.f32 %v902, %v1703
    %v1706 = vrcp.pop 54.0
    %v1707 = vmul.f32 %v1704, %v1706
    %v1708 = vmul.f32 %v1705, %v1706
    %v1709 = vmul.f32 %v1707, %v1707
    %v1710 = vsub.f32 %v1708, %v1709
    %v1711 = vmax.f32 %v1710, 0.0
    %v1712 = vadd.f32 %v1711, 1e-05
    %v1713 = vrsqrt.pop %v1712
    %v1714 = vmul.f32 %v59, %v1713
    %v1715 = vmul.f32 %v1707, %v1714
    %v1716 = vsub.f32 %v60, %v1715
    %v1717 = vlaneseq
    %v1718 = vshrl.u32 %v1717, 7
    %v1719 = vsub.s32 0, %v1718
    %v1720 = vrot.slane %v1714, %v1719
    %v1721 = vmul.f32 %v867, %v1720
    %v1722 = vmul.f32 %v868, %v1720
    %v1723 = vmul.f32 %v869, %v1720
    %v1724 = vmul.f32 %v870, %v1720
    %v1725 = vlaneseq
    %v1726 = vshrl.u32 %v1725, 7
    %v1727 = vsub.s32 0, %v1726
    %v1728 = vrot.slane %v1716, %v1727
    %v1729 = vadd.f32 %v1721, %v1728
    %v1730 = vadd.f32 %v1722, %v1728
    %v1731 = vadd.f32 %v1723, %v1728
    %v1732 = vadd.f32 %v1724, %v1728
    %1733 = vst.msk [vmem:[#allocation2] sm:$0xff] %vm871, %v1729
    %1734 = vst.msk [vmem:[#allocation2 + $0x8] sm:$0xff] %vm871, %v1730
    %1735 = vst.msk [vmem:[#allocation2 + $0x10] sm:$0xff] %vm871, %v1731
    %1736 = vst.msk [vmem:[#allocation2 + $0x18] sm:$0x7] %vm877, %v1732
    %v1737 = vmul.f32 %v1670, %v1720
    %v1738 = vmul.f32 %v1671, %v1720
    %v1739 = vmul.f32 %v1672, %v1720
    %v1740 = vmul.f32 %v1673, %v1720
    %v1741 = vadd.f32 %v1737, %v1728
    %v1742 = vadd.f32 %v1738, %v1728
    %v1743 = vadd.f32 %v1739, %v1728
    %v1744 = vadd.f32 %v1740, %v1728
    %1745 = vst.msk [vmem:[#allocation2 + $0x1b] sm:$0xff] %vm871, %v1741
    %1746 = vst.msk [vmem:[#allocation2 + $0x23] sm:$0xff] %vm871, %v1742
    %1747 = vst.msk [vmem:[#allocation2 + $0x2b] sm:$0xff] %vm871, %v1743
    %1748 = vst.msk [vmem:[#allocation2 + $0x33] sm:$0x7] %vm877, %v1744
    %s1749 = scalar_lea.vmem %s4, 4
    %v1750 = vld [vmem:[%s1749] sm:$0x1]
    %v1751 = vld [vmem:[%s1749 + $0x1] sm:$0x1]
    %v1752 = vld [vmem:[%s1749 + $0x2] sm:$0x1]
    %v1753 = vld [vmem:[#allocation2] ss:$2 sm:$0xff]
    %s1754 = scalar_lea.vmem [#allocation2], 16
    %v1755 = vld [vmem:[%s1754] ss:$2 sm:$0x7]
    %v1756 = vld [vmem:[#allocation5] sm:$0xff]
    %v1757 = vld [vmem:[#allocation5 + $0x8] sm:$0xff]
    %v1758 = vld [vmem:[#allocation5 + $0x10] sm:$0xff]
    %v1759 = vld [vmem:[#allocation5 + $0x18] sm:$0xff]
    %v1760 = vld [vmem:[#allocation5 + $0x20] sm:$0xff]
    %v1761 = vld [vmem:[#allocation5 + $0x28] sm:$0xff]
    %v1762 = vld [vmem:[#allocation5 + $0x30] sm:$0xff]
    %v1763 = vld [vmem:[#allocation5 + $0x38] sm:$0xff]
    %s1764 = scalar_lea.vmem [#allocation2], 1
    %v1765 = vld [vmem:[%s1764] ss:$2 sm:$0xff]
    %s1766 = scalar_lea.vmem [#allocation2], 17
    %v1767 = vld [vmem:[%s1766] ss:$2 sm:$0x7]
    %s1768 = scalar_lea.vmem [#allocation5], 64
    %v1769 = vld [vmem:[%s1768] sm:$0xff]
    %v1770 = vld [vmem:[%s1768 + $0x8] sm:$0xff]
    %v1771 = vld [vmem:[%s1768 + $0x10] sm:$0xff]
    %v1772 = vld [vmem:[%s1768 + $0x18] sm:$0xff]
    %v1773 = vld [vmem:[%s1768 + $0x20] sm:$0xff]
    %v1774 = vld [vmem:[%s1768 + $0x28] sm:$0xff]
    %v1775 = vld [vmem:[%s1768 + $0x30] sm:$0xff]
    %v1776 = vld [vmem:[%s1768 + $0x38] sm:$0xff]
    %v1778 = vsel %vm871, %v1765, 0
    %v1781 = vsel %vm871, %v1767, 0
    %1783 = vmatprep.subr.mxu0 0.0
    %1784 = vmatpush1.msra.mxu0 0.0
    %1785 = vmatprep.subr.mxu0 0.0
    %1786 = vmatpush1.msra.mxu0 0.0
    %1787 = vmatprep.subr.mxu0 0.0
    %1788 = vmatpush1.msra.mxu0 0.0
    %1789 = vmatprep.subr.mxu0 0.0
    %1790 = vmatpush1.msra.mxu0 0.0
    %1791 = vmatprep.subr.mxu0 0.0
    %1792 = vmatpush1.msra.mxu0 0.0
    %1793 = vmatprep.subr.mxu0 0.0
    %1794 = vmatpush1.msra.mxu0 0.0
    %1795 = vmatprep.subr.mxu0 0.0
    %1796 = vmatpush1.msra.mxu0 0.0
    %1797 = vmatprep.subr.mxu0 0.0
    %1798 = vmatpush1.msra.mxu0 0.0
    %1799 = vmatprep.subr.mxu0 0.0
    %1800 = vmatpush1.msra.mxu0 %v1776
    %1801 = vmatprep.subr.mxu0 0.0
    %1802 = vmatpush1.msra.mxu0 %v1775
    %1803 = vmatprep.subr.mxu0 0.0
    %1804 = vmatpush1.msra.mxu0 %v1774
    %1805 = vmatprep.subr.mxu0 0.0
    %1806 = vmatpush1.msra.mxu0 %v1773
    %1807 = vmatprep.subr.mxu0 0.0
    %1808 = vmatpush1.msra.mxu0 %v1772
    %1809 = vmatprep.subr.mxu0 0.0
    %1810 = vmatpush1.msra.mxu0 %v1771
    %1811 = vmatprep.subr.mxu0 0.0
    %1812 = vmatpush1.msra.mxu0 %v1770
    %1813 = vmatprep.subr.mxu0 0.0
    %1814 = vmatpush1.msra.mxu0 %v1769
    %1815 = vmatprep.subr.mxu0 0.0
    %1816 = vmatpush2.msra.mxu0 0.0
    %1817 = vmatprep.subr.mxu0 0.0
    %1818 = vmatpush2.msra.mxu0 0.0
    %1819 = vmatprep.subr.mxu0 0.0
    %1820 = vmatpush2.msra.mxu0 0.0
    %1821 = vmatprep.subr.mxu0 0.0
    %1822 = vmatpush2.msra.mxu0 0.0
    %1823 = vmatprep.subr.mxu0 0.0
    %1824 = vmatpush2.msra.mxu0 0.0
    %1825 = vmatprep.subr.mxu0 0.0
    %1826 = vmatpush2.msra.mxu0 0.0
    %1827 = vmatprep.subr.mxu0 0.0
    %1828 = vmatpush2.msra.mxu0 0.0
    %1829 = vmatprep.subr.mxu0 0.0
    %1830 = vmatpush2.msra.mxu0 0.0
    %1831 = vmatprep.subr.mxu0 0.0
    %1832 = vmatpush2.msra.mxu0 0.0
    %1833 = vmatprep.subr.mxu0 0.0
    %1834 = vmatpush2.msra.mxu0 0.0
    %1835 = vmatprep.subr.mxu0 0.0
    %1836 = vmatpush2.msra.mxu0 0.0
    %1837 = vmatprep.subr.mxu0 0.0
    %1838 = vmatpush2.msra.mxu0 0.0
    %1839 = vmatprep.subr.mxu0 0.0
    %1840 = vmatpush2.msra.mxu0 0.0
    %1841 = vmatprep.subr.mxu0 0.0
    %1842 = vmatpush2.msra.mxu0 0.0
    %1843 = vmatprep.subr.mxu0 0.0
    %1844 = vmatpush2.msra.mxu0 0.0
    %1845 = vmatprep.subr.mxu0 0.0
    %1846 = vmatpush2.msra.mxu0 0.0
    %1847 = vmatprep.mubr.f32.mxu0 0.0
    %1848 = vmatmul.mubr.f32.gmra.mxu0 %v1778
    %v1849 = vpop.f32.mrf.mxu0
    %v1850 = vadd.f32 0.0, %v1849
    %v1851 = vpop.f32.mrf.mxu0
    %1852 = vmatprep.mubr.f32.mxu0 0.0
    %1853 = vmatmul.mubr.f32.gmra.mxu0 %v1781
    %v1854 = vpop.f32.mrf.mxu0
    %v1855 = vadd.f32 0.0, %v1854
    %v1856 = vpop.f32.mrf.mxu0
    %1857 = vdwg.mxu0
    %v1859 = vsel %vm871, %v1753, 0
    %v1862 = vsel %vm871, %v1755, 0
    %1864 = vmatprep.subr.mxu0 0.0
    %1865 = vmatpush1.msra.mxu0 0.0
    %1866 = vmatprep.subr.mxu0 0.0
    %1867 = vmatpush1.msra.mxu0 0.0
    %1868 = vmatprep.subr.mxu0 0.0
    %1869 = vmatpush1.msra.mxu0 0.0
    %1870 = vmatprep.subr.mxu0 0.0
    %1871 = vmatpush1.msra.mxu0 0.0
    %1872 = vmatprep.subr.mxu0 0.0
    %1873 = vmatpush1.msra.mxu0 0.0
    %1874 = vmatprep.subr.mxu0 0.0
    %1875 = vmatpush1.msra.mxu0 0.0
    %1876 = vmatprep.subr.mxu0 0.0
    %1877 = vmatpush1.msra.mxu0 0.0
    %1878 = vmatprep.subr.mxu0 0.0
    %1879 = vmatpush1.msra.mxu0 0.0
    %1880 = vmatprep.subr.mxu0 0.0
    %1881 = vmatpush1.msra.mxu0 %v1763
    %1882 = vmatprep.subr.mxu0 0.0
    %1883 = vmatpush1.msra.mxu0 %v1762
    %1884 = vmatprep.subr.mxu0 0.0
    %1885 = vmatpush1.msra.mxu0 %v1761
    %1886 = vmatprep.subr.mxu0 0.0
    %1887 = vmatpush1.msra.mxu0 %v1760
    %1888 = vmatprep.subr.mxu0 0.0
    %1889 = vmatpush1.msra.mxu0 %v1759
    %1890 = vmatprep.subr.mxu0 0.0
    %1891 = vmatpush1.msra.mxu0 %v1758
    %1892 = vmatprep.subr.mxu0 0.0
    %1893 = vmatpush1.msra.mxu0 %v1757
    %1894 = vmatprep.subr.mxu0 0.0
    %1895 = vmatpush1.msra.mxu0 %v1756
    %1896 = vmatprep.subr.mxu0 0.0
    %1897 = vmatpush2.msra.mxu0 0.0
    %1898 = vmatprep.subr.mxu0 0.0
    %1899 = vmatpush2.msra.mxu0 0.0
    %1900 = vmatprep.subr.mxu0 0.0
    %1901 = vmatpush2.msra.mxu0 0.0
    %1902 = vmatprep.subr.mxu0 0.0
    %1903 = vmatpush2.msra.mxu0 0.0
    %1904 = vmatprep.subr.mxu0 0.0
    %1905 = vmatpush2.msra.mxu0 0.0
    %1906 = vmatprep.subr.mxu0 0.0
    %1907 = vmatpush2.msra.mxu0 0.0
    %1908 = vmatprep.subr.mxu0 0.0
    %1909 = vmatpush2.msra.mxu0 0.0
    %1910 = vmatprep.subr.mxu0 0.0
    %1911 = vmatpush2.msra.mxu0 0.0
    %1912 = vmatprep.subr.mxu0 0.0
    %1913 = vmatpush2.msra.mxu0 0.0
    %1914 = vmatprep.subr.mxu0 0.0
    %1915 = vmatpush2.msra.mxu0 0.0
    %1916 = vmatprep.subr.mxu0 0.0
    %1917 = vmatpush2.msra.mxu0 0.0
    %1918 = vmatprep.subr.mxu0 0.0
    %1919 = vmatpush2.msra.mxu0 0.0
    %1920 = vmatprep.subr.mxu0 0.0
    %1921 = vmatpush2.msra.mxu0 0.0
    %1922 = vmatprep.subr.mxu0 0.0
    %1923 = vmatpush2.msra.mxu0 0.0
    %1924 = vmatprep.subr.mxu0 0.0
    %1925 = vmatpush2.msra.mxu0 0.0
    %1926 = vmatprep.subr.mxu0 0.0
    %1927 = vmatpush2.msra.mxu0 0.0
    %1928 = vmatprep.mubr.f32.mxu0 0.0
    %1929 = vmatmul.mubr.f32.gmra.mxu0 %v1859
    %v1930 = vpop.f32.mrf.mxu0
    %v1931 = vadd.f32 %v1850, %v1930
    %v1932 = vpop.f32.mrf.mxu0
    %1933 = vmatprep.mubr.f32.mxu0 0.0
    %1934 = vmatmul.mubr.f32.gmra.mxu0 %v1862
    %v1935 = vpop.f32.mrf.mxu0
    %v1936 = vadd.f32 %v1855, %v1935
    %v1937 = vpop.f32.mrf.mxu0
    %1938 = vdwg.mxu0
    %s1939 = scalar_lea.vmem [#allocation2], 2
    %v1940 = vld [vmem:[%s1939] ss:$2 sm:$0xff]
    %s1941 = scalar_lea.vmem [#allocation2], 18
    %v1942 = vld [vmem:[%s1941] ss:$2 sm:$0x7]
    %s1943 = scalar_lea.vmem [#allocation5], 128
    %v1944 = vld [vmem:[%s1943] sm:$0xff]
    %v1945 = vld [vmem:[%s1943 + $0x8] sm:$0xff]
    %v1946 = vld [vmem:[%s1943 + $0x10] sm:$0xff]
    %v1947 = vld [vmem:[%s1943 + $0x18] sm:$0xff]
    %v1948 = vld [vmem:[%s1943 + $0x20] sm:$0xff]
    %v1949 = vld [vmem:[%s1943 + $0x28] sm:$0xff]
    %v1950 = vld [vmem:[%s1943 + $0x30] sm:$0xff]
    %v1951 = vld [vmem:[%s1943 + $0x38] sm:$0xff]
    %v1953 = vsel %vm871, %v1940, 0
    %v1956 = vsel %vm871, %v1942, 0
    %1958 = vmatprep.subr.mxu0 0.0
    %1959 = vmatpush1.msra.mxu0 0.0
    %1960 = vmatprep.subr.mxu0 0.0
    %1961 = vmatpush1.msra.mxu0 0.0
    %1962 = vmatprep.subr.mxu0 0.0
    %1963 = vmatpush1.msra.mxu0 0.0
    %1964 = vmatprep.subr.mxu0 0.0
    %1965 = vmatpush1.msra.mxu0 0.0
    %1966 = vmatprep.subr.mxu0 0.0
    %1967 = vmatpush1.msra.mxu0 0.0
    %1968 = vmatprep.subr.mxu0 0.0
    %1969 = vmatpush1.msra.mxu0 0.0
    %1970 = vmatprep.subr.mxu0 0.0
    %1971 = vmatpush1.msra.mxu0 0.0
    %1972 = vmatprep.subr.mxu0 0.0
    %1973 = vmatpush1.msra.mxu0 0.0
    %1974 = vmatprep.subr.mxu0 0.0
    %1975 = vmatpush1.msra.mxu0 %v1951
    %1976 = vmatprep.subr.mxu0 0.0
    %1977 = vmatpush1.msra.mxu0 %v1950
    %1978 = vmatprep.subr.mxu0 0.0
    %1979 = vmatpush1.msra.mxu0 %v1949
    %1980 = vmatprep.subr.mxu0 0.0
    %1981 = vmatpush1.msra.mxu0 %v1948
    %1982 = vmatprep.subr.mxu0 0.0
    %1983 = vmatpush1.msra.mxu0 %v1947
    %1984 = vmatprep.subr.mxu0 0.0
    %1985 = vmatpush1.msra.mxu0 %v1946
    %1986 = vmatprep.subr.mxu0 0.0
    %1987 = vmatpush1.msra.mxu0 %v1945
    %1988 = vmatprep.subr.mxu0 0.0
    %1989 = vmatpush1.msra.mxu0 %v1944
    %1990 = vmatprep.subr.mxu0 0.0
    %1991 = vmatpush2.msra.mxu0 0.0
    %1992 = vmatprep.subr.mxu0 0.0
    %1993 = vmatpush2.msra.mxu0 0.0
    %1994 = vmatprep.subr.mxu0 0.0
    %1995 = vmatpush2.msra.mxu0 0.0
    %1996 = vmatprep.subr.mxu0 0.0
    %1997 = vmatpush2.msra.mxu0 0.0
    %1998 = vmatprep.subr.mxu0 0.0
    %1999 = vmatpush2.msra.mxu0 0.0
    %2000 = vmatprep.subr.mxu0 0.0
    %2001 = vmatpush2.msra.mxu0 0.0
    %2002 = vmatprep.subr.mxu0 0.0
    %2003 = vmatpush2.msra.mxu0 0.0
    %2004 = vmatprep.subr.mxu0 0.0
    %2005 = vmatpush2.msra.mxu0 0.0
    %2006 = vmatprep.subr.mxu0 0.0
    %2007 = vmatpush2.msra.mxu0 0.0
    %2008 = vmatprep.subr.mxu0 0.0
    %2009 = vmatpush2.msra.mxu0 0.0
    %2010 = vmatprep.subr.mxu0 0.0
    %2011 = vmatpush2.msra.mxu0 0.0
    %2012 = vmatprep.subr.mxu0 0.0
    %2013 = vmatpush2.msra.mxu0 0.0
    %2014 = vmatprep.subr.mxu0 0.0
    %2015 = vmatpush2.msra.mxu0 0.0
    %2016 = vmatprep.subr.mxu0 0.0
    %2017 = vmatpush2.msra.mxu0 0.0
    %2018 = vmatprep.subr.mxu0 0.0
    %2019 = vmatpush2.msra.mxu0 0.0
    %2020 = vmatprep.subr.mxu0 0.0
    %2021 = vmatpush2.msra.mxu0 0.0
    %2022 = vmatprep.mubr.f32.mxu0 0.0
    %2023 = vmatmul.mubr.f32.gmra.mxu0 %v1953
    %v2024 = vpop.f32.mrf.mxu0
    %v2025 = vadd.f32 0.0, %v2024
    %v2026 = vpop.f32.mrf.mxu0
    %2027 = vmatprep.mubr.f32.mxu0 0.0
    %2028 = vmatmul.mubr.f32.gmra.mxu0 %v1956
    %v2029 = vpop.f32.mrf.mxu0
    %v2030 = vadd.f32 0.0, %v2029
    %v2031 = vpop.f32.mrf.mxu0
    %2032 = vdwg.mxu0
    %v2033 = vadd.f32 %v1931, %v2025
    %v2034 = vadd.f32 %v1936, %v2030
    %s2035 = scalar_lea.vmem [#allocation2], 3
    %v2036 = vld [vmem:[%s2035] ss:$2 sm:$0xff]
    %s2037 = scalar_lea.vmem [#allocation2], 19
    %v2038 = vld [vmem:[%s2037] ss:$2 sm:$0x7]
    %s2039 = scalar_lea.vmem [#allocation5], 192
    %v2040 = vld [vmem:[%s2039] sm:$0xff]
    %v2041 = vld [vmem:[%s2039 + $0x8] sm:$0xff]
    %v2042 = vld [vmem:[%s2039 + $0x10] sm:$0xff]
    %v2043 = vld [vmem:[%s2039 + $0x18] sm:$0xff]
    %v2044 = vld [vmem:[%s2039 + $0x20] sm:$0xff]
    %v2045 = vld [vmem:[%s2039 + $0x28] sm:$0xff]
    %v2046 = vld [vmem:[%s2039 + $0x30] sm:$0xff]
    %v2047 = vld [vmem:[%s2039 + $0x38] sm:$0xff]
    %v2049 = vsel %vm871, %v2036, 0
    %v2052 = vsel %vm871, %v2038, 0
    %2054 = vmatprep.subr.mxu0 0.0
    %2055 = vmatpush1.msra.mxu0 0.0
    %2056 = vmatprep.subr.mxu0 0.0
    %2057 = vmatpush1.msra.mxu0 0.0
    %2058 = vmatprep.subr.mxu0 0.0
    %2059 = vmatpush1.msra.mxu0 0.0
    %2060 = vmatprep.subr.mxu0 0.0
    %2061 = vmatpush1.msra.mxu0 0.0
    %2062 = vmatprep.subr.mxu0 0.0
    %2063 = vmatpush1.msra.mxu0 0.0
    %2064 = vmatprep.subr.mxu0 0.0
    %2065 = vmatpush1.msra.mxu0 0.0
    %2066 = vmatprep.subr.mxu0 0.0
    %2067 = vmatpush1.msra.mxu0 0.0
    %2068 = vmatprep.subr.mxu0 0.0
    %2069 = vmatpush1.msra.mxu0 0.0
    %2070 = vmatprep.subr.mxu0 0.0
    %2071 = vmatpush1.msra.mxu0 %v2047
    %2072 = vmatprep.subr.mxu0 0.0
    %2073 = vmatpush1.msra.mxu0 %v2046
    %2074 = vmatprep.subr.mxu0 0.0
    %2075 = vmatpush1.msra.mxu0 %v2045
    %2076 = vmatprep.subr.mxu0 0.0
    %2077 = vmatpush1.msra.mxu0 %v2044
    %2078 = vmatprep.subr.mxu0 0.0
    %2079 = vmatpush1.msra.mxu0 %v2043
    %2080 = vmatprep.subr.mxu0 0.0
    %2081 = vmatpush1.msra.mxu0 %v2042
    %2082 = vmatprep.subr.mxu0 0.0
    %2083 = vmatpush1.msra.mxu0 %v2041
    %2084 = vmatprep.subr.mxu0 0.0
    %2085 = vmatpush1.msra.mxu0 %v2040
    %2086 = vmatprep.subr.mxu0 0.0
    %2087 = vmatpush2.msra.mxu0 0.0
    %2088 = vmatprep.subr.mxu0 0.0
    %2089 = vmatpush2.msra.mxu0 0.0
    %2090 = vmatprep.subr.mxu0 0.0
    %2091 = vmatpush2.msra.mxu0 0.0
    %2092 = vmatprep.subr.mxu0 0.0
    %2093 = vmatpush2.msra.mxu0 0.0
    %2094 = vmatprep.subr.mxu0 0.0
    %2095 = vmatpush2.msra.mxu0 0.0
    %2096 = vmatprep.subr.mxu0 0.0
    %2097 = vmatpush2.msra.mxu0 0.0
    %2098 = vmatprep.subr.mxu0 0.0
    %2099 = vmatpush2.msra.mxu0 0.0
    %2100 = vmatprep.subr.mxu0 0.0
    %2101 = vmatpush2.msra.mxu0 0.0
    %2102 = vmatprep.subr.mxu0 0.0
    %2103 = vmatpush2.msra.mxu0 0.0
    %2104 = vmatprep.subr.mxu0 0.0
    %2105 = vmatpush2.msra.mxu0 0.0
    %2106 = vmatprep.subr.mxu0 0.0
    %2107 = vmatpush2.msra.mxu0 0.0
    %2108 = vmatprep.subr.mxu0 0.0
    %2109 = vmatpush2.msra.mxu0 0.0
    %2110 = vmatprep.subr.mxu0 0.0
    %2111 = vmatpush2.msra.mxu0 0.0
    %2112 = vmatprep.subr.mxu0 0.0
    %2113 = vmatpush2.msra.mxu0 0.0
    %2114 = vmatprep.subr.mxu0 0.0
    %2115 = vmatpush2.msra.mxu0 0.0
    %2116 = vmatprep.subr.mxu0 0.0
    %2117 = vmatpush2.msra.mxu0 0.0
    %2118 = vmatprep.mubr.f32.mxu0 0.0
    %2119 = vmatmul.mubr.f32.gmra.mxu0 %v2049
    %v2120 = vpop.f32.mrf.mxu0
    %v2121 = vadd.f32 0.0, %v2120
    %v2122 = vpop.f32.mrf.mxu0
    %2123 = vmatprep.mubr.f32.mxu0 0.0
    %2124 = vmatmul.mubr.f32.gmra.mxu0 %v2052
    %v2125 = vpop.f32.mrf.mxu0
    %v2126 = vadd.f32 0.0, %v2125
    %v2127 = vpop.f32.mrf.mxu0
    %2128 = vdwg.mxu0
    %v2129 = vadd.f32 %v2033, %v2121
    %v2130 = vadd.f32 %v2034, %v2126
    %s2131 = scalar_lea.vmem [#allocation2], 4
    %v2132 = vld [vmem:[%s2131] ss:$2 sm:$0xff]
    %s2133 = scalar_lea.vmem [#allocation2], 20
    %v2134 = vld [vmem:[%s2133] ss:$2 sm:$0x7]
    %s2135 = scalar_lea.vmem [#allocation5], 256
    %v2136 = vld [vmem:[%s2135] sm:$0xff]
    %v2137 = vld [vmem:[%s2135 + $0x8] sm:$0xff]
    %v2138 = vld [vmem:[%s2135 + $0x10] sm:$0xff]
    %v2139 = vld [vmem:[%s2135 + $0x18] sm:$0xff]
    %v2140 = vld [vmem:[%s2135 + $0x20] sm:$0xff]
    %v2141 = vld [vmem:[%s2135 + $0x28] sm:$0xff]
    %v2142 = vld [vmem:[%s2135 + $0x30] sm:$0xff]
    %v2143 = vld [vmem:[%s2135 + $0x38] sm:$0xff]
    %v2145 = vsel %vm871, %v2132, 0
    %v2148 = vsel %vm871, %v2134, 0
    %2150 = vmatprep.subr.mxu0 0.0
    %2151 = vmatpush1.msra.mxu0 0.0
    %2152 = vmatprep.subr.mxu0 0.0
    %2153 = vmatpush1.msra.mxu0 0.0
    %2154 = vmatprep.subr.mxu0 0.0
    %2155 = vmatpush1.msra.mxu0 0.0
    %2156 = vmatprep.subr.mxu0 0.0
    %2157 = vmatpush1.msra.mxu0 0.0
    %2158 = vmatprep.subr.mxu0 0.0
    %2159 = vmatpush1.msra.mxu0 0.0
    %2160 = vmatprep.subr.mxu0 0.0
    %2161 = vmatpush1.msra.mxu0 0.0
    %2162 = vmatprep.subr.mxu0 0.0
    %2163 = vmatpush1.msra.mxu0 0.0
    %2164 = vmatprep.subr.mxu0 0.0
    %2165 = vmatpush1.msra.mxu0 0.0
    %2166 = vmatprep.subr.mxu0 0.0
    %2167 = vmatpush1.msra.mxu0 %v2143
    %2168 = vmatprep.subr.mxu0 0.0
    %2169 = vmatpush1.msra.mxu0 %v2142
    %2170 = vmatprep.subr.mxu0 0.0
    %2171 = vmatpush1.msra.mxu0 %v2141
    %2172 = vmatprep.subr.mxu0 0.0
    %2173 = vmatpush1.msra.mxu0 %v2140
    %2174 = vmatprep.subr.mxu0 0.0
    %2175 = vmatpush1.msra.mxu0 %v2139
    %2176 = vmatprep.subr.mxu0 0.0
    %2177 = vmatpush1.msra.mxu0 %v2138
    %2178 = vmatprep.subr.mxu0 0.0
    %2179 = vmatpush1.msra.mxu0 %v2137
    %2180 = vmatprep.subr.mxu0 0.0
    %2181 = vmatpush1.msra.mxu0 %v2136
    %2182 = vmatprep.subr.mxu0 0.0
    %2183 = vmatpush2.msra.mxu0 0.0
    %2184 = vmatprep.subr.mxu0 0.0
    %2185 = vmatpush2.msra.mxu0 0.0
    %2186 = vmatprep.subr.mxu0 0.0
    %2187 = vmatpush2.msra.mxu0 0.0
    %2188 = vmatprep.subr.mxu0 0.0
    %2189 = vmatpush2.msra.mxu0 0.0
    %2190 = vmatprep.subr.mxu0 0.0
    %2191 = vmatpush2.msra.mxu0 0.0
    %2192 = vmatprep.subr.mxu0 0.0
    %2193 = vmatpush2.msra.mxu0 0.0
    %2194 = vmatprep.subr.mxu0 0.0
    %2195 = vmatpush2.msra.mxu0 0.0
    %2196 = vmatprep.subr.mxu0 0.0
    %2197 = vmatpush2.msra.mxu0 0.0
    %2198 = vmatprep.subr.mxu0 0.0
    %2199 = vmatpush2.msra.mxu0 0.0
    %2200 = vmatprep.subr.mxu0 0.0
    %2201 = vmatpush2.msra.mxu0 0.0
    %2202 = vmatprep.subr.mxu0 0.0
    %2203 = vmatpush2.msra.mxu0 0.0
    %2204 = vmatprep.subr.mxu0 0.0
    %2205 = vmatpush2.msra.mxu0 0.0
    %2206 = vmatprep.subr.mxu0 0.0
    %2207 = vmatpush2.msra.mxu0 0.0
    %2208 = vmatprep.subr.mxu0 0.0
    %2209 = vmatpush2.msra.mxu0 0.0
    %2210 = vmatprep.subr.mxu0 0.0
    %2211 = vmatpush2.msra.mxu0 0.0
    %2212 = vmatprep.subr.mxu0 0.0
    %2213 = vmatpush2.msra.mxu0 0.0
    %2214 = vmatprep.mubr.f32.mxu0 0.0
    %2215 = vmatmul.mubr.f32.gmra.mxu0 %v2145
    %v2216 = vpop.f32.mrf.mxu0
    %v2217 = vadd.f32 0.0, %v2216
    %v2218 = vpop.f32.mrf.mxu0
    %2219 = vmatprep.mubr.f32.mxu0 0.0
    %2220 = vmatmul.mubr.f32.gmra.mxu0 %v2148
    %v2221 = vpop.f32.mrf.mxu0
    %v2222 = vadd.f32 0.0, %v2221
    %v2223 = vpop.f32.mrf.mxu0
    %2224 = vdwg.mxu0
    %v2225 = vadd.f32 %v2129, %v2217
    %v2226 = vadd.f32 %v2130, %v2222
    %s2227 = scalar_lea.vmem [#allocation2], 5
    %v2228 = vld [vmem:[%s2227] ss:$2 sm:$0xff]
    %s2229 = scalar_lea.vmem [#allocation2], 21
    %v2230 = vld [vmem:[%s2229] ss:$2 sm:$0x7]
    %s2231 = scalar_lea.vmem [#allocation5], 320
    %v2232 = vld [vmem:[%s2231] sm:$0xff]
    %v2233 = vld [vmem:[%s2231 + $0x8] sm:$0xff]
    %v2234 = vld [vmem:[%s2231 + $0x10] sm:$0xff]
    %v2235 = vld [vmem:[%s2231 + $0x18] sm:$0xff]
    %v2236 = vld [vmem:[%s2231 + $0x20] sm:$0xff]
    %v2237 = vld [vmem:[%s2231 + $0x28] sm:$0xff]
    %v2238 = vld [vmem:[%s2231 + $0x30] sm:$0xff]
    %v2239 = vld [vmem:[%s2231 + $0x38] sm:$0xff]
    %v2241 = vsel %vm871, %v2228, 0
    %v2244 = vsel %vm871, %v2230, 0
    %2246 = vmatprep.subr.mxu0 0.0
    %2247 = vmatpush1.msra.mxu0 0.0
    %2248 = vmatprep.subr.mxu0 0.0
    %2249 = vmatpush1.msra.mxu0 0.0
    %2250 = vmatprep.subr.mxu0 0.0
    %2251 = vmatpush1.msra.mxu0 0.0
    %2252 = vmatprep.subr.mxu0 0.0
    %2253 = vmatpush1.msra.mxu0 0.0
    %2254 = vmatprep.subr.mxu0 0.0
    %2255 = vmatpush1.msra.mxu0 0.0
    %2256 = vmatprep.subr.mxu0 0.0
    %2257 = vmatpush1.msra.mxu0 0.0
    %2258 = vmatprep.subr.mxu0 0.0
    %2259 = vmatpush1.msra.mxu0 0.0
    %2260 = vmatprep.subr.mxu0 0.0
    %2261 = vmatpush1.msra.mxu0 0.0
    %2262 = vmatprep.subr.mxu0 0.0
    %2263 = vmatpush1.msra.mxu0 %v2239
    %2264 = vmatprep.subr.mxu0 0.0
    %2265 = vmatpush1.msra.mxu0 %v2238
    %2266 = vmatprep.subr.mxu0 0.0
    %2267 = vmatpush1.msra.mxu0 %v2237
    %2268 = vmatprep.subr.mxu0 0.0
    %2269 = vmatpush1.msra.mxu0 %v2236
    %2270 = vmatprep.subr.mxu0 0.0
    %2271 = vmatpush1.msra.mxu0 %v2235
    %2272 = vmatprep.subr.mxu0 0.0
    %2273 = vmatpush1.msra.mxu0 %v2234
    %2274 = vmatprep.subr.mxu0 0.0
    %2275 = vmatpush1.msra.mxu0 %v2233
    %2276 = vmatprep.subr.mxu0 0.0
    %2277 = vmatpush1.msra.mxu0 %v2232
    %2278 = vmatprep.subr.mxu0 0.0
    %2279 = vmatpush2.msra.mxu0 0.0
    %2280 = vmatprep.subr.mxu0 0.0
    %2281 = vmatpush2.msra.mxu0 0.0
    %2282 = vmatprep.subr.mxu0 0.0
    %2283 = vmatpush2.msra.mxu0 0.0
    %2284 = vmatprep.subr.mxu0 0.0
    %2285 = vmatpush2.msra.mxu0 0.0
    %2286 = vmatprep.subr.mxu0 0.0
    %2287 = vmatpush2.msra.mxu0 0.0
    %2288 = vmatprep.subr.mxu0 0.0
    %2289 = vmatpush2.msra.mxu0 0.0
    %2290 = vmatprep.subr.mxu0 0.0
    %2291 = vmatpush2.msra.mxu0 0.0
    %2292 = vmatprep.subr.mxu0 0.0
    %2293 = vmatpush2.msra.mxu0 0.0
    %2294 = vmatprep.subr.mxu0 0.0
    %2295 = vmatpush2.msra.mxu0 0.0
    %2296 = vmatprep.subr.mxu0 0.0
    %2297 = vmatpush2.msra.mxu0 0.0
    %2298 = vmatprep.subr.mxu0 0.0
    %2299 = vmatpush2.msra.mxu0 0.0
    %2300 = vmatprep.subr.mxu0 0.0
    %2301 = vmatpush2.msra.mxu0 0.0
    %2302 = vmatprep.subr.mxu0 0.0
    %2303 = vmatpush2.msra.mxu0 0.0
    %2304 = vmatprep.subr.mxu0 0.0
    %2305 = vmatpush2.msra.mxu0 0.0
    %2306 = vmatprep.subr.mxu0 0.0
    %2307 = vmatpush2.msra.mxu0 0.0
    %2308 = vmatprep.subr.mxu0 0.0
    %2309 = vmatpush2.msra.mxu0 0.0
    %2310 = vmatprep.mubr.f32.mxu0 0.0
    %2311 = vmatmul.mubr.f32.gmra.mxu0 %v2241
    %v2312 = vpop.f32.mrf.mxu0
    %v2313 = vadd.f32 0.0, %v2312
    %v2314 = vpop.f32.mrf.mxu0
    %2315 = vmatprep.mubr.f32.mxu0 0.0
    %2316 = vmatmul.mubr.f32.gmra.mxu0 %v2244
    %v2317 = vpop.f32.mrf.mxu0
    %v2318 = vadd.f32 0.0, %v2317
    %v2319 = vpop.f32.mrf.mxu0
    %2320 = vdwg.mxu0
    %v2321 = vadd.f32 %v2225, %v2313
    %v2322 = vadd.f32 %v2226, %v2318
    %s2323 = scalar_lea.vmem [#allocation2], 6
    %v2324 = vld [vmem:[%s2323] ss:$2 sm:$0xff]
    %s2325 = scalar_lea.vmem [#allocation2], 22
    %v2326 = vld [vmem:[%s2325] ss:$2 sm:$0x7]
    %s2327 = scalar_lea.vmem [#allocation5], 384
    %v2328 = vld [vmem:[%s2327] sm:$0xff]
    %v2329 = vld [vmem:[%s2327 + $0x8] sm:$0xff]
    %v2330 = vld [vmem:[%s2327 + $0x10] sm:$0xff]
    %v2331 = vld [vmem:[%s2327 + $0x18] sm:$0xff]
    %v2332 = vld [vmem:[%s2327 + $0x20] sm:$0xff]
    %v2333 = vld [vmem:[%s2327 + $0x28] sm:$0xff]
    %v2334 = vld [vmem:[%s2327 + $0x30] sm:$0xff]
    %v2335 = vld [vmem:[%s2327 + $0x38] sm:$0xff]
    %v2337 = vsel %vm871, %v2324, 0
    %v2340 = vsel %vm871, %v2326, 0
    %2342 = vmatprep.subr.mxu0 0.0
    %2343 = vmatpush1.msra.mxu0 0.0
    %2344 = vmatprep.subr.mxu0 0.0
    %2345 = vmatpush1.msra.mxu0 0.0
    %2346 = vmatprep.subr.mxu0 0.0
    %2347 = vmatpush1.msra.mxu0 0.0
    %2348 = vmatprep.subr.mxu0 0.0
    %2349 = vmatpush1.msra.mxu0 0.0
    %2350 = vmatprep.subr.mxu0 0.0
    %2351 = vmatpush1.msra.mxu0 0.0
    %2352 = vmatprep.subr.mxu0 0.0
    %2353 = vmatpush1.msra.mxu0 0.0
    %2354 = vmatprep.subr.mxu0 0.0
    %2355 = vmatpush1.msra.mxu0 0.0
    %2356 = vmatprep.subr.mxu0 0.0
    %2357 = vmatpush1.msra.mxu0 0.0
    %2358 = vmatprep.subr.mxu0 0.0
    %2359 = vmatpush1.msra.mxu0 %v2335
    %2360 = vmatprep.subr.mxu0 0.0
    %2361 = vmatpush1.msra.mxu0 %v2334
    %2362 = vmatprep.subr.mxu0 0.0
    %2363 = vmatpush1.msra.mxu0 %v2333
    %2364 = vmatprep.subr.mxu0 0.0
    %2365 = vmatpush1.msra.mxu0 %v2332
    %2366 = vmatprep.subr.mxu0 0.0
    %2367 = vmatpush1.msra.mxu0 %v2331
    %2368 = vmatprep.subr.mxu0 0.0
    %2369 = vmatpush1.msra.mxu0 %v2330
    %2370 = vmatprep.subr.mxu0 0.0
    %2371 = vmatpush1.msra.mxu0 %v2329
    %2372 = vmatprep.subr.mxu0 0.0
    %2373 = vmatpush1.msra.mxu0 %v2328
    %2374 = vmatprep.subr.mxu0 0.0
    %2375 = vmatpush2.msra.mxu0 0.0
    %2376 = vmatprep.subr.mxu0 0.0
    %2377 = vmatpush2.msra.mxu0 0.0
    %2378 = vmatprep.subr.mxu0 0.0
    %2379 = vmatpush2.msra.mxu0 0.0
    %2380 = vmatprep.subr.mxu0 0.0
    %2381 = vmatpush2.msra.mxu0 0.0
    %2382 = vmatprep.subr.mxu0 0.0
    %2383 = vmatpush2.msra.mxu0 0.0
    %2384 = vmatprep.subr.mxu0 0.0
    %2385 = vmatpush2.msra.mxu0 0.0
    %2386 = vmatprep.subr.mxu0 0.0
    %2387 = vmatpush2.msra.mxu0 0.0
    %2388 = vmatprep.subr.mxu0 0.0
    %2389 = vmatpush2.msra.mxu0 0.0
    %2390 = vmatprep.subr.mxu0 0.0
    %2391 = vmatpush2.msra.mxu0 0.0
    %2392 = vmatprep.subr.mxu0 0.0
    %2393 = vmatpush2.msra.mxu0 0.0
    %2394 = vmatprep.subr.mxu0 0.0
    %2395 = vmatpush2.msra.mxu0 0.0
    %2396 = vmatprep.subr.mxu0 0.0
    %2397 = vmatpush2.msra.mxu0 0.0
    %2398 = vmatprep.subr.mxu0 0.0
    %2399 = vmatpush2.msra.mxu0 0.0
    %2400 = vmatprep.subr.mxu0 0.0
    %2401 = vmatpush2.msra.mxu0 0.0
    %2402 = vmatprep.subr.mxu0 0.0
    %2403 = vmatpush2.msra.mxu0 0.0
    %2404 = vmatprep.subr.mxu0 0.0
    %2405 = vmatpush2.msra.mxu0 0.0
    %2406 = vmatprep.mubr.f32.mxu0 0.0
    %2407 = vmatmul.mubr.f32.gmra.mxu0 %v2337
    %v2408 = vpop.f32.mrf.mxu0
    %v2409 = vadd.f32 0.0, %v2408
    %v2410 = vpop.f32.mrf.mxu0
    %2411 = vmatprep.mubr.f32.mxu0 0.0
    %2412 = vmatmul.mubr.f32.gmra.mxu0 %v2340
    %v2413 = vpop.f32.mrf.mxu0
    %v2414 = vadd.f32 0.0, %v2413
    %v2415 = vpop.f32.mrf.mxu0
    %2416 = vdwg.mxu0
    %v2417 = vadd.f32 %v2321, %v2409
    %v2418 = vadd.f32 %v2322, %v2414
    %v2419 = vlaneseq
    %v2420 = vshrl.u32 %v2419, 7
    %v2421 = vsub.s32 0, %v2420
    %v2422 = vrot.slane %v1750, %v2421
    %v2423 = vadd.f32 %v2417, %v2422
    %v2424 = vadd.f32 %v2418, %v2422
    %vm2425 = vcmp.ge.f32.partialorder %v2423, 0.0
    %vm2426 = vcmp.ge.f32.partialorder %v2424, 0.0
    %v2427 = vmul.f32 %v2423, 0.01
    %v2428 = vmul.f32 %v2424, 0.01
    %v2429 = vsel %vm2425, %v2423, %v2427
    %v2430 = vsel %vm2426, %v2424, %v2428
    %vm2431 = vcmask 261120
    %v2432 = vsel %vm2431, %v2429, 0.0
    %vm2433 = vcmask 256000
    %v2434 = vsel %vm2433, %v2430, 0.0
    %v2435 = vadd.f32 %v2432, %v2434
    %v2436 = vrot.slane %v2435, 4
    %v2437 = vadd.f32 %v2435, %v2436
    %v2438 = vrot.slane %v2437, 2
    %v2439 = vadd.f32 %v2437, %v2438
    %v2440 = vrot.slane %v2439, 1
    %v2441 = vadd.f32 %v2439, %v2440
    %v2442 = vmul.f32 %v2429, %v2429
    %v2443 = vmul.f32 %v2430, %v2430
    %v2444 = vsel %vm2431, %v2442, 0.0
    %v2445 = vsel %vm2433, %v2443, 0.0
    %v2446 = vadd.f32 %v2444, %v2445
    %v2447 = vrot.slane %v2446, 4
    %v2448 = vadd.f32 %v2446, %v2447
    %v2449 = vrot.slane %v2448, 2
    %v2450 = vadd.f32 %v2448, %v2449
    %v2451 = vrot.slane %v2450, 1
    %v2452 = vadd.f32 %v2450, %v2451
    %s2453 = scalar_lea.vmem [#allocation2], 27
    %v2454 = vld [vmem:[%s2453] ss:$2 sm:$0xff]
    %s2455 = scalar_lea.vmem [#allocation2], 43
    %v2456 = vld [vmem:[%s2455] ss:$2 sm:$0x7]
    %s2457 = scalar_lea.vmem [#allocation2], 28
    %v2458 = vld [vmem:[%s2457] ss:$2 sm:$0xff]
    %s2459 = scalar_lea.vmem [#allocation2], 44
    %v2460 = vld [vmem:[%s2459] ss:$2 sm:$0x7]
    %v2462 = vsel %vm871, %v2458, 0
    %v2465 = vsel %vm871, %v2460, 0
    %2467 = vmatprep.subr.mxu0 0.0
    %2468 = vmatpush1.msra.mxu0 0.0
    %2469 = vmatprep.subr.mxu0 0.0
    %2470 = vmatpush1.msra.mxu0 0.0
    %2471 = vmatprep.subr.mxu0 0.0
    %2472 = vmatpush1.msra.mxu0 0.0
    %2473 = vmatprep.subr.mxu0 0.0
    %2474 = vmatpush1.msra.mxu0 0.0
    %2475 = vmatprep.subr.mxu0 0.0
    %2476 = vmatpush1.msra.mxu0 0.0
    %2477 = vmatprep.subr.mxu0 0.0
    %2478 = vmatpush1.msra.mxu0 0.0
    %2479 = vmatprep.subr.mxu0 0.0
    %2480 = vmatpush1.msra.mxu0 0.0
    %2481 = vmatprep.subr.mxu0 0.0
    %2482 = vmatpush1.msra.mxu0 0.0
    %2483 = vmatprep.subr.mxu0 0.0
    %2484 = vmatpush1.msra.mxu0 %v1776
    %2485 = vmatprep.subr.mxu0 0.0
    %2486 = vmatpush1.msra.mxu0 %v1775
    %2487 = vmatprep.subr.mxu0 0.0
    %2488 = vmatpush1.msra.mxu0 %v1774
    %2489 = vmatprep.subr.mxu0 0.0
    %2490 = vmatpush1.msra.mxu0 %v1773
    %2491 = vmatprep.subr.mxu0 0.0
    %2492 = vmatpush1.msra.mxu0 %v1772
    %2493 = vmatprep.subr.mxu0 0.0
    %2494 = vmatpush1.msra.mxu0 %v1771
    %2495 = vmatprep.subr.mxu0 0.0
    %2496 = vmatpush1.msra.mxu0 %v1770
    %2497 = vmatprep.subr.mxu0 0.0
    %2498 = vmatpush1.msra.mxu0 %v1769
    %2499 = vmatprep.subr.mxu0 0.0
    %2500 = vmatpush2.msra.mxu0 0.0
    %2501 = vmatprep.subr.mxu0 0.0
    %2502 = vmatpush2.msra.mxu0 0.0
    %2503 = vmatprep.subr.mxu0 0.0
    %2504 = vmatpush2.msra.mxu0 0.0
    %2505 = vmatprep.subr.mxu0 0.0
    %2506 = vmatpush2.msra.mxu0 0.0
    %2507 = vmatprep.subr.mxu0 0.0
    %2508 = vmatpush2.msra.mxu0 0.0
    %2509 = vmatprep.subr.mxu0 0.0
    %2510 = vmatpush2.msra.mxu0 0.0
    %2511 = vmatprep.subr.mxu0 0.0
    %2512 = vmatpush2.msra.mxu0 0.0
    %2513 = vmatprep.subr.mxu0 0.0
    %2514 = vmatpush2.msra.mxu0 0.0
    %2515 = vmatprep.subr.mxu0 0.0
    %2516 = vmatpush2.msra.mxu0 0.0
    %2517 = vmatprep.subr.mxu0 0.0
    %2518 = vmatpush2.msra.mxu0 0.0
    %2519 = vmatprep.subr.mxu0 0.0
    %2520 = vmatpush2.msra.mxu0 0.0
    %2521 = vmatprep.subr.mxu0 0.0
    %2522 = vmatpush2.msra.mxu0 0.0
    %2523 = vmatprep.subr.mxu0 0.0
    %2524 = vmatpush2.msra.mxu0 0.0
    %2525 = vmatprep.subr.mxu0 0.0
    %2526 = vmatpush2.msra.mxu0 0.0
    %2527 = vmatprep.subr.mxu0 0.0
    %2528 = vmatpush2.msra.mxu0 0.0
    %2529 = vmatprep.subr.mxu0 0.0
    %2530 = vmatpush2.msra.mxu0 0.0
    %2531 = vmatprep.mubr.f32.mxu0 0.0
    %2532 = vmatmul.mubr.f32.gmra.mxu0 %v2462
    %v2533 = vpop.f32.mrf.mxu0
    %v2534 = vadd.f32 0.0, %v2533
    %v2535 = vpop.f32.mrf.mxu0
    %2536 = vmatprep.mubr.f32.mxu0 0.0
    %2537 = vmatmul.mubr.f32.gmra.mxu0 %v2465
    %v2538 = vpop.f32.mrf.mxu0
    %v2539 = vadd.f32 0.0, %v2538
    %v2540 = vpop.f32.mrf.mxu0
    %2541 = vdwg.mxu0
    %v2543 = vsel %vm871, %v2454, 0
    %v2546 = vsel %vm871, %v2456, 0
    %2548 = vmatprep.subr.mxu0 0.0
    %2549 = vmatpush1.msra.mxu0 0.0
    %2550 = vmatprep.subr.mxu0 0.0
    %2551 = vmatpush1.msra.mxu0 0.0
    %2552 = vmatprep.subr.mxu0 0.0
    %2553 = vmatpush1.msra.mxu0 0.0
    %2554 = vmatprep.subr.mxu0 0.0
    %2555 = vmatpush1.msra.mxu0 0.0
    %2556 = vmatprep.subr.mxu0 0.0
    %2557 = vmatpush1.msra.mxu0 0.0
    %2558 = vmatprep.subr.mxu0 0.0
    %2559 = vmatpush1.msra.mxu0 0.0
    %2560 = vmatprep.subr.mxu0 0.0
    %2561 = vmatpush1.msra.mxu0 0.0
    %2562 = vmatprep.subr.mxu0 0.0
    %2563 = vmatpush1.msra.mxu0 0.0
    %2564 = vmatprep.subr.mxu0 0.0
    %2565 = vmatpush1.msra.mxu0 %v1763
    %2566 = vmatprep.subr.mxu0 0.0
    %2567 = vmatpush1.msra.mxu0 %v1762
    %2568 = vmatprep.subr.mxu0 0.0
    %2569 = vmatpush1.msra.mxu0 %v1761
    %2570 = vmatprep.subr.mxu0 0.0
    %2571 = vmatpush1.msra.mxu0 %v1760
    %2572 = vmatprep.subr.mxu0 0.0
    %2573 = vmatpush1.msra.mxu0 %v1759
    %2574 = vmatprep.subr.mxu0 0.0
    %2575 = vmatpush1.msra.mxu0 %v1758
    %2576 = vmatprep.subr.mxu0 0.0
    %2577 = vmatpush1.msra.mxu0 %v1757
    %2578 = vmatprep.subr.mxu0 0.0
    %2579 = vmatpush1.msra.mxu0 %v1756
    %2580 = vmatprep.subr.mxu0 0.0
    %2581 = vmatpush2.msra.mxu0 0.0
    %2582 = vmatprep.subr.mxu0 0.0
    %2583 = vmatpush2.msra.mxu0 0.0
    %2584 = vmatprep.subr.mxu0 0.0
    %2585 = vmatpush2.msra.mxu0 0.0
    %2586 = vmatprep.subr.mxu0 0.0
    %2587 = vmatpush2.msra.mxu0 0.0
    %2588 = vmatprep.subr.mxu0 0.0
    %2589 = vmatpush2.msra.mxu0 0.0
    %2590 = vmatprep.subr.mxu0 0.0
    %2591 = vmatpush2.msra.mxu0 0.0
    %2592 = vmatprep.subr.mxu0 0.0
    %2593 = vmatpush2.msra.mxu0 0.0
    %2594 = vmatprep.subr.mxu0 0.0
    %2595 = vmatpush2.msra.mxu0 0.0
    %2596 = vmatprep.subr.mxu0 0.0
    %2597 = vmatpush2.msra.mxu0 0.0
    %2598 = vmatprep.subr.mxu0 0.0
    %2599 = vmatpush2.msra.mxu0 0.0
    %2600 = vmatprep.subr.mxu0 0.0
    %2601 = vmatpush2.msra.mxu0 0.0
    %2602 = vmatprep.subr.mxu0 0.0
    %2603 = vmatpush2.msra.mxu0 0.0
    %2604 = vmatprep.subr.mxu0 0.0
    %2605 = vmatpush2.msra.mxu0 0.0
    %2606 = vmatprep.subr.mxu0 0.0
    %2607 = vmatpush2.msra.mxu0 0.0
    %2608 = vmatprep.subr.mxu0 0.0
    %2609 = vmatpush2.msra.mxu0 0.0
    %2610 = vmatprep.subr.mxu0 0.0
    %2611 = vmatpush2.msra.mxu0 0.0
    %2612 = vmatprep.mubr.f32.mxu0 0.0
    %2613 = vmatmul.mubr.f32.gmra.mxu0 %v2543
    %v2614 = vpop.f32.mrf.mxu0
    %v2615 = vadd.f32 %v2534, %v2614
    %v2616 = vpop.f32.mrf.mxu0
    %2617 = vmatprep.mubr.f32.mxu0 0.0
    %2618 = vmatmul.mubr.f32.gmra.mxu0 %v2546
    %v2619 = vpop.f32.mrf.mxu0
    %v2620 = vadd.f32 %v2539, %v2619
    %v2621 = vpop.f32.mrf.mxu0
    %2622 = vdwg.mxu0
    %s2623 = scalar_lea.vmem [#allocation2], 29
    %v2624 = vld [vmem:[%s2623] ss:$2 sm:$0xff]
    %s2625 = scalar_lea.vmem [#allocation2], 45
    %v2626 = vld [vmem:[%s2625] ss:$2 sm:$0x7]
    %v2628 = vsel %vm871, %v2624, 0
    %v2631 = vsel %vm871, %v2626, 0
    %2633 = vmatprep.subr.mxu0 0.0
    %2634 = vmatpush1.msra.mxu0 0.0
    %2635 = vmatprep.subr.mxu0 0.0
    %2636 = vmatpush1.msra.mxu0 0.0
    %2637 = vmatprep.subr.mxu0 0.0
    %2638 = vmatpush1.msra.mxu0 0.0
    %2639 = vmatprep.subr.mxu0 0.0
    %2640 = vmatpush1.msra.mxu0 0.0
    %2641 = vmatprep.subr.mxu0 0.0
    %2642 = vmatpush1.msra.mxu0 0.0
    %2643 = vmatprep.subr.mxu0 0.0
    %2644 = vmatpush1.msra.mxu0 0.0
    %2645 = vmatprep.subr.mxu0 0.0
    %2646 = vmatpush1.msra.mxu0 0.0
    %2647 = vmatprep.subr.mxu0 0.0
    %2648 = vmatpush1.msra.mxu0 0.0
    %2649 = vmatprep.subr.mxu0 0.0
    %2650 = vmatpush1.msra.mxu0 %v1951
    %2651 = vmatprep.subr.mxu0 0.0
    %2652 = vmatpush1.msra.mxu0 %v1950
    %2653 = vmatprep.subr.mxu0 0.0
    %2654 = vmatpush1.msra.mxu0 %v1949
    %2655 = vmatprep.subr.mxu0 0.0
    %2656 = vmatpush1.msra.mxu0 %v1948
    %2657 = vmatprep.subr.mxu0 0.0
    %2658 = vmatpush1.msra.mxu0 %v1947
    %2659 = vmatprep.subr.mxu0 0.0
    %2660 = vmatpush1.msra.mxu0 %v1946
    %2661 = vmatprep.subr.mxu0 0.0
    %2662 = vmatpush1.msra.mxu0 %v1945
    %2663 = vmatprep.subr.mxu0 0.0
    %2664 = vmatpush1.msra.mxu0 %v1944
    %2665 = vmatprep.subr.mxu0 0.0
    %2666 = vmatpush2.msra.mxu0 0.0
    %2667 = vmatprep.subr.mxu0 0.0
    %2668 = vmatpush2.msra.mxu0 0.0
    %2669 = vmatprep.subr.mxu0 0.0
    %2670 = vmatpush2.msra.mxu0 0.0
    %2671 = vmatprep.subr.mxu0 0.0
    %2672 = vmatpush2.msra.mxu0 0.0
    %2673 = vmatprep.subr.mxu0 0.0
    %2674 = vmatpush2.msra.mxu0 0.0
    %2675 = vmatprep.subr.mxu0 0.0
    %2676 = vmatpush2.msra.mxu0 0.0
    %2677 = vmatprep.subr.mxu0 0.0
    %2678 = vmatpush2.msra.mxu0 0.0
    %2679 = vmatprep.subr.mxu0 0.0
    %2680 = vmatpush2.msra.mxu0 0.0
    %2681 = vmatprep.subr.mxu0 0.0
    %2682 = vmatpush2.msra.mxu0 0.0
    %2683 = vmatprep.subr.mxu0 0.0
    %2684 = vmatpush2.msra.mxu0 0.0
    %2685 = vmatprep.subr.mxu0 0.0
    %2686 = vmatpush2.msra.mxu0 0.0
    %2687 = vmatprep.subr.mxu0 0.0
    %2688 = vmatpush2.msra.mxu0 0.0
    %2689 = vmatprep.subr.mxu0 0.0
    %2690 = vmatpush2.msra.mxu0 0.0
    %2691 = vmatprep.subr.mxu0 0.0
    %2692 = vmatpush2.msra.mxu0 0.0
    %2693 = vmatprep.subr.mxu0 0.0
    %2694 = vmatpush2.msra.mxu0 0.0
    %2695 = vmatprep.subr.mxu0 0.0
    %2696 = vmatpush2.msra.mxu0 0.0
    %2697 = vmatprep.mubr.f32.mxu0 0.0
    %2698 = vmatmul.mubr.f32.gmra.mxu0 %v2628
    %v2699 = vpop.f32.mrf.mxu0
    %v2700 = vadd.f32 0.0, %v2699
    %v2701 = vpop.f32.mrf.mxu0
    %2702 = vmatprep.mubr.f32.mxu0 0.0
    %2703 = vmatmul.mubr.f32.gmra.mxu0 %v2631
    %v2704 = vpop.f32.mrf.mxu0
    %v2705 = vadd.f32 0.0, %v2704
    %v2706 = vpop.f32.mrf.mxu0
    %2707 = vdwg.mxu0
    %v2708 = vadd.f32 %v2615, %v2700
    %v2709 = vadd.f32 %v2620, %v2705
    %s2710 = scalar_lea.vmem [#allocation2], 30
    %v2711 = vld [vmem:[%s2710] ss:$2 sm:$0xff]
    %s2712 = scalar_lea.vmem [#allocation2], 46
    %v2713 = vld [vmem:[%s2712] ss:$2 sm:$0x7]
    %v2715 = vsel %vm871, %v2711, 0
    %v2718 = vsel %vm871, %v2713, 0
    %2720 = vmatprep.subr.mxu0 0.0
    %2721 = vmatpush1.msra.mxu0 0.0
    %2722 = vmatprep.subr.mxu0 0.0
    %2723 = vmatpush1.msra.mxu0 0.0
    %2724 = vmatprep.subr.mxu0 0.0
    %2725 = vmatpush1.msra.mxu0 0.0
    %2726 = vmatprep.subr.mxu0 0.0
    %2727 = vmatpush1.msra.mxu0 0.0
    %2728 = vmatprep.subr.mxu0 0.0
    %2729 = vmatpush1.msra.mxu0 0.0
    %2730 = vmatprep.subr.mxu0 0.0
    %2731 = vmatpush1.msra.mxu0 0.0
    %2732 = vmatprep.subr.mxu0 0.0
    %2733 = vmatpush1.msra.mxu0 0.0
    %2734 = vmatprep.subr.mxu0 0.0
    %2735 = vmatpush1.msra.mxu0 0.0
    %2736 = vmatprep.subr.mxu0 0.0
    %2737 = vmatpush1.msra.mxu0 %v2047
    %2738 = vmatprep.subr.mxu0 0.0
    %2739 = vmatpush1.msra.mxu0 %v2046
    %2740 = vmatprep.subr.mxu0 0.0
    %2741 = vmatpush1.msra.mxu0 %v2045
    %2742 = vmatprep.subr.mxu0 0.0
    %2743 = vmatpush1.msra.mxu0 %v2044
    %2744 = vmatprep.subr.mxu0 0.0
    %2745 = vmatpush1.msra.mxu0 %v2043
    %2746 = vmatprep.subr.mxu0 0.0
    %2747 = vmatpush1.msra.mxu0 %v2042
    %2748 = vmatprep.subr.mxu0 0.0
    %2749 = vmatpush1.msra.mxu0 %v2041
    %2750 = vmatprep.subr.mxu0 0.0
    %2751 = vmatpush1.msra.mxu0 %v2040
    %2752 = vmatprep.subr.mxu0 0.0
    %2753 = vmatpush2.msra.mxu0 0.0
    %2754 = vmatprep.subr.mxu0 0.0
    %2755 = vmatpush2.msra.mxu0 0.0
    %2756 = vmatprep.subr.mxu0 0.0
    %2757 = vmatpush2.msra.mxu0 0.0
    %2758 = vmatprep.subr.mxu0 0.0
    %2759 = vmatpush2.msra.mxu0 0.0
    %2760 = vmatprep.subr.mxu0 0.0
    %2761 = vmatpush2.msra.mxu0 0.0
    %2762 = vmatprep.subr.mxu0 0.0
    %2763 = vmatpush2.msra.mxu0 0.0
    %2764 = vmatprep.subr.mxu0 0.0
    %2765 = vmatpush2.msra.mxu0 0.0
    %2766 = vmatprep.subr.mxu0 0.0
    %2767 = vmatpush2.msra.mxu0 0.0
    %2768 = vmatprep.subr.mxu0 0.0
    %2769 = vmatpush2.msra.mxu0 0.0
    %2770 = vmatprep.subr.mxu0 0.0
    %2771 = vmatpush2.msra.mxu0 0.0
    %2772 = vmatprep.subr.mxu0 0.0
    %2773 = vmatpush2.msra.mxu0 0.0
    %2774 = vmatprep.subr.mxu0 0.0
    %2775 = vmatpush2.msra.mxu0 0.0
    %2776 = vmatprep.subr.mxu0 0.0
    %2777 = vmatpush2.msra.mxu0 0.0
    %2778 = vmatprep.subr.mxu0 0.0
    %2779 = vmatpush2.msra.mxu0 0.0
    %2780 = vmatprep.subr.mxu0 0.0
    %2781 = vmatpush2.msra.mxu0 0.0
    %2782 = vmatprep.subr.mxu0 0.0
    %2783 = vmatpush2.msra.mxu0 0.0
    %2784 = vmatprep.mubr.f32.mxu0 0.0
    %2785 = vmatmul.mubr.f32.gmra.mxu0 %v2715
    %v2786 = vpop.f32.mrf.mxu0
    %v2787 = vadd.f32 0.0, %v2786
    %v2788 = vpop.f32.mrf.mxu0
    %2789 = vmatprep.mubr.f32.mxu0 0.0
    %2790 = vmatmul.mubr.f32.gmra.mxu0 %v2718
    %v2791 = vpop.f32.mrf.mxu0
    %v2792 = vadd.f32 0.0, %v2791
    %v2793 = vpop.f32.mrf.mxu0
    %2794 = vdwg.mxu0
    %v2795 = vadd.f32 %v2708, %v2787
    %v2796 = vadd.f32 %v2709, %v2792
    %s2797 = scalar_lea.vmem [#allocation2], 31
    %v2798 = vld [vmem:[%s2797] ss:$2 sm:$0xff]
    %s2799 = scalar_lea.vmem [#allocation2], 47
    %v2800 = vld [vmem:[%s2799] ss:$2 sm:$0x7]
    %v2802 = vsel %vm871, %v2798, 0
    %v2805 = vsel %vm871, %v2800, 0
    %2807 = vmatprep.subr.mxu0 0.0
    %2808 = vmatpush1.msra.mxu0 0.0
    %2809 = vmatprep.subr.mxu0 0.0
    %2810 = vmatpush1.msra.mxu0 0.0
    %2811 = vmatprep.subr.mxu0 0.0
    %2812 = vmatpush1.msra.mxu0 0.0
    %2813 = vmatprep.subr.mxu0 0.0
    %2814 = vmatpush1.msra.mxu0 0.0
    %2815 = vmatprep.subr.mxu0 0.0
    %2816 = vmatpush1.msra.mxu0 0.0
    %2817 = vmatprep.subr.mxu0 0.0
    %2818 = vmatpush1.msra.mxu0 0.0
    %2819 = vmatprep.subr.mxu0 0.0
    %2820 = vmatpush1.msra.mxu0 0.0
    %2821 = vmatprep.subr.mxu0 0.0
    %2822 = vmatpush1.msra.mxu0 0.0
    %2823 = vmatprep.subr.mxu0 0.0
    %2824 = vmatpush1.msra.mxu0 %v2143
    %2825 = vmatprep.subr.mxu0 0.0
    %2826 = vmatpush1.msra.mxu0 %v2142
    %2827 = vmatprep.subr.mxu0 0.0
    %2828 = vmatpush1.msra.mxu0 %v2141
    %2829 = vmatprep.subr.mxu0 0.0
    %2830 = vmatpush1.msra.mxu0 %v2140
    %2831 = vmatprep.subr.mxu0 0.0
    %2832 = vmatpush1.msra.mxu0 %v2139
    %2833 = vmatprep.subr.mxu0 0.0
    %2834 = vmatpush1.msra.mxu0 %v2138
    %2835 = vmatprep.subr.mxu0 0.0
    %2836 = vmatpush1.msra.mxu0 %v2137
    %2837 = vmatprep.subr.mxu0 0.0
    %2838 = vmatpush1.msra.mxu0 %v2136
    %2839 = vmatprep.subr.mxu0 0.0
    %2840 = vmatpush2.msra.mxu0 0.0
    %2841 = vmatprep.subr.mxu0 0.0
    %2842 = vmatpush2.msra.mxu0 0.0
    %2843 = vmatprep.subr.mxu0 0.0
    %2844 = vmatpush2.msra.mxu0 0.0
    %2845 = vmatprep.subr.mxu0 0.0
    %2846 = vmatpush2.msra.mxu0 0.0
    %2847 = vmatprep.subr.mxu0 0.0
    %2848 = vmatpush2.msra.mxu0 0.0
    %2849 = vmatprep.subr.mxu0 0.0
    %2850 = vmatpush2.msra.mxu0 0.0
    %2851 = vmatprep.subr.mxu0 0.0
    %2852 = vmatpush2.msra.mxu0 0.0
    %2853 = vmatprep.subr.mxu0 0.0
    %2854 = vmatpush2.msra.mxu0 0.0
    %2855 = vmatprep.subr.mxu0 0.0
    %2856 = vmatpush2.msra.mxu0 0.0
    %2857 = vmatprep.subr.mxu0 0.0
    %2858 = vmatpush2.msra.mxu0 0.0
    %2859 = vmatprep.subr.mxu0 0.0
    %2860 = vmatpush2.msra.mxu0 0.0
    %2861 = vmatprep.subr.mxu0 0.0
    %2862 = vmatpush2.msra.mxu0 0.0
    %2863 = vmatprep.subr.mxu0 0.0
    %2864 = vmatpush2.msra.mxu0 0.0
    %2865 = vmatprep.subr.mxu0 0.0
    %2866 = vmatpush2.msra.mxu0 0.0
    %2867 = vmatprep.subr.mxu0 0.0
    %2868 = vmatpush2.msra.mxu0 0.0
    %2869 = vmatprep.subr.mxu0 0.0
    %2870 = vmatpush2.msra.mxu0 0.0
    %2871 = vmatprep.mubr.f32.mxu0 0.0
    %2872 = vmatmul.mubr.f32.gmra.mxu0 %v2802
    %v2873 = vpop.f32.mrf.mxu0
    %v2874 = vadd.f32 0.0, %v2873
    %v2875 = vpop.f32.mrf.mxu0
    %2876 = vmatprep.mubr.f32.mxu0 0.0
    %2877 = vmatmul.mubr.f32.gmra.mxu0 %v2805
    %v2878 = vpop.f32.mrf.mxu0
    %v2879 = vadd.f32 0.0, %v2878
    %v2880 = vpop.f32.mrf.mxu0
    %2881 = vdwg.mxu0
    %v2882 = vadd.f32 %v2795, %v2874
    %v2883 = vadd.f32 %v2796, %v2879
    %s2884 = scalar_lea.vmem [#allocation2], 32
    %v2885 = vld [vmem:[%s2884] ss:$2 sm:$0xff]
    %s2886 = scalar_lea.vmem [#allocation2], 48
    %v2887 = vld [vmem:[%s2886] ss:$2 sm:$0x7]
    %v2889 = vsel %vm871, %v2885, 0
    %v2892 = vsel %vm871, %v2887, 0
    %2894 = vmatprep.subr.mxu0 0.0
    %2895 = vmatpush1.msra.mxu0 0.0
    %2896 = vmatprep.subr.mxu0 0.0
    %2897 = vmatpush1.msra.mxu0 0.0
    %2898 = vmatprep.subr.mxu0 0.0
    %2899 = vmatpush1.msra.mxu0 0.0
    %2900 = vmatprep.subr.mxu0 0.0
    %2901 = vmatpush1.msra.mxu0 0.0
    %2902 = vmatprep.subr.mxu0 0.0
    %2903 = vmatpush1.msra.mxu0 0.0
    %2904 = vmatprep.subr.mxu0 0.0
    %2905 = vmatpush1.msra.mxu0 0.0
    %2906 = vmatprep.subr.mxu0 0.0
    %2907 = vmatpush1.msra.mxu0 0.0
    %2908 = vmatprep.subr.mxu0 0.0
    %2909 = vmatpush1.msra.mxu0 0.0
    %2910 = vmatprep.subr.mxu0 0.0
    %2911 = vmatpush1.msra.mxu0 %v2239
    %2912 = vmatprep.subr.mxu0 0.0
    %2913 = vmatpush1.msra.mxu0 %v2238
    %2914 = vmatprep.subr.mxu0 0.0
    %2915 = vmatpush1.msra.mxu0 %v2237
    %2916 = vmatprep.subr.mxu0 0.0
    %2917 = vmatpush1.msra.mxu0 %v2236
    %2918 = vmatprep.subr.mxu0 0.0
    %2919 = vmatpush1.msra.mxu0 %v2235
    %2920 = vmatprep.subr.mxu0 0.0
    %2921 = vmatpush1.msra.mxu0 %v2234
    %2922 = vmatprep.subr.mxu0 0.0
    %2923 = vmatpush1.msra.mxu0 %v2233
    %2924 = vmatprep.subr.mxu0 0.0
    %2925 = vmatpush1.msra.mxu0 %v2232
    %2926 = vmatprep.subr.mxu0 0.0
    %2927 = vmatpush2.msra.mxu0 0.0
    %2928 = vmatprep.subr.mxu0 0.0
    %2929 = vmatpush2.msra.mxu0 0.0
    %2930 = vmatprep.subr.mxu0 0.0
    %2931 = vmatpush2.msra.mxu0 0.0
    %2932 = vmatprep.subr.mxu0 0.0
    %2933 = vmatpush2.msra.mxu0 0.0
    %2934 = vmatprep.subr.mxu0 0.0
    %2935 = vmatpush2.msra.mxu0 0.0
    %2936 = vmatprep.subr.mxu0 0.0
    %2937 = vmatpush2.msra.mxu0 0.0
    %2938 = vmatprep.subr.mxu0 0.0
    %2939 = vmatpush2.msra.mxu0 0.0
    %2940 = vmatprep.subr.mxu0 0.0
    %2941 = vmatpush2.msra.mxu0 0.0
    %2942 = vmatprep.subr.mxu0 0.0
    %2943 = vmatpush2.msra.mxu0 0.0
    %2944 = vmatprep.subr.mxu0 0.0
    %2945 = vmatpush2.msra.mxu0 0.0
    %2946 = vmatprep.subr.mxu0 0.0
    %2947 = vmatpush2.msra.mxu0 0.0
    %2948 = vmatprep.subr.mxu0 0.0
    %2949 = vmatpush2.msra.mxu0 0.0
    %2950 = vmatprep.subr.mxu0 0.0
    %2951 = vmatpush2.msra.mxu0 0.0
    %2952 = vmatprep.subr.mxu0 0.0
    %2953 = vmatpush2.msra.mxu0 0.0
    %2954 = vmatprep.subr.mxu0 0.0
    %2955 = vmatpush2.msra.mxu0 0.0
    %2956 = vmatprep.subr.mxu0 0.0
    %2957 = vmatpush2.msra.mxu0 0.0
    %2958 = vmatprep.mubr.f32.mxu0 0.0
    %2959 = vmatmul.mubr.f32.gmra.mxu0 %v2889
    %v2960 = vpop.f32.mrf.mxu0
    %v2961 = vadd.f32 0.0, %v2960
    %v2962 = vpop.f32.mrf.mxu0
    %2963 = vmatprep.mubr.f32.mxu0 0.0
    %2964 = vmatmul.mubr.f32.gmra.mxu0 %v2892
    %v2965 = vpop.f32.mrf.mxu0
    %v2966 = vadd.f32 0.0, %v2965
    %v2967 = vpop.f32.mrf.mxu0
    %2968 = vdwg.mxu0
    %v2969 = vadd.f32 %v2882, %v2961
    %v2970 = vadd.f32 %v2883, %v2966
    %s2971 = scalar_lea.vmem [#allocation2], 33
    %v2972 = vld [vmem:[%s2971] ss:$2 sm:$0xff]
    %s2973 = scalar_lea.vmem [#allocation2], 49
    %v2974 = vld [vmem:[%s2973] ss:$2 sm:$0x7]
    %v2976 = vsel %vm871, %v2972, 0
    %v2979 = vsel %vm871, %v2974, 0
    %2981 = vmatprep.subr.mxu0 0.0
    %2982 = vmatpush1.msra.mxu0 0.0
    %2983 = vmatprep.subr.mxu0 0.0
    %2984 = vmatpush1.msra.mxu0 0.0
    %2985 = vmatprep.subr.mxu0 0.0
    %2986 = vmatpush1.msra.mxu0 0.0
    %2987 = vmatprep.subr.mxu0 0.0
    %2988 = vmatpush1.msra.mxu0 0.0
    %2989 = vmatprep.subr.mxu0 0.0
    %2990 = vmatpush1.msra.mxu0 0.0
    %2991 = vmatprep.subr.mxu0 0.0
    %2992 = vmatpush1.msra.mxu0 0.0
    %2993 = vmatprep.subr.mxu0 0.0
    %2994 = vmatpush1.msra.mxu0 0.0
    %2995 = vmatprep.subr.mxu0 0.0
    %2996 = vmatpush1.msra.mxu0 0.0
    %2997 = vmatprep.subr.mxu0 0.0
    %2998 = vmatpush1.msra.mxu0 %v2335
    %2999 = vmatprep.subr.mxu0 0.0
    %3000 = vmatpush1.msra.mxu0 %v2334
    %3001 = vmatprep.subr.mxu0 0.0
    %3002 = vmatpush1.msra.mxu0 %v2333
    %3003 = vmatprep.subr.mxu0 0.0
    %3004 = vmatpush1.msra.mxu0 %v2332
    %3005 = vmatprep.subr.mxu0 0.0
    %3006 = vmatpush1.msra.mxu0 %v2331
    %3007 = vmatprep.subr.mxu0 0.0
    %3008 = vmatpush1.msra.mxu0 %v2330
    %3009 = vmatprep.subr.mxu0 0.0
    %3010 = vmatpush1.msra.mxu0 %v2329
    %3011 = vmatprep.subr.mxu0 0.0
    %3012 = vmatpush1.msra.mxu0 %v2328
    %3013 = vmatprep.subr.mxu0 0.0
    %3014 = vmatpush2.msra.mxu0 0.0
    %3015 = vmatprep.subr.mxu0 0.0
    %3016 = vmatpush2.msra.mxu0 0.0
    %3017 = vmatprep.subr.mxu0 0.0
    %3018 = vmatpush2.msra.mxu0 0.0
    %3019 = vmatprep.subr.mxu0 0.0
    %3020 = vmatpush2.msra.mxu0 0.0
    %3021 = vmatprep.subr.mxu0 0.0
    %3022 = vmatpush2.msra.mxu0 0.0
    %3023 = vmatprep.subr.mxu0 0.0
    %3024 = vmatpush2.msra.mxu0 0.0
    %3025 = vmatprep.subr.mxu0 0.0
    %3026 = vmatpush2.msra.mxu0 0.0
    %3027 = vmatprep.subr.mxu0 0.0
    %3028 = vmatpush2.msra.mxu0 0.0
    %3029 = vmatprep.subr.mxu0 0.0
    %3030 = vmatpush2.msra.mxu0 0.0
    %3031 = vmatprep.subr.mxu0 0.0
    %3032 = vmatpush2.msra.mxu0 0.0
    %3033 = vmatprep.subr.mxu0 0.0
    %3034 = vmatpush2.msra.mxu0 0.0
    %3035 = vmatprep.subr.mxu0 0.0
    %3036 = vmatpush2.msra.mxu0 0.0
    %3037 = vmatprep.subr.mxu0 0.0
    %3038 = vmatpush2.msra.mxu0 0.0
    %3039 = vmatprep.subr.mxu0 0.0
    %3040 = vmatpush2.msra.mxu0 0.0
    %3041 = vmatprep.subr.mxu0 0.0
    %3042 = vmatpush2.msra.mxu0 0.0
    %3043 = vmatprep.subr.mxu0 0.0
    %3044 = vmatpush2.msra.mxu0 0.0
    %3045 = vmatprep.mubr.f32.mxu0 0.0
    %3046 = vmatmul.mubr.f32.gmra.mxu0 %v2976
    %v3047 = vpop.f32.mrf.mxu0
    %v3048 = vadd.f32 0.0, %v3047
    %v3049 = vpop.f32.mrf.mxu0
    %3050 = vmatprep.mubr.f32.mxu0 0.0
    %3051 = vmatmul.mubr.f32.gmra.mxu0 %v2979
    %v3052 = vpop.f32.mrf.mxu0
    %v3053 = vadd.f32 0.0, %v3052
    %v3054 = vpop.f32.mrf.mxu0
    %3055 = vdwg.mxu0
    %v3056 = vadd.f32 %v2969, %v3048
    %v3057 = vadd.f32 %v2970, %v3053
    %v3058 = vadd.f32 %v3056, %v2422
    %v3059 = vadd.f32 %v3057, %v2422
    %vm3060 = vcmp.ge.f32.partialorder %v3058, 0.0
    %vm3061 = vcmp.ge.f32.partialorder %v3059, 0.0
    %v3062 = vmul.f32 %v3058, 0.01
    %v3063 = vmul.f32 %v3059, 0.01
    %v3064 = vsel %vm3060, %v3058, %v3062
    %v3065 = vsel %vm3061, %v3059, %v3063
    %v3066 = vsel %vm2431, %v3064, 0.0
    %v3067 = vsel %vm2433, %v3065, 0.0
    %v3068 = vadd.f32 %v3066, %v3067
    %v3069 = vrot.slane %v3068, 4
    %v3070 = vadd.f32 %v3068, %v3069
    %v3071 = vrot.slane %v3070, 2
    %v3072 = vadd.f32 %v3070, %v3071
    %v3073 = vrot.slane %v3072, 1
    %v3074 = vadd.f32 %v3072, %v3073
    %v3075 = vmul.f32 %v3064, %v3064
    %v3076 = vmul.f32 %v3065, %v3065
    %v3077 = vsel %vm2431, %v3075, 0.0
    %v3078 = vsel %vm2433, %v3076, 0.0
    %v3079 = vadd.f32 %v3077, %v3078
    %v3080 = vrot.slane %v3079, 4
    %v3081 = vadd.f32 %v3079, %v3080
    %v3082 = vrot.slane %v3081, 2
    %v3083 = vadd.f32 %v3081, %v3082
    %v3084 = vrot.slane %v3083, 1
    %v3085 = vadd.f32 %v3083, %v3084
    %v3086 = vadd.f32 %v2441, %v3074
    %v3087 = vadd.f32 %v2452, %v3085
    %v3088 = vrcp.pop 22.0
    %v3089 = vmul.f32 %v3086, %v3088
    %v3090 = vmul.f32 %v3087, %v3088
    %v3091 = vmul.f32 %v3089, %v3089
    %v3092 = vsub.f32 %v3090, %v3091
    %v3093 = vmax.f32 %v3092, 0.0
    %v3094 = vadd.f32 %v3093, 1e-05
    %v3095 = vrsqrt.pop %v3094
    %v3096 = vmul.f32 %v1751, %v3095
    %v3097 = vmul.f32 %v3089, %v3096
    %v3098 = vsub.f32 %v1752, %v3097
    %v3099 = vlaneseq
    %v3100 = vshrl.u32 %v3099, 7
    %v3101 = vsub.s32 0, %v3100
    %v3102 = vrot.slane %v3096, %v3101
    %v3103 = vmul.f32 %v2429, %v3102
    %v3104 = vmul.f32 %v2430, %v3102
    %v3105 = vlaneseq
    %v3106 = vshrl.u32 %v3105, 7
    %v3107 = vsub.s32 0, %v3106
    %v3108 = vrot.slane %v3098, %v3107
    %v3109 = vadd.f32 %v3103, %v3108
    %v3110 = vadd.f32 %v3104, %v3108
    %3111 = vst.msk [vmem:[#allocation3] sm:$0xff] %vm2431, %v3109
    %3112 = vst.msk [vmem:[#allocation3 + $0x8] sm:$0x7] %vm2433, %v3110
    %v3113 = vmul.f32 %v3064, %v3102
    %v3114 = vmul.f32 %v3065, %v3102
    %v3115 = vadd.f32 %v3113, %v3108
    %v3116 = vadd.f32 %v3114, %v3108
    %3117 = vst.msk [vmem:[#allocation3 + $0xb] sm:$0xff] %vm2431, %v3115
    %3118 = vst.msk [vmem:[#allocation3 + $0x13] sm:$0x7] %vm2433, %v3116
    %s3119 = scalar_lea.vmem %s4, 8
    %v3120 = vld [vmem:[%s3119] sm:$0x1]
    %v3121 = vld [vmem:[%s3119 + $0x1] sm:$0x1]
    %v3122 = vld [vmem:[%s3119 + $0x2] sm:$0x1]
    %v3123 = vld [vmem:[#allocation3] ss:$2 sm:$0x7]
    %v3124 = vld [vmem:[#allocation8] sm:$0xff]
    %v3125 = vld [vmem:[#allocation8 + $0x8] sm:$0xff]
    %v3126 = vld [vmem:[#allocation8 + $0x10] sm:$0xff]
    %v3127 = vld [vmem:[#allocation8 + $0x18] sm:$0xff]
    %s3128 = scalar_lea.vmem [#allocation3], 1
    %v3129 = vld [vmem:[%s3128] ss:$2 sm:$0x7]
    %s3130 = scalar_lea.vmem [#allocation8], 32
    %v3131 = vld [vmem:[%s3130] sm:$0xff]
    %v3132 = vld [vmem:[%s3130 + $0x8] sm:$0xff]
    %v3133 = vld [vmem:[%s3130 + $0x10] sm:$0xff]
    %v3134 = vld [vmem:[%s3130 + $0x18] sm:$0xff]
    %v3136 = vsel %vm2431, %v3129, 0
    %3138 = vmatprep.subr.mxu0 0.0
    %3139 = vmatpush1.msra.mxu0 0.0
    %3140 = vmatprep.subr.mxu0 0.0
    %3141 = vmatpush1.msra.mxu0 0.0
    %3142 = vmatprep.subr.mxu0 0.0
    %3143 = vmatpush1.msra.mxu0 0.0
    %3144 = vmatprep.subr.mxu0 0.0
    %3145 = vmatpush1.msra.mxu0 0.0
    %3146 = vmatprep.subr.mxu0 0.0
    %3147 = vmatpush1.msra.mxu0 0.0
    %3148 = vmatprep.subr.mxu0 0.0
    %3149 = vmatpush1.msra.mxu0 0.0
    %3150 = vmatprep.subr.mxu0 0.0
    %3151 = vmatpush1.msra.mxu0 0.0
    %3152 = vmatprep.subr.mxu0 0.0
    %3153 = vmatpush1.msra.mxu0 0.0
    %3154 = vmatprep.subr.mxu0 0.0
    %3155 = vmatpush1.msra.mxu0 0.0
    %3156 = vmatprep.subr.mxu0 0.0
    %3157 = vmatpush1.msra.mxu0 0.0
    %3158 = vmatprep.subr.mxu0 0.0
    %3159 = vmatpush1.msra.mxu0 0.0
    %3160 = vmatprep.subr.mxu0 0.0
    %3161 = vmatpush1.msra.mxu0 0.0
    %3162 = vmatprep.subr.mxu0 0.0
    %3163 = vmatpush1.msra.mxu0 %v3134
    %3164 = vmatprep.subr.mxu0 0.0
    %3165 = vmatpush1.msra.mxu0 %v3133
    %3166 = vmatprep.subr.mxu0 0.0
    %3167 = vmatpush1.msra.mxu0 %v3132
    %3168 = vmatprep.subr.mxu0 0.0
    %3169 = vmatpush1.msra.mxu0 %v3131
    %3170 = vmatprep.subr.mxu0 0.0
    %3171 = vmatpush2.msra.mxu0 0.0
    %3172 = vmatprep.subr.mxu0 0.0
    %3173 = vmatpush2.msra.mxu0 0.0
    %3174 = vmatprep.subr.mxu0 0.0
    %3175 = vmatpush2.msra.mxu0 0.0
    %3176 = vmatprep.subr.mxu0 0.0
    %3177 = vmatpush2.msra.mxu0 0.0
    %3178 = vmatprep.subr.mxu0 0.0
    %3179 = vmatpush2.msra.mxu0 0.0
    %3180 = vmatprep.subr.mxu0 0.0
    %3181 = vmatpush2.msra.mxu0 0.0
    %3182 = vmatprep.subr.mxu0 0.0
    %3183 = vmatpush2.msra.mxu0 0.0
    %3184 = vmatprep.subr.mxu0 0.0
    %3185 = vmatpush2.msra.mxu0 0.0
    %3186 = vmatprep.subr.mxu0 0.0
    %3187 = vmatpush2.msra.mxu0 0.0
    %3188 = vmatprep.subr.mxu0 0.0
    %3189 = vmatpush2.msra.mxu0 0.0
    %3190 = vmatprep.subr.mxu0 0.0
    %3191 = vmatpush2.msra.mxu0 0.0
    %3192 = vmatprep.subr.mxu0 0.0
    %3193 = vmatpush2.msra.mxu0 0.0
    %3194 = vmatprep.subr.mxu0 0.0
    %3195 = vmatpush2.msra.mxu0 0.0
    %3196 = vmatprep.subr.mxu0 0.0
    %3197 = vmatpush2.msra.mxu0 0.0
    %3198 = vmatprep.subr.mxu0 0.0
    %3199 = vmatpush2.msra.mxu0 0.0
    %3200 = vmatprep.subr.mxu0 0.0
    %3201 = vmatpush2.msra.mxu0 0.0
    %3202 = vmatprep.mubr.f32.mxu0 0.0
    %3203 = vmatmul.mubr.f32.gmra.mxu0 %v3136
    %v3204 = vpop.f32.mrf.mxu0
    %v3205 = vadd.f32 0.0, %v3204
    %v3206 = vpop.f32.mrf.mxu0
    %3207 = vdwg.mxu0
    %v3209 = vsel %vm2431, %v3123, 0
    %3211 = vmatprep.subr.mxu0 0.0
    %3212 = vmatpush1.msra.mxu0 0.0
    %3213 = vmatprep.subr.mxu0 0.0
    %3214 = vmatpush1.msra.mxu0 0.0
    %3215 = vmatprep.subr.mxu0 0.0
    %3216 = vmatpush1.msra.mxu0 0.0
    %3217 = vmatprep.subr.mxu0 0.0
    %3218 = vmatpush1.msra.mxu0 0.0
    %3219 = vmatprep.subr.mxu0 0.0
    %3220 = vmatpush1.msra.mxu0 0.0
    %3221 = vmatprep.subr.mxu0 0.0
    %3222 = vmatpush1.msra.mxu0 0.0
    %3223 = vmatprep.subr.mxu0 0.0
    %3224 = vmatpush1.msra.mxu0 0.0
    %3225 = vmatprep.subr.mxu0 0.0
    %3226 = vmatpush1.msra.mxu0 0.0
    %3227 = vmatprep.subr.mxu0 0.0
    %3228 = vmatpush1.msra.mxu0 0.0
    %3229 = vmatprep.subr.mxu0 0.0
    %3230 = vmatpush1.msra.mxu0 0.0
    %3231 = vmatprep.subr.mxu0 0.0
    %3232 = vmatpush1.msra.mxu0 0.0
    %3233 = vmatprep.subr.mxu0 0.0
    %3234 = vmatpush1.msra.mxu0 0.0
    %3235 = vmatprep.subr.mxu0 0.0
    %3236 = vmatpush1.msra.mxu0 %v3127
    %3237 = vmatprep.subr.mxu0 0.0
    %3238 = vmatpush1.msra.mxu0 %v3126
    %3239 = vmatprep.subr.mxu0 0.0
    %3240 = vmatpush1.msra.mxu0 %v3125
    %3241 = vmatprep.subr.mxu0 0.0
    %3242 = vmatpush1.msra.mxu0 %v3124
    %3243 = vmatprep.subr.mxu0 0.0
    %3244 = vmatpush2.msra.mxu0 0.0
    %3245 = vmatprep.subr.mxu0 0.0
    %3246 = vmatpush2.msra.mxu0 0.0
    %3247 = vmatprep.subr.mxu0 0.0
    %3248 = vmatpush2.msra.mxu0 0.0
    %3249 = vmatprep.subr.mxu0 0.0
    %3250 = vmatpush2.msra.mxu0 0.0
    %3251 = vmatprep.subr.mxu0 0.0
    %3252 = vmatpush2.msra.mxu0 0.0
    %3253 = vmatprep.subr.mxu0 0.0
    %3254 = vmatpush2.msra.mxu0 0.0
    %3255 = vmatprep.subr.mxu0 0.0
    %3256 = vmatpush2.msra.mxu0 0.0
    %3257 = vmatprep.subr.mxu0 0.0
    %3258 = vmatpush2.msra.mxu0 0.0
    %3259 = vmatprep.subr.mxu0 0.0
    %3260 = vmatpush2.msra.mxu0 0.0
    %3261 = vmatprep.subr.mxu0 0.0
    %3262 = vmatpush2.msra.mxu0 0.0
    %3263 = vmatprep.subr.mxu0 0.0
    %3264 = vmatpush2.msra.mxu0 0.0
    %3265 = vmatprep.subr.mxu0 0.0
    %3266 = vmatpush2.msra.mxu0 0.0
    %3267 = vmatprep.subr.mxu0 0.0
    %3268 = vmatpush2.msra.mxu0 0.0
    %3269 = vmatprep.subr.mxu0 0.0
    %3270 = vmatpush2.msra.mxu0 0.0
    %3271 = vmatprep.subr.mxu0 0.0
    %3272 = vmatpush2.msra.mxu0 0.0
    %3273 = vmatprep.subr.mxu0 0.0
    %3274 = vmatpush2.msra.mxu0 0.0
    %3275 = vmatprep.mubr.f32.mxu0 0.0
    %3276 = vmatmul.mubr.f32.gmra.mxu0 %v3209
    %v3277 = vpop.f32.mrf.mxu0
    %v3278 = vadd.f32 %v3205, %v3277
    %v3279 = vpop.f32.mrf.mxu0
    %3280 = vdwg.mxu0
    %s3281 = scalar_lea.vmem [#allocation3], 2
    %v3282 = vld [vmem:[%s3281] ss:$2 sm:$0x7]
    %s3283 = scalar_lea.vmem [#allocation8], 64
    %v3284 = vld [vmem:[%s3283] sm:$0xff]
    %v3285 = vld [vmem:[%s3283 + $0x8] sm:$0xff]
    %v3286 = vld [vmem:[%s3283 + $0x10] sm:$0xff]
    %v3287 = vld [vmem:[%s3283 + $0x18] sm:$0xff]
    %v3289 = vsel %vm2431, %v3282, 0
    %3291 = vmatprep.subr.mxu0 0.0
    %3292 = vmatpush1.msra.mxu0 0.0
    %3293 = vmatprep.subr.mxu0 0.0
    %3294 = vmatpush1.msra.mxu0 0.0
    %3295 = vmatprep.subr.mxu0 0.0
    %3296 = vmatpush1.msra.mxu0 0.0
    %3297 = vmatprep.subr.mxu0 0.0
    %3298 = vmatpush1.msra.mxu0 0.0
    %3299 = vmatprep.subr.mxu0 0.0
    %3300 = vmatpush1.msra.mxu0 0.0
    %3301 = vmatprep.subr.mxu0 0.0
    %3302 = vmatpush1.msra.mxu0 0.0
    %3303 = vmatprep.subr.mxu0 0.0
    %3304 = vmatpush1.msra.mxu0 0.0
    %3305 = vmatprep.subr.mxu0 0.0
    %3306 = vmatpush1.msra.mxu0 0.0
    %3307 = vmatprep.subr.mxu0 0.0
    %3308 = vmatpush1.msra.mxu0 0.0
    %3309 = vmatprep.subr.mxu0 0.0
    %3310 = vmatpush1.msra.mxu0 0.0
    %3311 = vmatprep.subr.mxu0 0.0
    %3312 = vmatpush1.msra.mxu0 0.0
    %3313 = vmatprep.subr.mxu0 0.0
    %3314 = vmatpush1.msra.mxu0 0.0
    %3315 = vmatprep.subr.mxu0 0.0
    %3316 = vmatpush1.msra.mxu0 %v3287
    %3317 = vmatprep.subr.mxu0 0.0
    %3318 = vmatpush1.msra.mxu0 %v3286
    %3319 = vmatprep.subr.mxu0 0.0
    %3320 = vmatpush1.msra.mxu0 %v3285
    %3321 = vmatprep.subr.mxu0 0.0
    %3322 = vmatpush1.msra.mxu0 %v3284
    %3323 = vmatprep.subr.mxu0 0.0
    %3324 = vmatpush2.msra.mxu0 0.0
    %3325 = vmatprep.subr.mxu0 0.0
    %3326 = vmatpush2.msra.mxu0 0.0
    %3327 = vmatprep.subr.mxu0 0.0
    %3328 = vmatpush2.msra.mxu0 0.0
    %3329 = vmatprep.subr.mxu0 0.0
    %3330 = vmatpush2.msra.mxu0 0.0
    %3331 = vmatprep.subr.mxu0 0.0
    %3332 = vmatpush2.msra.mxu0 0.0
    %3333 = vmatprep.subr.mxu0 0.0
    %3334 = vmatpush2.msra.mxu0 0.0
    %3335 = vmatprep.subr.mxu0 0.0
    %3336 = vmatpush2.msra.mxu0 0.0
    %3337 = vmatprep.subr.mxu0 0.0
    %3338 = vmatpush2.msra.mxu0 0.0
    %3339 = vmatprep.subr.mxu0 0.0
    %3340 = vmatpush2.msra.mxu0 0.0
    %3341 = vmatprep.subr.mxu0 0.0
    %3342 = vmatpush2.msra.mxu0 0.0
    %3343 = vmatprep.subr.mxu0 0.0
    %3344 = vmatpush2.msra.mxu0 0.0
    %3345 = vmatprep.subr.mxu0 0.0
    %3346 = vmatpush2.msra.mxu0 0.0
    %3347 = vmatprep.subr.mxu0 0.0
    %3348 = vmatpush2.msra.mxu0 0.0
    %3349 = vmatprep.subr.mxu0 0.0
    %3350 = vmatpush2.msra.mxu0 0.0
    %3351 = vmatprep.subr.mxu0 0.0
    %3352 = vmatpush2.msra.mxu0 0.0
    %3353 = vmatprep.subr.mxu0 0.0
    %3354 = vmatpush2.msra.mxu0 0.0
    %3355 = vmatprep.mubr.f32.mxu0 0.0
    %3356 = vmatmul.mubr.f32.gmra.mxu0 %v3289
    %v3357 = vpop.f32.mrf.mxu0
    %v3358 = vadd.f32 0.0, %v3357
    %v3359 = vpop.f32.mrf.mxu0
    %3360 = vdwg.mxu0
    %v3361 = vadd.f32 %v3278, %v3358
    %s3362 = scalar_lea.vmem [#allocation3], 3
    %v3363 = vld [vmem:[%s3362] ss:$2 sm:$0x7]
    %s3364 = scalar_lea.vmem [#allocation8], 96
    %v3365 = vld [vmem:[%s3364] sm:$0xff]
    %v3366 = vld [vmem:[%s3364 + $0x8] sm:$0xff]
    %v3367 = vld [vmem:[%s3364 + $0x10] sm:$0xff]
    %v3368 = vld [vmem:[%s3364 + $0x18] sm:$0xff]
    %v3370 = vsel %vm2431, %v3363, 0
    %3372 = vmatprep.subr.mxu0 0.0
    %3373 = vmatpush1.msra.mxu0 0.0
    %3374 = vmatprep.subr.mxu0 0.0
    %3375 = vmatpush1.msra.mxu0 0.0
    %3376 = vmatprep.subr.mxu0 0.0
    %3377 = vmatpush1.msra.mxu0 0.0
    %3378 = vmatprep.subr.mxu0 0.0
    %3379 = vmatpush1.msra.mxu0 0.0
    %3380 = vmatprep.subr.mxu0 0.0
    %3381 = vmatpush1.msra.mxu0 0.0
    %3382 = vmatprep.subr.mxu0 0.0
    %3383 = vmatpush1.msra.mxu0 0.0
    %3384 = vmatprep.subr.mxu0 0.0
    %3385 = vmatpush1.msra.mxu0 0.0
    %3386 = vmatprep.subr.mxu0 0.0
    %3387 = vmatpush1.msra.mxu0 0.0
    %3388 = vmatprep.subr.mxu0 0.0
    %3389 = vmatpush1.msra.mxu0 0.0
    %3390 = vmatprep.subr.mxu0 0.0
    %3391 = vmatpush1.msra.mxu0 0.0
    %3392 = vmatprep.subr.mxu0 0.0
    %3393 = vmatpush1.msra.mxu0 0.0
    %3394 = vmatprep.subr.mxu0 0.0
    %3395 = vmatpush1.msra.mxu0 0.0
    %3396 = vmatprep.subr.mxu0 0.0
    %3397 = vmatpush1.msra.mxu0 %v3368
    %3398 = vmatprep.subr.mxu0 0.0
    %3399 = vmatpush1.msra.mxu0 %v3367
    %3400 = vmatprep.subr.mxu0 0.0
    %3401 = vmatpush1.msra.mxu0 %v3366
    %3402 = vmatprep.subr.mxu0 0.0
    %3403 = vmatpush1.msra.mxu0 %v3365
    %3404 = vmatprep.subr.mxu0 0.0
    %3405 = vmatpush2.msra.mxu0 0.0
    %3406 = vmatprep.subr.mxu0 0.0
    %3407 = vmatpush2.msra.mxu0 0.0
    %3408 = vmatprep.subr.mxu0 0.0
    %3409 = vmatpush2.msra.mxu0 0.0
    %3410 = vmatprep.subr.mxu0 0.0
    %3411 = vmatpush2.msra.mxu0 0.0
    %3412 = vmatprep.subr.mxu0 0.0
    %3413 = vmatpush2.msra.mxu0 0.0
    %3414 = vmatprep.subr.mxu0 0.0
    %3415 = vmatpush2.msra.mxu0 0.0
    %3416 = vmatprep.subr.mxu0 0.0
    %3417 = vmatpush2.msra.mxu0 0.0
    %3418 = vmatprep.subr.mxu0 0.0
    %3419 = vmatpush2.msra.mxu0 0.0
    %3420 = vmatprep.subr.mxu0 0.0
    %3421 = vmatpush2.msra.mxu0 0.0
    %3422 = vmatprep.subr.mxu0 0.0
    %3423 = vmatpush2.msra.mxu0 0.0
    %3424 = vmatprep.subr.mxu0 0.0
    %3425 = vmatpush2.msra.mxu0 0.0
    %3426 = vmatprep.subr.mxu0 0.0
    %3427 = vmatpush2.msra.mxu0 0.0
    %3428 = vmatprep.subr.mxu0 0.0
    %3429 = vmatpush2.msra.mxu0 0.0
    %3430 = vmatprep.subr.mxu0 0.0
    %3431 = vmatpush2.msra.mxu0 0.0
    %3432 = vmatprep.subr.mxu0 0.0
    %3433 = vmatpush2.msra.mxu0 0.0
    %3434 = vmatprep.subr.mxu0 0.0
    %3435 = vmatpush2.msra.mxu0 0.0
    %3436 = vmatprep.mubr.f32.mxu0 0.0
    %3437 = vmatmul.mubr.f32.gmra.mxu0 %v3370
    %v3438 = vpop.f32.mrf.mxu0
    %v3439 = vadd.f32 0.0, %v3438
    %v3440 = vpop.f32.mrf.mxu0
    %3441 = vdwg.mxu0
    %v3442 = vadd.f32 %v3361, %v3439
    %s3443 = scalar_lea.vmem [#allocation3], 4
    %v3444 = vld [vmem:[%s3443] ss:$2 sm:$0x7]
    %s3445 = scalar_lea.vmem [#allocation8], 128
    %v3446 = vld [vmem:[%s3445] sm:$0xff]
    %v3447 = vld [vmem:[%s3445 + $0x8] sm:$0xff]
    %v3448 = vld [vmem:[%s3445 + $0x10] sm:$0xff]
    %v3449 = vld [vmem:[%s3445 + $0x18] sm:$0xff]
    %v3451 = vsel %vm2431, %v3444, 0
    %3453 = vmatprep.subr.mxu0 0.0
    %3454 = vmatpush1.msra.mxu0 0.0
    %3455 = vmatprep.subr.mxu0 0.0
    %3456 = vmatpush1.msra.mxu0 0.0
    %3457 = vmatprep.subr.mxu0 0.0
    %3458 = vmatpush1.msra.mxu0 0.0
    %3459 = vmatprep.subr.mxu0 0.0
    %3460 = vmatpush1.msra.mxu0 0.0
    %3461 = vmatprep.subr.mxu0 0.0
    %3462 = vmatpush1.msra.mxu0 0.0
    %3463 = vmatprep.subr.mxu0 0.0
    %3464 = vmatpush1.msra.mxu0 0.0
    %3465 = vmatprep.subr.mxu0 0.0
    %3466 = vmatpush1.msra.mxu0 0.0
    %3467 = vmatprep.subr.mxu0 0.0
    %3468 = vmatpush1.msra.mxu0 0.0
    %3469 = vmatprep.subr.mxu0 0.0
    %3470 = vmatpush1.msra.mxu0 0.0
    %3471 = vmatprep.subr.mxu0 0.0
    %3472 = vmatpush1.msra.mxu0 0.0
    %3473 = vmatprep.subr.mxu0 0.0
    %3474 = vmatpush1.msra.mxu0 0.0
    %3475 = vmatprep.subr.mxu0 0.0
    %3476 = vmatpush1.msra.mxu0 0.0
    %3477 = vmatprep.subr.mxu0 0.0
    %3478 = vmatpush1.msra.mxu0 %v3449
    %3479 = vmatprep.subr.mxu0 0.0
    %3480 = vmatpush1.msra.mxu0 %v3448
    %3481 = vmatprep.subr.mxu0 0.0
    %3482 = vmatpush1.msra.mxu0 %v3447
    %3483 = vmatprep.subr.mxu0 0.0
    %3484 = vmatpush1.msra.mxu0 %v3446
    %3485 = vmatprep.subr.mxu0 0.0
    %3486 = vmatpush2.msra.mxu0 0.0
    %3487 = vmatprep.subr.mxu0 0.0
    %3488 = vmatpush2.msra.mxu0 0.0
    %3489 = vmatprep.subr.mxu0 0.0
    %3490 = vmatpush2.msra.mxu0 0.0
    %3491 = vmatprep.subr.mxu0 0.0
    %3492 = vmatpush2.msra.mxu0 0.0
    %3493 = vmatprep.subr.mxu0 0.0
    %3494 = vmatpush2.msra.mxu0 0.0
    %3495 = vmatprep.subr.mxu0 0.0
    %3496 = vmatpush2.msra.mxu0 0.0
    %3497 = vmatprep.subr.mxu0 0.0
    %3498 = vmatpush2.msra.mxu0 0.0
    %3499 = vmatprep.subr.mxu0 0.0
    %3500 = vmatpush2.msra.mxu0 0.0
    %3501 = vmatprep.subr.mxu0 0.0
    %3502 = vmatpush2.msra.mxu0 0.0
    %3503 = vmatprep.subr.mxu0 0.0
    %3504 = vmatpush2.msra.mxu0 0.0
    %3505 = vmatprep.subr.mxu0 0.0
    %3506 = vmatpush2.msra.mxu0 0.0
    %3507 = vmatprep.subr.mxu0 0.0
    %3508 = vmatpush2.msra.mxu0 0.0
    %3509 = vmatprep.subr.mxu0 0.0
    %3510 = vmatpush2.msra.mxu0 0.0
    %3511 = vmatprep.subr.mxu0 0.0
    %3512 = vmatpush2.msra.mxu0 0.0
    %3513 = vmatprep.subr.mxu0 0.0
    %3514 = vmatpush2.msra.mxu0 0.0
    %3515 = vmatprep.subr.mxu0 0.0
    %3516 = vmatpush2.msra.mxu0 0.0
    %3517 = vmatprep.mubr.f32.mxu0 0.0
    %3518 = vmatmul.mubr.f32.gmra.mxu0 %v3451
    %v3519 = vpop.f32.mrf.mxu0
    %v3520 = vadd.f32 0.0, %v3519
    %v3521 = vpop.f32.mrf.mxu0
    %3522 = vdwg.mxu0
    %v3523 = vadd.f32 %v3442, %v3520
    %s3524 = scalar_lea.vmem [#allocation3], 5
    %v3525 = vld [vmem:[%s3524] ss:$2 sm:$0x7]
    %s3526 = scalar_lea.vmem [#allocation8], 160
    %v3527 = vld [vmem:[%s3526] sm:$0xff]
    %v3528 = vld [vmem:[%s3526 + $0x8] sm:$0xff]
    %v3529 = vld [vmem:[%s3526 + $0x10] sm:$0xff]
    %v3530 = vld [vmem:[%s3526 + $0x18] sm:$0xff]
    %v3532 = vsel %vm2431, %v3525, 0
    %3534 = vmatprep.subr.mxu0 0.0
    %3535 = vmatpush1.msra.mxu0 0.0
    %3536 = vmatprep.subr.mxu0 0.0
    %3537 = vmatpush1.msra.mxu0 0.0
    %3538 = vmatprep.subr.mxu0 0.0
    %3539 = vmatpush1.msra.mxu0 0.0
    %3540 = vmatprep.subr.mxu0 0.0
    %3541 = vmatpush1.msra.mxu0 0.0
    %3542 = vmatprep.subr.mxu0 0.0
    %3543 = vmatpush1.msra.mxu0 0.0
    %3544 = vmatprep.subr.mxu0 0.0
    %3545 = vmatpush1.msra.mxu0 0.0
    %3546 = vmatprep.subr.mxu0 0.0
    %3547 = vmatpush1.msra.mxu0 0.0
    %3548 = vmatprep.subr.mxu0 0.0
    %3549 = vmatpush1.msra.mxu0 0.0
    %3550 = vmatprep.subr.mxu0 0.0
    %3551 = vmatpush1.msra.mxu0 0.0
    %3552 = vmatprep.subr.mxu0 0.0
    %3553 = vmatpush1.msra.mxu0 0.0
    %3554 = vmatprep.subr.mxu0 0.0
    %3555 = vmatpush1.msra.mxu0 0.0
    %3556 = vmatprep.subr.mxu0 0.0
    %3557 = vmatpush1.msra.mxu0 0.0
    %3558 = vmatprep.subr.mxu0 0.0
    %3559 = vmatpush1.msra.mxu0 %v3530
    %3560 = vmatprep.subr.mxu0 0.0
    %3561 = vmatpush1.msra.mxu0 %v3529
    %3562 = vmatprep.subr.mxu0 0.0
    %3563 = vmatpush1.msra.mxu0 %v3528
    %3564 = vmatprep.subr.mxu0 0.0
    %3565 = vmatpush1.msra.mxu0 %v3527
    %3566 = vmatprep.subr.mxu0 0.0
    %3567 = vmatpush2.msra.mxu0 0.0
    %3568 = vmatprep.subr.mxu0 0.0
    %3569 = vmatpush2.msra.mxu0 0.0
    %3570 = vmatprep.subr.mxu0 0.0
    %3571 = vmatpush2.msra.mxu0 0.0
    %3572 = vmatprep.subr.mxu0 0.0
    %3573 = vmatpush2.msra.mxu0 0.0
    %3574 = vmatprep.subr.mxu0 0.0
    %3575 = vmatpush2.msra.mxu0 0.0
    %3576 = vmatprep.subr.mxu0 0.0
    %3577 = vmatpush2.msra.mxu0 0.0
    %3578 = vmatprep.subr.mxu0 0.0
    %3579 = vmatpush2.msra.mxu0 0.0
    %3580 = vmatprep.subr.mxu0 0.0
    %3581 = vmatpush2.msra.mxu0 0.0
    %3582 = vmatprep.subr.mxu0 0.0
    %3583 = vmatpush2.msra.mxu0 0.0
    %3584 = vmatprep.subr.mxu0 0.0
    %3585 = vmatpush2.msra.mxu0 0.0
    %3586 = vmatprep.subr.mxu0 0.0
    %3587 = vmatpush2.msra.mxu0 0.0
    %3588 = vmatprep.subr.mxu0 0.0
    %3589 = vmatpush2.msra.mxu0 0.0
    %3590 = vmatprep.subr.mxu0 0.0
    %3591 = vmatpush2.msra.mxu0 0.0
    %3592 = vmatprep.subr.mxu0 0.0
    %3593 = vmatpush2.msra.mxu0 0.0
    %3594 = vmatprep.subr.mxu0 0.0
    %3595 = vmatpush2.msra.mxu0 0.0
    %3596 = vmatprep.subr.mxu0 0.0
    %3597 = vmatpush2.msra.mxu0 0.0
    %3598 = vmatprep.mubr.f32.mxu0 0.0
    %3599 = vmatmul.mubr.f32.gmra.mxu0 %v3532
    %v3600 = vpop.f32.mrf.mxu0
    %v3601 = vadd.f32 0.0, %v3600
    %v3602 = vpop.f32.mrf.mxu0
    %3603 = vdwg.mxu0
    %v3604 = vadd.f32 %v3523, %v3601
    %s3605 = scalar_lea.vmem [#allocation3], 6
    %v3606 = vld [vmem:[%s3605] ss:$2 sm:$0x7]
    %s3607 = scalar_lea.vmem [#allocation8], 192
    %v3608 = vld [vmem:[%s3607] sm:$0xff]
    %v3609 = vld [vmem:[%s3607 + $0x8] sm:$0xff]
    %v3610 = vld [vmem:[%s3607 + $0x10] sm:$0xff]
    %v3611 = vld [vmem:[%s3607 + $0x18] sm:$0xff]
    %v3613 = vsel %vm2431, %v3606, 0
    %3615 = vmatprep.subr.mxu0 0.0
    %3616 = vmatpush1.msra.mxu0 0.0
    %3617 = vmatprep.subr.mxu0 0.0
    %3618 = vmatpush1.msra.mxu0 0.0
    %3619 = vmatprep.subr.mxu0 0.0
    %3620 = vmatpush1.msra.mxu0 0.0
    %3621 = vmatprep.subr.mxu0 0.0
    %3622 = vmatpush1.msra.mxu0 0.0
    %3623 = vmatprep.subr.mxu0 0.0
    %3624 = vmatpush1.msra.mxu0 0.0
    %3625 = vmatprep.subr.mxu0 0.0
    %3626 = vmatpush1.msra.mxu0 0.0
    %3627 = vmatprep.subr.mxu0 0.0
    %3628 = vmatpush1.msra.mxu0 0.0
    %3629 = vmatprep.subr.mxu0 0.0
    %3630 = vmatpush1.msra.mxu0 0.0
    %3631 = vmatprep.subr.mxu0 0.0
    %3632 = vmatpush1.msra.mxu0 0.0
    %3633 = vmatprep.subr.mxu0 0.0
    %3634 = vmatpush1.msra.mxu0 0.0
    %3635 = vmatprep.subr.mxu0 0.0
    %3636 = vmatpush1.msra.mxu0 0.0
    %3637 = vmatprep.subr.mxu0 0.0
    %3638 = vmatpush1.msra.mxu0 0.0
    %3639 = vmatprep.subr.mxu0 0.0
    %3640 = vmatpush1.msra.mxu0 %v3611
    %3641 = vmatprep.subr.mxu0 0.0
    %3642 = vmatpush1.msra.mxu0 %v3610
    %3643 = vmatprep.subr.mxu0 0.0
    %3644 = vmatpush1.msra.mxu0 %v3609
    %3645 = vmatprep.subr.mxu0 0.0
    %3646 = vmatpush1.msra.mxu0 %v3608
    %3647 = vmatprep.subr.mxu0 0.0
    %3648 = vmatpush2.msra.mxu0 0.0
    %3649 = vmatprep.subr.mxu0 0.0
    %3650 = vmatpush2.msra.mxu0 0.0
    %3651 = vmatprep.subr.mxu0 0.0
    %3652 = vmatpush2.msra.mxu0 0.0
    %3653 = vmatprep.subr.mxu0 0.0
    %3654 = vmatpush2.msra.mxu0 0.0
    %3655 = vmatprep.subr.mxu0 0.0
    %3656 = vmatpush2.msra.mxu0 0.0
    %3657 = vmatprep.subr.mxu0 0.0
    %3658 = vmatpush2.msra.mxu0 0.0
    %3659 = vmatprep.subr.mxu0 0.0
    %3660 = vmatpush2.msra.mxu0 0.0
    %3661 = vmatprep.subr.mxu0 0.0
    %3662 = vmatpush2.msra.mxu0 0.0
    %3663 = vmatprep.subr.mxu0 0.0
    %3664 = vmatpush2.msra.mxu0 0.0
    %3665 = vmatprep.subr.mxu0 0.0
    %3666 = vmatpush2.msra.mxu0 0.0
    %3667 = vmatprep.subr.mxu0 0.0
    %3668 = vmatpush2.msra.mxu0 0.0
    %3669 = vmatprep.subr.mxu0 0.0
    %3670 = vmatpush2.msra.mxu0 0.0
    %3671 = vmatprep.subr.mxu0 0.0
    %3672 = vmatpush2.msra.mxu0 0.0
    %3673 = vmatprep.subr.mxu0 0.0
    %3674 = vmatpush2.msra.mxu0 0.0
    %3675 = vmatprep.subr.mxu0 0.0
    %3676 = vmatpush2.msra.mxu0 0.0
    %3677 = vmatprep.subr.mxu0 0.0
    %3678 = vmatpush2.msra.mxu0 0.0
    %3679 = vmatprep.mubr.f32.mxu0 0.0
    %3680 = vmatmul.mubr.f32.gmra.mxu0 %v3613
    %v3681 = vpop.f32.mrf.mxu0
    %v3682 = vadd.f32 0.0, %v3681
    %v3683 = vpop.f32.mrf.mxu0
    %3684 = vdwg.mxu0
    %v3685 = vadd.f32 %v3604, %v3682
    %v3686 = vlaneseq
    %v3687 = vshrl.u32 %v3686, 7
    %v3688 = vsub.s32 0, %v3687
    %v3689 = vrot.slane %v3120, %v3688
    %v3690 = vadd.f32 %v3685, %v3689
    %vm3691 = vcmp.ge.f32.partialorder %v3690, 0.0
    %v3692 = vmul.f32 %v3690, 0.01
    %v3693 = vsel %vm3691, %v3690, %v3692
    %vm3694 = vcmask 124928
    %v3695 = vsel %vm3694, %v3693, 0.0
    %v3696 = vrot.slane %v3695, 4
    %v3697 = vadd.f32 %v3695, %v3696
    %v3698 = vrot.slane %v3697, 2
    %v3699 = vadd.f32 %v3697, %v3698
    %v3700 = vrot.slane %v3699, 1
    %v3701 = vadd.f32 %v3699, %v3700
    %v3702 = vmul.f32 %v3693, %v3693
    %v3703 = vsel %vm3694, %v3702, 0.0
    %v3704 = vrot.slane %v3703, 4
    %v3705 = vadd.f32 %v3703, %v3704
    %v3706 = vrot.slane %v3705, 2
    %v3707 = vadd.f32 %v3705, %v3706
    %v3708 = vrot.slane %v3707, 1
    %v3709 = vadd.f32 %v3707, %v3708
    %s3710 = scalar_lea.vmem [#allocation3], 11
    %v3711 = vld [vmem:[%s3710] ss:$2 sm:$0x7]
    %s3712 = scalar_lea.vmem [#allocation3], 12
    %v3713 = vld [vmem:[%s3712] ss:$2 sm:$0x7]
    %v3715 = vsel %vm2431, %v3713, 0
    %3717 = vmatprep.subr.mxu0 0.0
    %3718 = vmatpush1.msra.mxu0 0.0
    %3719 = vmatprep.subr.mxu0 0.0
    %3720 = vmatpush1.msra.mxu0 0.0
    %3721 = vmatprep.subr.mxu0 0.0
    %3722 = vmatpush1.msra.mxu0 0.0
    %3723 = vmatprep.subr.mxu0 0.0
    %3724 = vmatpush1.msra.mxu0 0.0
    %3725 = vmatprep.subr.mxu0 0.0
    %3726 = vmatpush1.msra.mxu0 0.0
    %3727 = vmatprep.subr.mxu0 0.0
    %3728 = vmatpush1.msra.mxu0 0.0
    %3729 = vmatprep.subr.mxu0 0.0
    %3730 = vmatpush1.msra.mxu0 0.0
    %3731 = vmatprep.subr.mxu0 0.0
    %3732 = vmatpush1.msra.mxu0 0.0
    %3733 = vmatprep.subr.mxu0 0.0
    %3734 = vmatpush1.msra.mxu0 0.0
    %3735 = vmatprep.subr.mxu0 0.0
    %3736 = vmatpush1.msra.mxu0 0.0
    %3737 = vmatprep.subr.mxu0 0.0
    %3738 = vmatpush1.msra.mxu0 0.0
    %3739 = vmatprep.subr.mxu0 0.0
    %3740 = vmatpush1.msra.mxu0 0.0
    %3741 = vmatprep.subr.mxu0 0.0
    %3742 = vmatpush1.msra.mxu0 %v3134
    %3743 = vmatprep.subr.mxu0 0.0
    %3744 = vmatpush1.msra.mxu0 %v3133
    %3745 = vmatprep.subr.mxu0 0.0
    %3746 = vmatpush1.msra.mxu0 %v3132
    %3747 = vmatprep.subr.mxu0 0.0
    %3748 = vmatpush1.msra.mxu0 %v3131
    %3749 = vmatprep.subr.mxu0 0.0
    %3750 = vmatpush2.msra.mxu0 0.0
    %3751 = vmatprep.subr.mxu0 0.0
    %3752 = vmatpush2.msra.mxu0 0.0
    %3753 = vmatprep.subr.mxu0 0.0
    %3754 = vmatpush2.msra.mxu0 0.0
    %3755 = vmatprep.subr.mxu0 0.0
    %3756 = vmatpush2.msra.mxu0 0.0
    %3757 = vmatprep.subr.mxu0 0.0
    %3758 = vmatpush2.msra.mxu0 0.0
    %3759 = vmatprep.subr.mxu0 0.0
    %3760 = vmatpush2.msra.mxu0 0.0
    %3761 = vmatprep.subr.mxu0 0.0
    %3762 = vmatpush2.msra.mxu0 0.0
    %3763 = vmatprep.subr.mxu0 0.0
    %3764 = vmatpush2.msra.mxu0 0.0
    %3765 = vmatprep.subr.mxu0 0.0
    %3766 = vmatpush2.msra.mxu0 0.0
    %3767 = vmatprep.subr.mxu0 0.0
    %3768 = vmatpush2.msra.mxu0 0.0
    %3769 = vmatprep.subr.mxu0 0.0
    %3770 = vmatpush2.msra.mxu0 0.0
    %3771 = vmatprep.subr.mxu0 0.0
    %3772 = vmatpush2.msra.mxu0 0.0
    %3773 = vmatprep.subr.mxu0 0.0
    %3774 = vmatpush2.msra.mxu0 0.0
    %3775 = vmatprep.subr.mxu0 0.0
    %3776 = vmatpush2.msra.mxu0 0.0
    %3777 = vmatprep.subr.mxu0 0.0
    %3778 = vmatpush2.msra.mxu0 0.0
    %3779 = vmatprep.subr.mxu0 0.0
    %3780 = vmatpush2.msra.mxu0 0.0
    %3781 = vmatprep.mubr.f32.mxu0 0.0
    %3782 = vmatmul.mubr.f32.gmra.mxu0 %v3715
    %v3783 = vpop.f32.mrf.mxu0
    %v3784 = vadd.f32 0.0, %v3783
    %v3785 = vpop.f32.mrf.mxu0
    %3786 = vdwg.mxu0
    %v3788 = vsel %vm2431, %v3711, 0
    %3790 = vmatprep.subr.mxu0 0.0
    %3791 = vmatpush1.msra.mxu0 0.0
    %3792 = vmatprep.subr.mxu0 0.0
    %3793 = vmatpush1.msra.mxu0 0.0
    %3794 = vmatprep.subr.mxu0 0.0
    %3795 = vmatpush1.msra.mxu0 0.0
    %3796 = vmatprep.subr.mxu0 0.0
    %3797 = vmatpush1.msra.mxu0 0.0
    %3798 = vmatprep.subr.mxu0 0.0
    %3799 = vmatpush1.msra.mxu0 0.0
    %3800 = vmatprep.subr.mxu0 0.0
    %3801 = vmatpush1.msra.mxu0 0.0
    %3802 = vmatprep.subr.mxu0 0.0
    %3803 = vmatpush1.msra.mxu0 0.0
    %3804 = vmatprep.subr.mxu0 0.0
    %3805 = vmatpush1.msra.mxu0 0.0
    %3806 = vmatprep.subr.mxu0 0.0
    %3807 = vmatpush1.msra.mxu0 0.0
    %3808 = vmatprep.subr.mxu0 0.0
    %3809 = vmatpush1.msra.mxu0 0.0
    %3810 = vmatprep.subr.mxu0 0.0
    %3811 = vmatpush1.msra.mxu0 0.0
    %3812 = vmatprep.subr.mxu0 0.0
    %3813 = vmatpush1.msra.mxu0 0.0
    %3814 = vmatprep.subr.mxu0 0.0
    %3815 = vmatpush1.msra.mxu0 %v3127
    %3816 = vmatprep.subr.mxu0 0.0
    %3817 = vmatpush1.msra.mxu0 %v3126
    %3818 = vmatprep.subr.mxu0 0.0
    %3819 = vmatpush1.msra.mxu0 %v3125
    %3820 = vmatprep.subr.mxu0 0.0
    %3821 = vmatpush1.msra.mxu0 %v3124
    %3822 = vmatprep.subr.mxu0 0.0
    %3823 = vmatpush2.msra.mxu0 0.0
    %3824 = vmatprep.subr.mxu0 0.0
    %3825 = vmatpush2.msra.mxu0 0.0
    %3826 = vmatprep.subr.mxu0 0.0
    %3827 = vmatpush2.msra.mxu0 0.0
    %3828 = vmatprep.subr.mxu0 0.0
    %3829 = vmatpush2.msra.mxu0 0.0
    %3830 = vmatprep.subr.mxu0 0.0
    %3831 = vmatpush2.msra.mxu0 0.0
    %3832 = vmatprep.subr.mxu0 0.0
    %3833 = vmatpush2.msra.mxu0 0.0
    %3834 = vmatprep.subr.mxu0 0.0
    %3835 = vmatpush2.msra.mxu0 0.0
    %3836 = vmatprep.subr.mxu0 0.0
    %3837 = vmatpush2.msra.mxu0 0.0
    %3838 = vmatprep.subr.mxu0 0.0
    %3839 = vmatpush2.msra.mxu0 0.0
    %3840 = vmatprep.subr.mxu0 0.0
    %3841 = vmatpush2.msra.mxu0 0.0
    %3842 = vmatprep.subr.mxu0 0.0
    %3843 = vmatpush2.msra.mxu0 0.0
    %3844 = vmatprep.subr.mxu0 0.0
    %3845 = vmatpush2.msra.mxu0 0.0
    %3846 = vmatprep.subr.mxu0 0.0
    %3847 = vmatpush2.msra.mxu0 0.0
    %3848 = vmatprep.subr.mxu0 0.0
    %3849 = vmatpush2.msra.mxu0 0.0
    %3850 = vmatprep.subr.mxu0 0.0
    %3851 = vmatpush2.msra.mxu0 0.0
    %3852 = vmatprep.subr.mxu0 0.0
    %3853 = vmatpush2.msra.mxu0 0.0
    %3854 = vmatprep.mubr.f32.mxu0 0.0
    %3855 = vmatmul.mubr.f32.gmra.mxu0 %v3788
    %v3856 = vpop.f32.mrf.mxu0
    %v3857 = vadd.f32 %v3784, %v3856
    %v3858 = vpop.f32.mrf.mxu0
    %3859 = vdwg.mxu0
    %s3860 = scalar_lea.vmem [#allocation3], 13
    %v3861 = vld [vmem:[%s3860] ss:$2 sm:$0x7]
    %v3863 = vsel %vm2431, %v3861, 0
    %3865 = vmatprep.subr.mxu0 0.0
    %3866 = vmatpush1.msra.mxu0 0.0
    %3867 = vmatprep.subr.mxu0 0.0
    %3868 = vmatpush1.msra.mxu0 0.0
    %3869 = vmatprep.subr.mxu0 0.0
    %3870 = vmatpush1.msra.mxu0 0.0
    %3871 = vmatprep.subr.mxu0 0.0
    %3872 = vmatpush1.msra.mxu0 0.0
    %3873 = vmatprep.subr.mxu0 0.0
    %3874 = vmatpush1.msra.mxu0 0.0
    %3875 = vmatprep.subr.mxu0 0.0
    %3876 = vmatpush1.msra.mxu0 0.0
    %3877 = vmatprep.subr.mxu0 0.0
    %3878 = vmatpush1.msra.mxu0 0.0
    %3879 = vmatprep.subr.mxu0 0.0
    %3880 = vmatpush1.msra.mxu0 0.0
    %3881 = vmatprep.subr.mxu0 0.0
    %3882 = vmatpush1.msra.mxu0 0.0
    %3883 = vmatprep.subr.mxu0 0.0
    %3884 = vmatpush1.msra.mxu0 0.0
    %3885 = vmatprep.subr.mxu0 0.0
    %3886 = vmatpush1.msra.mxu0 0.0
    %3887 = vmatprep.subr.mxu0 0.0
    %3888 = vmatpush1.msra.mxu0 0.0
    %3889 = vmatprep.subr.mxu0 0.0
    %3890 = vmatpush1.msra.mxu0 %v3287
    %3891 = vmatprep.subr.mxu0 0.0
    %3892 = vmatpush1.msra.mxu0 %v3286
    %3893 = vmatprep.subr.mxu0 0.0
    %3894 = vmatpush1.msra.mxu0 %v3285
    %3895 = vmatprep.subr.mxu0 0.0
    %3896 = vmatpush1.msra.mxu0 %v3284
    %3897 = vmatprep.subr.mxu0 0.0
    %3898 = vmatpush2.msra.mxu0 0.0
    %3899 = vmatprep.subr.mxu0 0.0
    %3900 = vmatpush2.msra.mxu0 0.0
    %3901 = vmatprep.subr.mxu0 0.0
    %3902 = vmatpush2.msra.mxu0 0.0
    %3903 = vmatprep.subr.mxu0 0.0
    %3904 = vmatpush2.msra.mxu0 0.0
    %3905 = vmatprep.subr.mxu0 0.0
    %3906 = vmatpush2.msra.mxu0 0.0
    %3907 = vmatprep.subr.mxu0 0.0
    %3908 = vmatpush2.msra.mxu0 0.0
    %3909 = vmatprep.subr.mxu0 0.0
    %3910 = vmatpush2.msra.mxu0 0.0
    %3911 = vmatprep.subr.mxu0 0.0
    %3912 = vmatpush2.msra.mxu0 0.0
    %3913 = vmatprep.subr.mxu0 0.0
    %3914 = vmatpush2.msra.mxu0 0.0
    %3915 = vmatprep.subr.mxu0 0.0
    %3916 = vmatpush2.msra.mxu0 0.0
    %3917 = vmatprep.subr.mxu0 0.0
    %3918 = vmatpush2.msra.mxu0 0.0
    %3919 = vmatprep.subr.mxu0 0.0
    %3920 = vmatpush2.msra.mxu0 0.0
    %3921 = vmatprep.subr.mxu0 0.0
    %3922 = vmatpush2.msra.mxu0 0.0
    %3923 = vmatprep.subr.mxu0 0.0
    %3924 = vmatpush2.msra.mxu0 0.0
    %3925 = vmatprep.subr.mxu0 0.0
    %3926 = vmatpush2.msra.mxu0 0.0
    %3927 = vmatprep.subr.mxu0 0.0
    %3928 = vmatpush2.msra.mxu0 0.0
    %3929 = vmatprep.mubr.f32.mxu0 0.0
    %3930 = vmatmul.mubr.f32.gmra.mxu0 %v3863
    %v3931 = vpop.f32.mrf.mxu0
    %v3932 = vadd.f32 0.0, %v3931
    %v3933 = vpop.f32.mrf.mxu0
    %3934 = vdwg.mxu0
    %v3935 = vadd.f32 %v3857, %v3932
    %s3936 = scalar_lea.vmem [#allocation3], 14
    %v3937 = vld [vmem:[%s3936] ss:$2 sm:$0x7]
    %v3939 = vsel %vm2431, %v3937, 0
    %3941 = vmatprep.subr.mxu0 0.0
    %3942 = vmatpush1.msra.mxu0 0.0
    %3943 = vmatprep.subr.mxu0 0.0
    %3944 = vmatpush1.msra.mxu0 0.0
    %3945 = vmatprep.subr.mxu0 0.0
    %3946 = vmatpush1.msra.mxu0 0.0
    %3947 = vmatprep.subr.mxu0 0.0
    %3948 = vmatpush1.msra.mxu0 0.0
    %3949 = vmatprep.subr.mxu0 0.0
    %3950 = vmatpush1.msra.mxu0 0.0
    %3951 = vmatprep.subr.mxu0 0.0
    %3952 = vmatpush1.msra.mxu0 0.0
    %3953 = vmatprep.subr.mxu0 0.0
    %3954 = vmatpush1.msra.mxu0 0.0
    %3955 = vmatprep.subr.mxu0 0.0
    %3956 = vmatpush1.msra.mxu0 0.0
    %3957 = vmatprep.subr.mxu0 0.0
    %3958 = vmatpush1.msra.mxu0 0.0
    %3959 = vmatprep.subr.mxu0 0.0
    %3960 = vmatpush1.msra.mxu0 0.0
    %3961 = vmatprep.subr.mxu0 0.0
    %3962 = vmatpush1.msra.mxu0 0.0
    %3963 = vmatprep.subr.mxu0 0.0
    %3964 = vmatpush1.msra.mxu0 0.0
    %3965 = vmatprep.subr.mxu0 0.0
    %3966 = vmatpush1.msra.mxu0 %v3368
    %3967 = vmatprep.subr.mxu0 0.0
    %3968 = vmatpush1.msra.mxu0 %v3367
    %3969 = vmatprep.subr.mxu0 0.0
    %3970 = vmatpush1.msra.mxu0 %v3366
    %3971 = vmatprep.subr.mxu0 0.0
    %3972 = vmatpush1.msra.mxu0 %v3365
    %3973 = vmatprep.subr.mxu0 0.0
    %3974 = vmatpush2.msra.mxu0 0.0
    %3975 = vmatprep.subr.mxu0 0.0
    %3976 = vmatpush2.msra.mxu0 0.0
    %3977 = vmatprep.subr.mxu0 0.0
    %3978 = vmatpush2.msra.mxu0 0.0
    %3979 = vmatprep.subr.mxu0 0.0
    %3980 = vmatpush2.msra.mxu0 0.0
    %3981 = vmatprep.subr.mxu0 0.0
    %3982 = vmatpush2.msra.mxu0 0.0
    %3983 = vmatprep.subr.mxu0 0.0
    %3984 = vmatpush2.msra.mxu0 0.0
    %3985 = vmatprep.subr.mxu0 0.0
    %3986 = vmatpush2.msra.mxu0 0.0
    %3987 = vmatprep.subr.mxu0 0.0
    %3988 = vmatpush2.msra.mxu0 0.0
    %3989 = vmatprep.subr.mxu0 0.0
    %3990 = vmatpush2.msra.mxu0 0.0
    %3991 = vmatprep.subr.mxu0 0.0
    %3992 = vmatpush2.msra.mxu0 0.0
    %3993 = vmatprep.subr.mxu0 0.0
    %3994 = vmatpush2.msra.mxu0 0.0
    %3995 = vmatprep.subr.mxu0 0.0
    %3996 = vmatpush2.msra.mxu0 0.0
    %3997 = vmatprep.subr.mxu0 0.0
    %3998 = vmatpush2.msra.mxu0 0.0
    %3999 = vmatprep.subr.mxu0 0.0
    %4000 = vmatpush2.msra.mxu0 0.0
    %4001 = vmatprep.subr.mxu0 0.0
    %4002 = vmatpush2.msra.mxu0 0.0
    %4003 = vmatprep.subr.mxu0 0.0
    %4004 = vmatpush2.msra.mxu0 0.0
    %4005 = vmatprep.mubr.f32.mxu0 0.0
    %4006 = vmatmul.mubr.f32.gmra.mxu0 %v3939
    %v4007 = vpop.f32.mrf.mxu0
    %v4008 = vadd.f32 0.0, %v4007
    %v4009 = vpop.f32.mrf.mxu0
    %4010 = vdwg.mxu0
    %v4011 = vadd.f32 %v3935, %v4008
    %s4012 = scalar_lea.vmem [#allocation3], 15
    %v4013 = vld [vmem:[%s4012] ss:$2 sm:$0x7]
    %v4015 = vsel %vm2431, %v4013, 0
    %4017 = vmatprep.subr.mxu0 0.0
    %4018 = vmatpush1.msra.mxu0 0.0
    %4019 = vmatprep.subr.mxu0 0.0
    %4020 = vmatpush1.msra.mxu0 0.0
    %4021 = vmatprep.subr.mxu0 0.0
    %4022 = vmatpush1.msra.mxu0 0.0
    %4023 = vmatprep.subr.mxu0 0.0
    %4024 = vmatpush1.msra.mxu0 0.0
    %4025 = vmatprep.subr.mxu0 0.0
    %4026 = vmatpush1.msra.mxu0 0.0
    %4027 = vmatprep.subr.mxu0 0.0
    %4028 = vmatpush1.msra.mxu0 0.0
    %4029 = vmatprep.subr.mxu0 0.0
    %4030 = vmatpush1.msra.mxu0 0.0
    %4031 = vmatprep.subr.mxu0 0.0
    %4032 = vmatpush1.msra.mxu0 0.0
    %4033 = vmatprep.subr.mxu0 0.0
    %4034 = vmatpush1.msra.mxu0 0.0
    %4035 = vmatprep.subr.mxu0 0.0
    %4036 = vmatpush1.msra.mxu0 0.0
    %4037 = vmatprep.subr.mxu0 0.0
    %4038 = vmatpush1.msra.mxu0 0.0
    %4039 = vmatprep.subr.mxu0 0.0
    %4040 = vmatpush1.msra.mxu0 0.0
    %4041 = vmatprep.subr.mxu0 0.0
    %4042 = vmatpush1.msra.mxu0 %v3449
    %4043 = vmatprep.subr.mxu0 0.0
    %4044 = vmatpush1.msra.mxu0 %v3448
    %4045 = vmatprep.subr.mxu0 0.0
    %4046 = vmatpush1.msra.mxu0 %v3447
    %4047 = vmatprep.subr.mxu0 0.0
    %4048 = vmatpush1.msra.mxu0 %v3446
    %4049 = vmatprep.subr.mxu0 0.0
    %4050 = vmatpush2.msra.mxu0 0.0
    %4051 = vmatprep.subr.mxu0 0.0
    %4052 = vmatpush2.msra.mxu0 0.0
    %4053 = vmatprep.subr.mxu0 0.0
    %4054 = vmatpush2.msra.mxu0 0.0
    %4055 = vmatprep.subr.mxu0 0.0
    %4056 = vmatpush2.msra.mxu0 0.0
    %4057 = vmatprep.subr.mxu0 0.0
    %4058 = vmatpush2.msra.mxu0 0.0
    %4059 = vmatprep.subr.mxu0 0.0
    %4060 = vmatpush2.msra.mxu0 0.0
    %4061 = vmatprep.subr.mxu0 0.0
    %4062 = vmatpush2.msra.mxu0 0.0
    %4063 = vmatprep.subr.mxu0 0.0
    %4064 = vmatpush2.msra.mxu0 0.0
    %4065 = vmatprep.subr.mxu0 0.0
    %4066 = vmatpush2.msra.mxu0 0.0
    %4067 = vmatprep.subr.mxu0 0.0
    %4068 = vmatpush2.msra.mxu0 0.0
    %4069 = vmatprep.subr.mxu0 0.0
    %4070 = vmatpush2.msra.mxu0 0.0
    %4071 = vmatprep.subr.mxu0 0.0
    %4072 = vmatpush2.msra.mxu0 0.0
    %4073 = vmatprep.subr.mxu0 0.0
    %4074 = vmatpush2.msra.mxu0 0.0
    %4075 = vmatprep.subr.mxu0 0.0
    %4076 = vmatpush2.msra.mxu0 0.0
    %4077 = vmatprep.subr.mxu0 0.0
    %4078 = vmatpush2.msra.mxu0 0.0
    %4079 = vmatprep.subr.mxu0 0.0
    %4080 = vmatpush2.msra.mxu0 0.0
    %4081 = vmatprep.mubr.f32.mxu0 0.0
    %4082 = vmatmul.mubr.f32.gmra.mxu0 %v4015
    %v4083 = vpop.f32.mrf.mxu0
    %v4084 = vadd.f32 0.0, %v4083
    %v4085 = vpop.f32.mrf.mxu0
    %4086 = vdwg.mxu0
    %v4087 = vadd.f32 %v4011, %v4084
    %s4088 = scalar_lea.vmem [#allocation3], 16
    %v4089 = vld [vmem:[%s4088] ss:$2 sm:$0x7]
    %v4091 = vsel %vm2431, %v4089, 0
    %4093 = vmatprep.subr.mxu0 0.0
    %4094 = vmatpush1.msra.mxu0 0.0
    %4095 = vmatprep.subr.mxu0 0.0
    %4096 = vmatpush1.msra.mxu0 0.0
    %4097 = vmatprep.subr.mxu0 0.0
    %4098 = vmatpush1.msra.mxu0 0.0
    %4099 = vmatprep.subr.mxu0 0.0
    %4100 = vmatpush1.msra.mxu0 0.0
    %4101 = vmatprep.subr.mxu0 0.0
    %4102 = vmatpush1.msra.mxu0 0.0
    %4103 = vmatprep.subr.mxu0 0.0
    %4104 = vmatpush1.msra.mxu0 0.0
    %4105 = vmatprep.subr.mxu0 0.0
    %4106 = vmatpush1.msra.mxu0 0.0
    %4107 = vmatprep.subr.mxu0 0.0
    %4108 = vmatpush1.msra.mxu0 0.0
    %4109 = vmatprep.subr.mxu0 0.0
    %4110 = vmatpush1.msra.mxu0 0.0
    %4111 = vmatprep.subr.mxu0 0.0
    %4112 = vmatpush1.msra.mxu0 0.0
    %4113 = vmatprep.subr.mxu0 0.0
    %4114 = vmatpush1.msra.mxu0 0.0
    %4115 = vmatprep.subr.mxu0 0.0
    %4116 = vmatpush1.msra.mxu0 0.0
    %4117 = vmatprep.subr.mxu0 0.0
    %4118 = vmatpush1.msra.mxu0 %v3530
    %4119 = vmatprep.subr.mxu0 0.0
    %4120 = vmatpush1.msra.mxu0 %v3529
    %4121 = vmatprep.subr.mxu0 0.0
    %4122 = vmatpush1.msra.mxu0 %v3528
    %4123 = vmatprep.subr.mxu0 0.0
    %4124 = vmatpush1.msra.mxu0 %v3527
    %4125 = vmatprep.subr.mxu0 0.0
    %4126 = vmatpush2.msra.mxu0 0.0
    %4127 = vmatprep.subr.mxu0 0.0
    %4128 = vmatpush2.msra.mxu0 0.0
    %4129 = vmatprep.subr.mxu0 0.0
    %4130 = vmatpush2.msra.mxu0 0.0
    %4131 = vmatprep.subr.mxu0 0.0
    %4132 = vmatpush2.msra.mxu0 0.0
    %4133 = vmatprep.subr.mxu0 0.0
    %4134 = vmatpush2.msra.mxu0 0.0
    %4135 = vmatprep.subr.mxu0 0.0
    %4136 = vmatpush2.msra.mxu0 0.0
    %4137 = vmatprep.subr.mxu0 0.0
    %4138 = vmatpush2.msra.mxu0 0.0
    %4139 = vmatprep.subr.mxu0 0.0
    %4140 = vmatpush2.msra.mxu0 0.0
    %4141 = vmatprep.subr.mxu0 0.0
    %4142 = vmatpush2.msra.mxu0 0.0
    %4143 = vmatprep.subr.mxu0 0.0
    %4144 = vmatpush2.msra.mxu0 0.0
    %4145 = vmatprep.subr.mxu0 0.0
    %4146 = vmatpush2.msra.mxu0 0.0
    %4147 = vmatprep.subr.mxu0 0.0
    %4148 = vmatpush2.msra.mxu0 0.0
    %4149 = vmatprep.subr.mxu0 0.0
    %4150 = vmatpush2.msra.mxu0 0.0
    %4151 = vmatprep.subr.mxu0 0.0
    %4152 = vmatpush2.msra.mxu0 0.0
    %4153 = vmatprep.subr.mxu0 0.0
    %4154 = vmatpush2.msra.mxu0 0.0
    %4155 = vmatprep.subr.mxu0 0.0
    %4156 = vmatpush2.msra.mxu0 0.0
    %4157 = vmatprep.mubr.f32.mxu0 0.0
    %4158 = vmatmul.mubr.f32.gmra.mxu0 %v4091
    %v4159 = vpop.f32.mrf.mxu0
    %v4160 = vadd.f32 0.0, %v4159
    %v4161 = vpop.f32.mrf.mxu0
    %4162 = vdwg.mxu0
    %v4163 = vadd.f32 %v4087, %v4160
    %s4164 = scalar_lea.vmem [#allocation3], 17
    %v4165 = vld [vmem:[%s4164] ss:$2 sm:$0x7]
    %v4167 = vsel %vm2431, %v4165, 0
    %4169 = vmatprep.subr.mxu0 0.0
    %4170 = vmatpush1.msra.mxu0 0.0
    %4171 = vmatprep.subr.mxu0 0.0
    %4172 = vmatpush1.msra.mxu0 0.0
    %4173 = vmatprep.subr.mxu0 0.0
    %4174 = vmatpush1.msra.mxu0 0.0
    %4175 = vmatprep.subr.mxu0 0.0
    %4176 = vmatpush1.msra.mxu0 0.0
    %4177 = vmatprep.subr.mxu0 0.0
    %4178 = vmatpush1.msra.mxu0 0.0
    %4179 = vmatprep.subr.mxu0 0.0
    %4180 = vmatpush1.msra.mxu0 0.0
    %4181 = vmatprep.subr.mxu0 0.0
    %4182 = vmatpush1.msra.mxu0 0.0
    %4183 = vmatprep.subr.mxu0 0.0
    %4184 = vmatpush1.msra.mxu0 0.0
    %4185 = vmatprep.subr.mxu0 0.0
    %4186 = vmatpush1.msra.mxu0 0.0
    %4187 = vmatprep.subr.mxu0 0.0
    %4188 = vmatpush1.msra.mxu0 0.0
    %4189 = vmatprep.subr.mxu0 0.0
    %4190 = vmatpush1.msra.mxu0 0.0
    %4191 = vmatprep.subr.mxu0 0.0
    %4192 = vmatpush1.msra.mxu0 0.0
    %4193 = vmatprep.subr.mxu0 0.0
    %4194 = vmatpush1.msra.mxu0 %v3611
    %4195 = vmatprep.subr.mxu0 0.0
    %4196 = vmatpush1.msra.mxu0 %v3610
    %4197 = vmatprep.subr.mxu0 0.0
    %4198 = vmatpush1.msra.mxu0 %v3609
    %4199 = vmatprep.subr.mxu0 0.0
    %4200 = vmatpush1.msra.mxu0 %v3608
    %4201 = vmatprep.subr.mxu0 0.0
    %4202 = vmatpush2.msra.mxu0 0.0
    %4203 = vmatprep.subr.mxu0 0.0
    %4204 = vmatpush2.msra.mxu0 0.0
    %4205 = vmatprep.subr.mxu0 0.0
    %4206 = vmatpush2.msra.mxu0 0.0
    %4207 = vmatprep.subr.mxu0 0.0
    %4208 = vmatpush2.msra.mxu0 0.0
    %4209 = vmatprep.subr.mxu0 0.0
    %4210 = vmatpush2.msra.mxu0 0.0
    %4211 = vmatprep.subr.mxu0 0.0
    %4212 = vmatpush2.msra.mxu0 0.0
    %4213 = vmatprep.subr.mxu0 0.0
    %4214 = vmatpush2.msra.mxu0 0.0
    %4215 = vmatprep.subr.mxu0 0.0
    %4216 = vmatpush2.msra.mxu0 0.0
    %4217 = vmatprep.subr.mxu0 0.0
    %4218 = vmatpush2.msra.mxu0 0.0
    %4219 = vmatprep.subr.mxu0 0.0
    %4220 = vmatpush2.msra.mxu0 0.0
    %4221 = vmatprep.subr.mxu0 0.0
    %4222 = vmatpush2.msra.mxu0 0.0
    %4223 = vmatprep.subr.mxu0 0.0
    %4224 = vmatpush2.msra.mxu0 0.0
    %4225 = vmatprep.subr.mxu0 0.0
    %4226 = vmatpush2.msra.mxu0 0.0
    %4227 = vmatprep.subr.mxu0 0.0
    %4228 = vmatpush2.msra.mxu0 0.0
    %4229 = vmatprep.subr.mxu0 0.0
    %4230 = vmatpush2.msra.mxu0 0.0
    %4231 = vmatprep.subr.mxu0 0.0
    %4232 = vmatpush2.msra.mxu0 0.0
    %4233 = vmatprep.mubr.f32.mxu0 0.0
    %4234 = vmatmul.mubr.f32.gmra.mxu0 %v4167
    %v4235 = vpop.f32.mrf.mxu0
    %v4236 = vadd.f32 0.0, %v4235
    %v4237 = vpop.f32.mrf.mxu0
    %4238 = vdwg.mxu0
    %v4239 = vadd.f32 %v4163, %v4236
    %v4240 = vadd.f32 %v4239, %v3689
    %vm4241 = vcmp.ge.f32.partialorder %v4240, 0.0
    %v4242 = vmul.f32 %v4240, 0.01
    %v4243 = vsel %vm4241, %v4240, %v4242
    %v4244 = vsel %vm3694, %v4243, 0.0
    %v4245 = vrot.slane %v4244, 4
    %v4246 = vadd.f32 %v4244, %v4245
    %v4247 = vrot.slane %v4246, 2
    %v4248 = vadd.f32 %v4246, %v4247
    %v4249 = vrot.slane %v4248, 1
    %v4250 = vadd.f32 %v4248, %v4249
    %v4251 = vmul.f32 %v4243, %v4243
    %v4252 = vsel %vm3694, %v4251, 0.0
    %v4253 = vrot.slane %v4252, 4
    %v4254 = vadd.f32 %v4252, %v4253
    %v4255 = vrot.slane %v4254, 2
    %v4256 = vadd.f32 %v4254, %v4255
    %v4257 = vrot.slane %v4256, 1
    %v4258 = vadd.f32 %v4256, %v4257
    %v4259 = vadd.f32 %v3701, %v4250
    %v4260 = vadd.f32 %v3709, %v4258
    %v4261 = vrcp.pop 6.0
    %v4262 = vmul.f32 %v4259, %v4261
    %v4263 = vmul.f32 %v4260, %v4261
    %v4264 = vmul.f32 %v4262, %v4262
    %v4265 = vsub.f32 %v4263, %v4264
    %v4266 = vmax.f32 %v4265, 0.0
    %v4267 = vadd.f32 %v4266, 1e-05
    %v4268 = vrsqrt.pop %v4267
    %v4269 = vmul.f32 %v3121, %v4268
    %v4270 = vmul.f32 %v4262, %v4269
    %v4271 = vsub.f32 %v3122, %v4270
    %v4272 = vlaneseq
    %v4273 = vshrl.u32 %v4272, 7
    %v4274 = vsub.s32 0, %v4273
    %v4275 = vrot.slane %v4269, %v4274
    %v4276 = vmul.f32 %v3693, %v4275
    %v4277 = vlaneseq
    %v4278 = vshrl.u32 %v4277, 7
    %v4279 = vsub.s32 0, %v4278
    %v4280 = vrot.slane %v4271, %v4279
    %v4281 = vadd.f32 %v4276, %v4280
    %4282 = vst.msk [vmem:[#allocation4] sm:$0x7] %vm3694, %v4281
    %v4283 = vmul.f32 %v4243, %v4275
    %v4284 = vadd.f32 %v4283, %v4280
    %4285 = vst.msk [vmem:[#allocation4 + $0x3] sm:$0x7] %vm3694, %v4284
    %v4286 = vld [vmem:[%s7] sm:$0x1]
    %v4287 = vld [vmem:[#allocation4] ss:$3 sm:$0x3]
    %v4288 = vld [vmem:[%s5] sm:$0xff]
    %v4289 = vld [vmem:[%s5 + $0x8] sm:$0xff]
    %vm4290 = vcmask 130048
    %v4292 = vsel %vm4290, %v4287, 0
    %4294 = vmatprep.subr.mxu0 0.0
    %4295 = vmatpush1.msra.mxu0 0.0
    %4296 = vmatprep.subr.mxu0 0.0
    %4297 = vmatpush1.msra.mxu0 0.0
    %4298 = vmatprep.subr.mxu0 0.0
    %4299 = vmatpush1.msra.mxu0 0.0
    %4300 = vmatprep.subr.mxu0 0.0
    %4301 = vmatpush1.msra.mxu0 0.0
    %4302 = vmatprep.subr.mxu0 0.0
    %4303 = vmatpush1.msra.mxu0 0.0
    %4304 = vmatprep.subr.mxu0 0.0
    %4305 = vmatpush1.msra.mxu0 0.0
    %4306 = vmatprep.subr.mxu0 0.0
    %4307 = vmatpush1.msra.mxu0 0.0
    %4308 = vmatprep.subr.mxu0 0.0
    %4309 = vmatpush1.msra.mxu0 0.0
    %4310 = vmatprep.subr.mxu0 0.0
    %4311 = vmatpush1.msra.mxu0 0.0
    %4312 = vmatprep.subr.mxu0 0.0
    %4313 = vmatpush1.msra.mxu0 0.0
    %4314 = vmatprep.subr.mxu0 0.0
    %4315 = vmatpush1.msra.mxu0 0.0
    %4316 = vmatprep.subr.mxu0 0.0
    %4317 = vmatpush1.msra.mxu0 0.0
    %4318 = vmatprep.subr.mxu0 0.0
    %4319 = vmatpush1.msra.mxu0 0.0
    %4320 = vmatprep.subr.mxu0 0.0
    %4321 = vmatpush1.msra.mxu0 0.0
    %4322 = vmatprep.subr.mxu0 0.0
    %4323 = vmatpush1.msra.mxu0 %v4289
    %4324 = vmatprep.subr.mxu0 0.0
    %4325 = vmatpush1.msra.mxu0 %v4288
    %4326 = vmatprep.subr.mxu0 0.0
    %4327 = vmatpush2.msra.mxu0 0.0
    %4328 = vmatprep.subr.mxu0 0.0
    %4329 = vmatpush2.msra.mxu0 0.0
    %4330 = vmatprep.subr.mxu0 0.0
    %4331 = vmatpush2.msra.mxu0 0.0
    %4332 = vmatprep.subr.mxu0 0.0
    %4333 = vmatpush2.msra.mxu0 0.0
    %4334 = vmatprep.subr.mxu0 0.0
    %4335 = vmatpush2.msra.mxu0 0.0
    %4336 = vmatprep.subr.mxu0 0.0
    %4337 = vmatpush2.msra.mxu0 0.0
    %4338 = vmatprep.subr.mxu0 0.0
    %4339 = vmatpush2.msra.mxu0 0.0
    %4340 = vmatprep.subr.mxu0 0.0
    %4341 = vmatpush2.msra.mxu0 0.0
    %4342 = vmatprep.subr.mxu0 0.0
    %4343 = vmatpush2.msra.mxu0 0.0
    %4344 = vmatprep.subr.mxu0 0.0
    %4345 = vmatpush2.msra.mxu0 0.0
    %4346 = vmatprep.subr.mxu0 0.0
    %4347 = vmatpush2.msra.mxu0 0.0
    %4348 = vmatprep.subr.mxu0 0.0
    %4349 = vmatpush2.msra.mxu0 0.0
    %4350 = vmatprep.subr.mxu0 0.0
    %4351 = vmatpush2.msra.mxu0 0.0
    %4352 = vmatprep.subr.mxu0 0.0
    %4353 = vmatpush2.msra.mxu0 0.0
    %4354 = vmatprep.subr.mxu0 0.0
    %4355 = vmatpush2.msra.mxu0 0.0
    %4356 = vmatprep.subr.mxu0 0.0
    %4357 = vmatpush2.msra.mxu0 0.0
    %4358 = vmatprep.mubr.f32.mxu0 0.0
    %4359 = vmatmul.mubr.f32.gmra.mxu0 %v4292
    %v4360 = vpop.f32.mrf.mxu0
    %v4361 = vadd.f32 0.0, %v4360
    %v4362 = vpop.f32.mrf.mxu0
    %4363 = vdwg.mxu0
    %v4364 = vlaneseq
    %v4365 = vshrl.u32 %v4364, 7
    %v4366 = vsub.s32 0, %v4365
    %v4367 = vrot.slane %v4286, %v4366
    %v4368 = vadd.f32 %v4367, %v4361
    %s4369 = scalar_lea.vmem [#allocation4], 1
    %v4370 = vld [vmem:[%s4369] ss:$3 sm:$0x3]
    %s4371 = scalar_lea.vmem %s5, 16
    %v4372 = vld [vmem:[%s4371] sm:$0xff]
    %v4373 = vld [vmem:[%s4371 + $0x8] sm:$0xff]
    %v4375 = vsel %vm4290, %v4370, 0
    %4377 = vmatprep.subr.mxu0 0.0
    %4378 = vmatpush1.msra.mxu0 0.0
    %4379 = vmatprep.subr.mxu0 0.0
    %4380 = vmatpush1.msra.mxu0 0.0
    %4381 = vmatprep.subr.mxu0 0.0
    %4382 = vmatpush1.msra.mxu0 0.0
    %4383 = vmatprep.subr.mxu0 0.0
    %4384 = vmatpush1.msra.mxu0 0.0
    %4385 = vmatprep.subr.mxu0 0.0
    %4386 = vmatpush1.msra.mxu0 0.0
    %4387 = vmatprep.subr.mxu0 0.0
    %4388 = vmatpush1.msra.mxu0 0.0
    %4389 = vmatprep.subr.mxu0 0.0
    %4390 = vmatpush1.msra.mxu0 0.0
    %4391 = vmatprep.subr.mxu0 0.0
    %4392 = vmatpush1.msra.mxu0 0.0
    %4393 = vmatprep.subr.mxu0 0.0
    %4394 = vmatpush1.msra.mxu0 0.0
    %4395 = vmatprep.subr.mxu0 0.0
    %4396 = vmatpush1.msra.mxu0 0.0
    %4397 = vmatprep.subr.mxu0 0.0
    %4398 = vmatpush1.msra.mxu0 0.0
    %4399 = vmatprep.subr.mxu0 0.0
    %4400 = vmatpush1.msra.mxu0 0.0
    %4401 = vmatprep.subr.mxu0 0.0
    %4402 = vmatpush1.msra.mxu0 0.0
    %4403 = vmatprep.subr.mxu0 0.0
    %4404 = vmatpush1.msra.mxu0 0.0
    %4405 = vmatprep.subr.mxu0 0.0
    %4406 = vmatpush1.msra.mxu0 %v4373
    %4407 = vmatprep.subr.mxu0 0.0
    %4408 = vmatpush1.msra.mxu0 %v4372
    %4409 = vmatprep.subr.mxu0 0.0
    %4410 = vmatpush2.msra.mxu0 0.0
    %4411 = vmatprep.subr.mxu0 0.0
    %4412 = vmatpush2.msra.mxu0 0.0
    %4413 = vmatprep.subr.mxu0 0.0
    %4414 = vmatpush2.msra.mxu0 0.0
    %4415 = vmatprep.subr.mxu0 0.0
    %4416 = vmatpush2.msra.mxu0 0.0
    %4417 = vmatprep.subr.mxu0 0.0
    %4418 = vmatpush2.msra.mxu0 0.0
    %4419 = vmatprep.subr.mxu0 0.0
    %4420 = vmatpush2.msra.mxu0 0.0
    %4421 = vmatprep.subr.mxu0 0.0
    %4422 = vmatpush2.msra.mxu0 0.0
    %4423 = vmatprep.subr.mxu0 0.0
    %4424 = vmatpush2.msra.mxu0 0.0
    %4425 = vmatprep.subr.mxu0 0.0
    %4426 = vmatpush2.msra.mxu0 0.0
    %4427 = vmatprep.subr.mxu0 0.0
    %4428 = vmatpush2.msra.mxu0 0.0
    %4429 = vmatprep.subr.mxu0 0.0
    %4430 = vmatpush2.msra.mxu0 0.0
    %4431 = vmatprep.subr.mxu0 0.0
    %4432 = vmatpush2.msra.mxu0 0.0
    %4433 = vmatprep.subr.mxu0 0.0
    %4434 = vmatpush2.msra.mxu0 0.0
    %4435 = vmatprep.subr.mxu0 0.0
    %4436 = vmatpush2.msra.mxu0 0.0
    %4437 = vmatprep.subr.mxu0 0.0
    %4438 = vmatpush2.msra.mxu0 0.0
    %4439 = vmatprep.subr.mxu0 0.0
    %4440 = vmatpush2.msra.mxu0 0.0
    %4441 = vmatprep.mubr.f32.mxu0 0.0
    %4442 = vmatmul.mubr.f32.gmra.mxu0 %v4375
    %v4443 = vpop.f32.mrf.mxu0
    %v4444 = vadd.f32 0.0, %v4443
    %v4445 = vpop.f32.mrf.mxu0
    %4446 = vdwg.mxu0
    %v4447 = vadd.f32 %v4368, %v4444
    %s4448 = scalar_lea.vmem [#allocation4], 2
    %v4449 = vld [vmem:[%s4448] ss:$3 sm:$0x3]
    %s4450 = scalar_lea.vmem %s5, 32
    %v4451 = vld [vmem:[%s4450] sm:$0xff]
    %v4452 = vld [vmem:[%s4450 + $0x8] sm:$0xff]
    %v4454 = vsel %vm4290, %v4449, 0
    %4456 = vmatprep.subr.mxu0 0.0
    %4457 = vmatpush1.msra.mxu0 0.0
    %4458 = vmatprep.subr.mxu0 0.0
    %4459 = vmatpush1.msra.mxu0 0.0
    %4460 = vmatprep.subr.mxu0 0.0
    %4461 = vmatpush1.msra.mxu0 0.0
    %4462 = vmatprep.subr.mxu0 0.0
    %4463 = vmatpush1.msra.mxu0 0.0
    %4464 = vmatprep.subr.mxu0 0.0
    %4465 = vmatpush1.msra.mxu0 0.0
    %4466 = vmatprep.subr.mxu0 0.0
    %4467 = vmatpush1.msra.mxu0 0.0
    %4468 = vmatprep.subr.mxu0 0.0
    %4469 = vmatpush1.msra.mxu0 0.0
    %4470 = vmatprep.subr.mxu0 0.0
    %4471 = vmatpush1.msra.mxu0 0.0
    %4472 = vmatprep.subr.mxu0 0.0
    %4473 = vmatpush1.msra.mxu0 0.0
    %4474 = vmatprep.subr.mxu0 0.0
    %4475 = vmatpush1.msra.mxu0 0.0
    %4476 = vmatprep.subr.mxu0 0.0
    %4477 = vmatpush1.msra.mxu0 0.0
    %4478 = vmatprep.subr.mxu0 0.0
    %4479 = vmatpush1.msra.mxu0 0.0
    %4480 = vmatprep.subr.mxu0 0.0
    %4481 = vmatpush1.msra.mxu0 0.0
    %4482 = vmatprep.subr.mxu0 0.0
    %4483 = vmatpush1.msra.mxu0 0.0
    %4484 = vmatprep.subr.mxu0 0.0
    %4485 = vmatpush1.msra.mxu0 %v4452
    %4486 = vmatprep.subr.mxu0 0.0
    %4487 = vmatpush1.msra.mxu0 %v4451
    %4488 = vmatprep.subr.mxu0 0.0
    %4489 = vmatpush2.msra.mxu0 0.0
    %4490 = vmatprep.subr.mxu0 0.0
    %4491 = vmatpush2.msra.mxu0 0.0
    %4492 = vmatprep.subr.mxu0 0.0
    %4493 = vmatpush2.msra.mxu0 0.0
    %4494 = vmatprep.subr.mxu0 0.0
    %4495 = vmatpush2.msra.mxu0 0.0
    %4496 = vmatprep.subr.mxu0 0.0
    %4497 = vmatpush2.msra.mxu0 0.0
    %4498 = vmatprep.subr.mxu0 0.0
    %4499 = vmatpush2.msra.mxu0 0.0
    %4500 = vmatprep.subr.mxu0 0.0
    %4501 = vmatpush2.msra.mxu0 0.0
    %4502 = vmatprep.subr.mxu0 0.0
    %4503 = vmatpush2.msra.mxu0 0.0
    %4504 = vmatprep.subr.mxu0 0.0
    %4505 = vmatpush2.msra.mxu0 0.0
    %4506 = vmatprep.subr.mxu0 0.0
    %4507 = vmatpush2.msra.mxu0 0.0
    %4508 = vmatprep.subr.mxu0 0.0
    %4509 = vmatpush2.msra.mxu0 0.0
    %4510 = vmatprep.subr.mxu0 0.0
    %4511 = vmatpush2.msra.mxu0 0.0
    %4512 = vmatprep.subr.mxu0 0.0
    %4513 = vmatpush2.msra.mxu0 0.0
    %4514 = vmatprep.subr.mxu0 0.0
    %4515 = vmatpush2.msra.mxu0 0.0
    %4516 = vmatprep.subr.mxu0 0.0
    %4517 = vmatpush2.msra.mxu0 0.0
    %4518 = vmatprep.subr.mxu0 0.0
    %4519 = vmatpush2.msra.mxu0 0.0
    %4520 = vmatprep.mubr.f32.mxu0 0.0
    %4521 = vmatmul.mubr.f32.gmra.mxu0 %v4454
    %v4522 = vpop.f32.mrf.mxu0
    %v4523 = vadd.f32 0.0, %v4522
    %v4524 = vpop.f32.mrf.mxu0
    %4525 = vdwg.mxu0
    %v4526 = vadd.f32 %v4447, %v4523
    %vm4527 = vcmp.ge.f32.partialorder %v4526, 0.0
    %v4528 = vmul.f32 %v4526, 0.01
    %v4529 = vsel %vm4527, %v4526, %v4528
    %v4530 = vld [vmem:[%s6] sm:$0xff]
    %v4531 = vld [vmem:[%s6 + $0x8] sm:$0xff]
    %v4533 = vsel %vm4290, %v4529, 0
    %4535 = vmatprep.subr.mxu0 0.0
    %4536 = vmatpush1.msra.mxu0 0.0
    %4537 = vmatprep.subr.mxu0 0.0
    %4538 = vmatpush1.msra.mxu0 0.0
    %4539 = vmatprep.subr.mxu0 0.0
    %4540 = vmatpush1.msra.mxu0 0.0
    %4541 = vmatprep.subr.mxu0 0.0
    %4542 = vmatpush1.msra.mxu0 0.0
    %4543 = vmatprep.subr.mxu0 0.0
    %4544 = vmatpush1.msra.mxu0 0.0
    %4545 = vmatprep.subr.mxu0 0.0
    %4546 = vmatpush1.msra.mxu0 0.0
    %4547 = vmatprep.subr.mxu0 0.0
    %4548 = vmatpush1.msra.mxu0 0.0
    %4549 = vmatprep.subr.mxu0 0.0
    %4550 = vmatpush1.msra.mxu0 0.0
    %4551 = vmatprep.subr.mxu0 0.0
    %4552 = vmatpush1.msra.mxu0 0.0
    %4553 = vmatprep.subr.mxu0 0.0
    %4554 = vmatpush1.msra.mxu0 0.0
    %4555 = vmatprep.subr.mxu0 0.0
    %4556 = vmatpush1.msra.mxu0 0.0
    %4557 = vmatprep.subr.mxu0 0.0
    %4558 = vmatpush1.msra.mxu0 0.0
    %4559 = vmatprep.subr.mxu0 0.0
    %4560 = vmatpush1.msra.mxu0 0.0
    %4561 = vmatprep.subr.mxu0 0.0
    %4562 = vmatpush1.msra.mxu0 0.0
    %4563 = vmatprep.subr.mxu0 0.0
    %4564 = vmatpush1.msra.mxu0 %v4531
    %4565 = vmatprep.subr.mxu0 0.0
    %4566 = vmatpush1.msra.mxu0 %v4530
    %4567 = vmatprep.subr.mxu0 0.0
    %4568 = vmatpush2.msra.mxu0 0.0
    %4569 = vmatprep.subr.mxu0 0.0
    %4570 = vmatpush2.msra.mxu0 0.0
    %4571 = vmatprep.subr.mxu0 0.0
    %4572 = vmatpush2.msra.mxu0 0.0
    %4573 = vmatprep.subr.mxu0 0.0
    %4574 = vmatpush2.msra.mxu0 0.0
    %4575 = vmatprep.subr.mxu0 0.0
    %4576 = vmatpush2.msra.mxu0 0.0
    %4577 = vmatprep.subr.mxu0 0.0
    %4578 = vmatpush2.msra.mxu0 0.0
    %4579 = vmatprep.subr.mxu0 0.0
    %4580 = vmatpush2.msra.mxu0 0.0
    %4581 = vmatprep.subr.mxu0 0.0
    %4582 = vmatpush2.msra.mxu0 0.0
    %4583 = vmatprep.subr.mxu0 0.0
    %4584 = vmatpush2.msra.mxu0 0.0
    %4585 = vmatprep.subr.mxu0 0.0
    %4586 = vmatpush2.msra.mxu0 0.0
    %4587 = vmatprep.subr.mxu0 0.0
    %4588 = vmatpush2.msra.mxu0 0.0
    %4589 = vmatprep.subr.mxu0 0.0
    %4590 = vmatpush2.msra.mxu0 0.0
    %4591 = vmatprep.subr.mxu0 0.0
    %4592 = vmatpush2.msra.mxu0 0.0
    %4593 = vmatprep.subr.mxu0 0.0
    %4594 = vmatpush2.msra.mxu0 0.0
    %4595 = vmatprep.subr.mxu0 0.0
    %4596 = vmatpush2.msra.mxu0 0.0
    %4597 = vmatprep.subr.mxu0 0.0
    %4598 = vmatpush2.msra.mxu0 0.0
    %4599 = vmatprep.mubr.f32.mxu0 0.0
    %4600 = vmatmul.mubr.f32.gmra.mxu0 %v4533
    %v4601 = vpop.f32.mrf.mxu0
    %v4602 = vadd.f32 0.0, %v4601
    %v4603 = vpop.f32.mrf.mxu0
    %4604 = vdwg.mxu0
    %vm4605 = vcmask 254976
    %v4606 = vsel %vm4605, %v4602, 0.0
    %4607 = vadd.xlane.f32.xlu0 %v4606
    %v4608 = vpop.xlane.xlu0 %4607
    %v4609 = vrcp.pop 32.0
    %v4610 = vmul.f32 %v4608, %v4609
    %v4611 = vmul.f32 %v4602, %v4602
    %v4612 = vsel %vm4605, %v4611, 0.0
    %4613 = vadd.xlane.f32.xlu0 %v4612
    %v4614 = vpop.xlane.xlu0 %4613
    %v4615 = vmul.f32 %v4614, %v4609
    %v4616 = vmul.f32 %v4610, %v4610
    %v4617 = vsub.f32 %v4615, %v4616
    %v4618 = vmax.f32 %v4617, 0.0
    %v4619 = vsub.f32 %v4602, %v4610
    %v4620 = vadd.f32 %v4618, 1e-05
    %v4621 = vrsqrt.pop %v4620
    %v4622 = vmul.f32 %v4619, %v4621
    %v4623 = vld [vmem:[%s7 + $0x1] sm:$0x1]
    %v4624 = vlaneseq
    %v4625 = vshrl.u32 %v4624, 7
    %v4626 = vsub.s32 0, %v4625
    %v4627 = vrot.slane %v4623, %v4626
    %v4628 = vmul.f32 %v4622, %v4627
    %v4629 = vld [vmem:[%s7 + $0x2] sm:$0x1]
    %v4630 = vlaneseq
    %v4631 = vshrl.u32 %v4630, 7
    %v4632 = vsub.s32 0, %v4631
    %v4633 = vrot.slane %v4629, %v4632
    %v4634 = vadd.f32 %v4628, %v4633
    %4635 = vst.msk [vmem:[#allocation10] sm:$0x3] %vm4605, %v4634
    // Predicated region
    $region42: #{_lambda_.1} parent=1 // pred_check
      _
    $region43: #{_lambda_.1} parent=1 // pred_check_branch
      %4637 = sbr.rel (0) target = $region45
    $region44: #{_lambda_.1} parent=1 // pred_region
      %s4639 = ssub.s32 32, 32
      %4640 = vsyncadd [#allocation7], %s4639
      %s4642 = sshll.u32 [#allocation10], 4
      %s4643 = int_to_ptr.vmem [resolvable:$true] %s4642
      %4645 = dma.vmem_to_hbm [thread:$0]  %s4643, 32, %s8, [#allocation7]
    $region45: #{_lambda_.1} parent=1 // pred_fallthru
      _
    // Predicated region
    $region46: #{_lambda_.1} parent=1 // pred_check
      _
    $region47: #{_lambda_.1} parent=1 // pred_check_branch
      %4647 = sbr.rel (0) target = $region49
    $region48: #{_lambda_.1} parent=1 // pred_region
      %4648 = dma.done [#allocation7], 32
    $region49: #{_lambda_.1} parent=1 // pred_fallthru
      _
    %4649 = vsyncpa [#allocation6], 1
    %4650 = vsyncpa [#allocation9], 1
    %4651 = vsyncpa [#allocation7], 1

</llo_original>
